<compile_context>
chip_gen: v7x
topology: tpu7x:2x2x1
jax: 0.10.0
libtpu: 0.0.40
codegen_flags: <defaults>
</compile_context>

<pallas_src>
import functools
import math

import numpy as np

import jax
import jax.numpy as jnp
from jax import lax
from jax.experimental import pallas as pl
from jax.experimental.pallas import tpu as pltpu  # noqa: F401

_BF16 = jnp.bfloat16
_F32 = jnp.float32


# ---------------------------------------------------------------------------
# In-kernel math helpers (element-wise math in f32; bf16 only as MXU operands)
# ---------------------------------------------------------------------------

def _erf(x):
    # Abramowitz & Stegun 7.1.26 polynomial erf (|err| < 1.5e-7 ~ f32-exact);
    # keeps exact-GELU semantics without relying on a Mosaic erf lowering.
    p = 0.3275911
    a1, a2, a3, a4, a5 = (0.254829592, -0.284496736, 1.421413741,
                          -1.453152027, 1.061405429)
    z = jnp.abs(x)
    t = 1.0 / (1.0 + p * z)
    poly = ((((a5 * t + a4) * t + a3) * t + a2) * t + a1) * t
    y = 1.0 - poly * jnp.exp(-z * z)
    return jnp.where(x >= 0, y, -y)


def _gelu(x):
    return 0.5 * x * (1.0 + _erf(x * 0.7071067811865476))


def _layernorm(x, g, b, eps=1e-5):
    mu = jnp.mean(x, axis=-1, keepdims=True)
    xc = x - mu
    var = jnp.mean(xc * xc, axis=-1, keepdims=True)
    return xc * lax.rsqrt(var + eps) * g + b


# ---------------------------------------------------------------------------
# Pallas kernel: fused conv_reduce + pos emb + GELU + LayerNorm + full
# transformer encoder stack + classification head.  All operands are
# whole-array VMEM blocks (no grid); per-layer / per-head loops are static
# Python loops unrolled at trace time.
# ---------------------------------------------------------------------------

def _fused_net_kernel(xr_ref, pos_ref, mask_ref, pool_ref,
                      wred_ref, bred_ref, gemb_ref, bemb_ref,
                      wqkv_ref, bqkv_ref, wo_ref, bo_ref,
                      wf1_ref, bf1_ref, wf2_ref, bf2_ref,
                      n1g_ref, n1b_ref, n2g_ref, n2b_ref,
                      hng_ref, hnb_ref, whead_ref, bhead_ref,
                      out_ref, *, E, H, NL):
    D = E // H

    # --- ComplexTemporalEncoder tail: conv_reduce GEMM + pos + GELU + LN ---
    h = jnp.dot(xr_ref[...].astype(_BF16), wred_ref[...],
                preferred_element_type=_F32) + bred_ref[...]
    h = h + pos_ref[...]
    h = _gelu(h)
    h = _layernorm(h, gemb_ref[...], bemb_ref[...])

    # [BTP, BTP]: 0 within an example, -1e30 across examples / padded rows.
    mask = mask_ref[...]

    # --- Transformer encoder stack ---
    for l in range(NL):
        shortcut = h
        hb = h.astype(_BF16)

        # One lane-dense QKV GEMM per layer (1/sqrt(D) already folded into Wq).
        qkv = (jnp.dot(hb, wqkv_ref[l], preferred_element_type=_F32)
               + bqkv_ref[l])                                   # [BTP, >=3E]

        heads = []
        for hh in range(H):
            qh = qkv[:, hh * D:(hh + 1) * D]
            kh = qkv[:, E + hh * D:E + (hh + 1) * D]
            vh = qkv[:, 2 * E + hh * D:2 * E + (hh + 1) * D]
            s = lax.dot_general(qh.astype(_BF16), kh.astype(_BF16),
                                (((1,), (1,)), ((), ())),
                                preferred_element_type=_F32)    # [BTP, BTP]
            s = s + mask
            s = s - jnp.max(s, axis=-1, keepdims=True)
            p = jnp.exp(s)
            p = p / jnp.sum(p, axis=-1, keepdims=True)          # exact softmax
            heads.append(jnp.dot(p.astype(_BF16), vh.astype(_BF16),
                                 preferred_element_type=_F32))  # [BTP, D]

        # Lane-concat heads -> one [E, E] out-projection GEMM.
        ctx = jnp.concatenate(heads, axis=-1)                   # [BTP, E]
        attn = (jnp.dot(ctx.astype(_BF16), wo_ref[l],
                        preferred_element_type=_F32) + bo_ref[l])

        src = _layernorm(h + attn, n1g_ref[l], n1b_ref[l])
        ff = jnp.dot(src.astype(_BF16), wf1_ref[l],
                     preferred_element_type=_F32) + bf1_ref[l]
        ff = _gelu(ff)
        ff = jnp.dot(ff.astype(_BF16), wf2_ref[l],
                     preferred_element_type=_F32) + bf2_ref[l]
        src = _layernorm(src + ff, n2g_ref[l], n2b_ref[l])
        # NOTE: the reference TransformerEncoderLayer really adds this extra
        # outer residual (`src = shortcut + dropout(src)`), so we keep it.
        h = shortcut + src

    # --- ClassificationHead: per-example token mean -> LN -> ReLU -> Linear ---
    m = jnp.dot(pool_ref[...], h, preferred_element_type=_F32)  # [BP, E]
    m = _layernorm(m, hng_ref[...], hnb_ref[...])
    m = jnp.maximum(m, 0.0)
    out_ref[...] = jnp.dot(m.astype(_BF16), whead_ref[...],
                           preferred_element_type=_F32) + bhead_ref[...]


# ---------------------------------------------------------------------------
# JAX glue: interpolation + im2col (gathers) + the two tiny conv GEMMs.
# TODO(synk): the im2col gathers / linear resample have no clean Pallas
# equivalent; the conv1/conv2 GEMMs stay in XLA because at this size their
# wall clock is 100% pallas_call fixed overhead (per the perf review).
# ---------------------------------------------------------------------------

def interpolate_linear_downsample(x_bcl, scale_factor):
    """F.interpolate(x, scale_factor=sf, mode='linear', align_corners=False)."""
    B, C, L = x_bcl.shape
    out_len = int(math.floor(L * scale_factor))
    inv = 1.0 / scale_factor
    src = inv * (jnp.arange(out_len, dtype=_F32) + 0.5) - 0.5
    src = jnp.maximum(src, 0.0)
    lo = jnp.floor(src).astype(jnp.int32)
    hi = jnp.minimum(lo + 1, L - 1)
    lam = src - lo.astype(_F32)
    return x_bcl[..., lo] * (1.0 - lam) + x_bcl[..., hi] * lam


def _im2col(x_blc, K, stride, padding):
    """Channels-last im2col; returns ([B, T, K*C] patches in (k, c) order, T)."""
    B, L, C = x_blc.shape
    xp = jnp.pad(x_blc, ((0, 0), (padding, padding), (0, 0)))
    T = (L + 2 * padding - K) // stride + 1
    idx = (jnp.arange(T) * stride)[:, None] + jnp.arange(K)[None, :]   # [T, K]
    patches = xp[:, idx, :]                                            # [B, T, K, C]
    return patches.reshape(B, T, K * C), T


# ---------------------------------------------------------------------------
# Parameter init (synthetic, deterministic; shapes match the module __init__)
# ---------------------------------------------------------------------------

def init_params(key, emb_size, nhead, num_layers, num_classes,
                dim_ff=512, max_seq_len=8192):
    E, H, NL, F = emb_size, nhead, num_layers, dim_ff
    D = E // H
    e4, e2 = E // 4, E // 2
    ncpad = max(128, ((num_classes + 127) // 128) * 128)
    qkv_pad = max(128, ((3 * E + 127) // 128) * 128)
    scale = 1.0 / math.sqrt(D)
    ks = iter(jax.random.split(key, 32))
    nk = lambda: next(ks)

    def kaiming_conv(k, cin, cout):
        # nn.init.kaiming_normal_(w, mode='fan_out'): std = sqrt(2 / (cout * k))
        std = math.sqrt(2.0 / (cout * k))
        return jax.random.normal(nk(), (k, cin, cout), _F32) * std

    def lin(fan_in, shape):
        return jax.random.normal(nk(), shape, _F32) / math.sqrt(fan_in)

    # ConvBranch real/imag weights packed block-diagonally so both branches of
    # each conv stage run as ONE GEMM (mag/phase branches are dead code).
    w1r, w1i = kaiming_conv(7, 1, e4), kaiming_conv(7, 1, e4)
    w2r, w2i = kaiming_conv(5, e4, e2), kaiming_conv(5, e4, e2)

    blk1 = jnp.zeros((7, 2, 2 * e4), _F32)                # rows ordered (k, chan)
    blk1 = blk1.at[:, 0, :e4].set(w1r[:, 0, :])           # real -> cols [:e4]
    blk1 = blk1.at[:, 1, e4:].set(w1i[:, 0, :])           # imag -> cols [e4:]
    conv1_w = blk1.reshape(7 * 2, 2 * e4)

    blk2 = jnp.zeros((5, 2 * e4, 2 * e2), _F32)           # rows ordered (k, chan)
    blk2 = blk2.at[:, :e4, :e2].set(w2r)
    blk2 = blk2.at[:, e4:, e2:].set(w2i)
    conv2_w = blk2.reshape(5 * 2 * e4, 2 * e2)

    w_red = kaiming_conv(5, E, E).reshape(5 * E, E)

    # QKV packed lane-dense per layer: cols [0:E]=Wq*scale, [E:2E]=Wk,
    # [2E:3E]=Wv, remainder zero-padded to a full 128-lane tile.
    wq = lin(E, (NL, E, E)) * scale
    wk = lin(E, (NL, E, E))
    wv = lin(E, (NL, E, E))
    wqkv = jnp.zeros((NL, E, qkv_pad), _F32)
    wqkv = (wqkv.at[:, :, 0:E].set(wq)
                 .at[:, :, E:2 * E].set(wk)
                 .at[:, :, 2 * E:3 * E].set(wv))
    bqkv = jnp.zeros((NL, 1, qkv_pad), _F32)

    return {
        # conv1/conv2 run as plain XLA dots -> keep f32.
        "conv1_w": conv1_w, "conv1_b": jnp.zeros((2 * e4,), _F32),
        "conv2_w": conv2_w, "conv2_b": jnp.zeros((2 * e2,), _F32),
        "conv_red_w": w_red.astype(_BF16), "conv_red_b": jnp.zeros((1, E), _F32),
        "pos_embed": jax.random.normal(nk(), (1, max_seq_len, E), _F32),
        "emb_norm_g": jnp.ones((1, E), _F32), "emb_norm_b": jnp.zeros((1, E), _F32),
        # Transformer layers.
        "wqkv": wqkv.astype(_BF16), "bqkv": bqkv,
        "wo": lin(E, (NL, E, E)).astype(_BF16), "bo": jnp.zeros((NL, 1, E), _F32),
        "wf1": lin(E, (NL, E, F)).astype(_BF16), "bf1": jnp.zeros((NL, 1, F), _F32),
        "wf2": lin(F, (NL, F, E)).astype(_BF16), "bf2": jnp.zeros((NL, 1, E), _F32),
        "n1_g": jnp.ones((NL, 1, E), _F32), "n1_b": jnp.zeros((NL, 1, E), _F32),
        "n2_g": jnp.ones((NL, 1, E), _F32), "n2_b": jnp.zeros((NL, 1, E), _F32),
        # Classification head, linear padded lane-dense to a 128-wide slab.
        "head_norm_g": jnp.ones((1, E), _F32), "head_norm_b": jnp.zeros((1, E), _F32),
        "head_w": jnp.pad(lin(E, (E, num_classes)),
                          ((0, 0), (0, ncpad - num_classes))).astype(_BF16),
        "head_b": jnp.zeros((1, ncpad), _F32),
    }


# ---------------------------------------------------------------------------
# Forward pass
# ---------------------------------------------------------------------------

def easytrans_forward(params, iq, *, emb_size, nhead, num_classes):
    B = iq.shape[0]
    E, H = emb_size, nhead

    # 1) linear downsample by 1/14 (gather glue).
    x = interpolate_linear_downsample(iq, 1.0 / 14.0)          # [B, 2, L']
    x = jnp.transpose(x, (0, 2, 1))                            # [B, L', 2]

    # 2/3) ConvBranch stages 1 & 2 (real+imag packed block-diag) — tiny GEMMs,
    # left to XLA so the whole network needs exactly ONE pallas_call.
    p1, T1 = _im2col(x, K=7, stride=3, padding=3)
    y1 = jnp.einsum('btk,kn->btn', p1, params["conv1_w"]) + params["conv1_b"]
    p2, T2 = _im2col(y1, K=5, stride=2, padding=2)
    y2 = jnp.einsum('btk,kn->btn', p2, params["conv2_w"]) + params["conv2_b"]

    # 4) conv_reduce patches; the GEMM itself is fused into the big kernel.
    p3, T = _im2col(y2, K=5, stride=3, padding=0)
    xr = p3.reshape(B * T, -1)                                 # [BT, 5E]

    # Pad sublane dims to full tiles: BT -> multiple of 8, batch rows -> >=8.
    BT = B * T
    BTP = ((BT + 7) // 8) * 8
    BP = max(8, ((B + 7) // 8) * 8)

    xr = jnp.pad(xr, ((0, BTP - BT), (0, 0)))
    pos_bt = jnp.tile(params["pos_embed"][0, :T, :], (B, 1))   # [BT, E]
    pos_bt = jnp.pad(pos_bt, ((0, BTP - BT), (0, 0)))

    # Static block-diagonal attention mask + mean-pool matrix (trace constants).
    # Padded rows get unique negative "example" ids -> they only attend to
    # themselves and carry zero pool weight, so they never touch real outputs.
    owner = np.repeat(np.arange(B), T)
    owner_pad = np.concatenate([owner, -1 - np.arange(BTP - BT)])
    mask = jnp.asarray(
        np.where(owner_pad[:, None] == owner_pad[None, :], 0.0, -1e30),
        dtype=_F32)
    pool_np = np.zeros((BP, BTP), np.float32)
    pool_np[:B, :BT] = (np.arange(B)[:, None] == owner[None, :]).astype(np.float32) / T
    pool = jnp.asarray(pool_np)

    NL = params["wf1"].shape[0]
    ncpad = params["head_w"].shape[1]
    # TODO(synk): if B/T/E ever scale up, grid this call over examples
    # (attention is block-diagonal, so examples are independent) with
    # dimension_semantics=("parallel",) for v7x's second TensorCore, and
    # stream per-layer weights via a grid over `l` to stay under v7x VMEM.
    kernel = functools.partial(_fused_net_kernel, E=E, H=H, NL=NL)
    logits = pl.pallas_call(
        kernel,
        out_shape=jax.ShapeDtypeStruct((BP, ncpad), _F32),
    )(xr, pos_bt, mask, pool,
      params["conv_red_w"], params["conv_red_b"],
      params["emb_norm_g"], params["emb_norm_b"],
      params["wqkv"], params["bqkv"], params["wo"], params["bo"],
      params["wf1"], params["bf1"], params["wf2"], params["bf2"],
      params["n1_g"], params["n1_b"], params["n2_g"], params["n2_b"],
      params["head_norm_g"], params["head_norm_b"],
      params["head_w"], params["head_b"])
    return logits[:B, :num_classes]


if __name__ == "__main__":
    # L = 1792 -> /14 -> 128 -> conv1(s3) -> 43 -> conv2(s2) -> 22 -> reduce(s3) -> 6 tokens
    B, L = 2, 1792
    emb_size, nhead, num_layers, num_classes = 32, 4, 2, 10

    key = jax.random.PRNGKey(0)
    kp, kx = jax.random.split(key)
    params = init_params(kp, emb_size, nhead, num_layers, num_classes)
    iq = jax.random.normal(kx, (B, 2, L), _F32)

    fwd = jax.jit(functools.partial(easytrans_forward, emb_size=emb_size,
                                    nhead=nhead, num_classes=num_classes))
    out = jax.block_until_ready(fwd(params, iq))
    assert out.shape == (B, num_classes), out.shape
    assert bool(jnp.all(jnp.isfinite(out)))
    print("KERNEL_OK")
</pallas_src>

<mosaic_0001>
module attributes {stable_mosaic.version = 11 : i64} {
  func.func @_fused_net_kernel(%arg0: memref<16x160xf32, #tpu.memory_space<vmem>>, %arg1: memref<16x32xf32, #tpu.memory_space<vmem>>, %arg2: memref<16x16xf32, #tpu.memory_space<vmem>>, %arg3: memref<8x16xf32, #tpu.memory_space<vmem>>, %arg4: memref<160x32xbf16, #tpu.memory_space<vmem>>, %arg5: memref<1x32xf32, #tpu.memory_space<vmem>>, %arg6: memref<1x32xf32, #tpu.memory_space<vmem>>, %arg7: memref<1x32xf32, #tpu.memory_space<vmem>>, %arg8: memref<2x32x128xbf16, #tpu.memory_space<vmem>>, %arg9: memref<2x1x128xf32, #tpu.memory_space<vmem>>, %arg10: memref<2x32x32xbf16, #tpu.memory_space<vmem>>, %arg11: memref<2x1x32xf32, #tpu.memory_space<vmem>>, %arg12: memref<2x32x512xbf16, #tpu.memory_space<vmem>>, %arg13: memref<2x1x512xf32, #tpu.memory_space<vmem>>, %arg14: memref<2x512x32xbf16, #tpu.memory_space<vmem>>, %arg15: memref<2x1x32xf32, #tpu.memory_space<vmem>>, %arg16: memref<2x1x32xf32, #tpu.memory_space<vmem>>, %arg17: memref<2x1x32xf32, #tpu.memory_space<vmem>>, %arg18: memref<2x1x32xf32, #tpu.memory_space<vmem>>, %arg19: memref<2x1x32xf32, #tpu.memory_space<vmem>>, %arg20: memref<1x32xf32, #tpu.memory_space<vmem>>, %arg21: memref<1x32xf32, #tpu.memory_space<vmem>>, %arg22: memref<32x128xbf16, #tpu.memory_space<vmem>>, %arg23: memref<1x128xf32, #tpu.memory_space<vmem>>, %arg24: memref<8x128xf32, #tpu.memory_space<vmem>>) attributes {dimension_semantics = [], scalar_prefetch = 0 : i64, scratch_operands = 0 : i64, tpu.core_type = #tpu.core_type<tc>} {
    %c0 = arith.constant 0 : index
    %c0_0 = arith.constant 0 : index
    %0 = vector.load %arg0[%c0, %c0_0] : memref<16x160xf32, #tpu.memory_space<vmem>>, vector<16x160xf32>
    %1 = arith.truncf %0 : vector<16x160xf32> to vector<16x160xbf16>
    %c0_1 = arith.constant 0 : index
    %c0_2 = arith.constant 0 : index
    %2 = vector.load %arg4[%c0_1, %c0_2] : memref<160x32xbf16, #tpu.memory_space<vmem>>, vector<160x32xbf16>
    %cst = arith.constant dense<0.000000e+00> : vector<16x32xf32>
    %3 = tpu.matmul %1, %2, %cst {dimension_numbers = #tpu.dot_dimension_numbers<[1], [0], [0], [1], [0, 0, 1, 1], [], []>} : vector<16x160xbf16>, vector<160x32xbf16>, vector<16x32xf32> -> vector<16x32xf32>
    %c0_3 = arith.constant 0 : index
    %c0_4 = arith.constant 0 : index
    %4 = vector.load %arg5[%c0_3, %c0_4] : memref<1x32xf32, #tpu.memory_space<vmem>>, vector<1x32xf32>
    %5 = vector.broadcast %4 : vector<1x32xf32> to vector<16x32xf32>
    %6 = arith.addf %3, %5 : vector<16x32xf32>
    %c0_5 = arith.constant 0 : index
    %c0_6 = arith.constant 0 : index
    %7 = vector.load %arg1[%c0_5, %c0_6] : memref<16x32xf32, #tpu.memory_space<vmem>>, vector<16x32xf32>
    %8 = arith.addf %6, %7 : vector<16x32xf32>
    %cst_7 = arith.constant 5.000000e-01 : f32
    %9 = vector.broadcast %cst_7 : f32 to vector<16x32xf32>
    %10 = arith.mulf %9, %8 : vector<16x32xf32>
    %cst_8 = arith.constant 0.707106769 : f32
    %11 = vector.broadcast %cst_8 : f32 to vector<16x32xf32>
    %12 = arith.mulf %8, %11 : vector<16x32xf32>
    %13 = math.absf %12 : vector<16x32xf32>
    %cst_9 = arith.constant 0.327591091 : f32
    %14 = vector.broadcast %cst_9 : f32 to vector<16x32xf32>
    %15 = arith.mulf %14, %13 : vector<16x32xf32>
    %cst_10 = arith.constant 1.000000e+00 : f32
    %16 = vector.broadcast %cst_10 : f32 to vector<16x32xf32>
    %17 = arith.addf %16, %15 : vector<16x32xf32>
    %cst_11 = arith.constant 1.000000e+00 : f32
    %18 = vector.broadcast %cst_11 : f32 to vector<16x32xf32>
    %19 = arith.divf %18, %17 : vector<16x32xf32>
    %cst_12 = arith.constant 1.06140542 : f32
    %20 = vector.broadcast %cst_12 : f32 to vector<16x32xf32>
    %21 = arith.mulf %20, %19 : vector<16x32xf32>
    %cst_13 = arith.constant -1.45315206 : f32
    %22 = vector.broadcast %cst_13 : f32 to vector<16x32xf32>
    %23 = arith.addf %21, %22 : vector<16x32xf32>
    %24 = arith.mulf %23, %19 : vector<16x32xf32>
    %cst_14 = arith.constant 1.42141378 : f32
    %25 = vector.broadcast %cst_14 : f32 to vector<16x32xf32>
    %26 = arith.addf %24, %25 : vector<16x32xf32>
    %27 = arith.mulf %26, %19 : vector<16x32xf32>
    %cst_15 = arith.constant -0.284496725 : f32
    %28 = vector.broadcast %cst_15 : f32 to vector<16x32xf32>
    %29 = arith.addf %27, %28 : vector<16x32xf32>
    %30 = arith.mulf %29, %19 : vector<16x32xf32>
    %cst_16 = arith.constant 0.254829586 : f32
    %31 = vector.broadcast %cst_16 : f32 to vector<16x32xf32>
    %32 = arith.addf %30, %31 : vector<16x32xf32>
    %33 = arith.mulf %32, %19 : vector<16x32xf32>
    %cst_17 = arith.constant 0.000000e+00 : f32
    %34 = vector.broadcast %cst_17 : f32 to vector<16x32xf32>
    %35 = arith.subf %34, %13 : vector<16x32xf32>
    %36 = arith.mulf %35, %13 : vector<16x32xf32>
    %37 = math.exp %36 : vector<16x32xf32>
    %38 = arith.mulf %33, %37 : vector<16x32xf32>
    %cst_18 = arith.constant 1.000000e+00 : f32
    %39 = vector.broadcast %cst_18 : f32 to vector<16x32xf32>
    %40 = arith.subf %39, %38 : vector<16x32xf32>
    %cst_19 = arith.constant 0.000000e+00 : f32
    %41 = vector.broadcast %cst_19 : f32 to vector<16x32xf32>
    %42 = arith.cmpf oge, %12, %41 : vector<16x32xf32>
    %cst_20 = arith.constant 0.000000e+00 : f32
    %43 = vector.broadcast %cst_20 : f32 to vector<16x32xf32>
    %44 = arith.subf %43, %40 : vector<16x32xf32>
    %45 = arith.select %42, %40, %44 : vector<16x32xi1>, vector<16x32xf32>
    %cst_21 = arith.constant 1.000000e+00 : f32
    %46 = vector.broadcast %cst_21 : f32 to vector<16x32xf32>
    %47 = arith.addf %46, %45 : vector<16x32xf32>
    %48 = arith.mulf %10, %47 : vector<16x32xf32>
    %c0_22 = arith.constant 0 : index
    %c0_23 = arith.constant 0 : index
    %49 = vector.load %arg6[%c0_22, %c0_23] : memref<1x32xf32, #tpu.memory_space<vmem>>, vector<1x32xf32>
    %c0_24 = arith.constant 0 : index
    %c0_25 = arith.constant 0 : index
    %50 = vector.load %arg7[%c0_24, %c0_25] : memref<1x32xf32, #tpu.memory_space<vmem>>, vector<1x32xf32>
    %cst_26 = arith.constant dense<0.000000e+00> : vector<16xf32>
    %51 = vector.multi_reduction <add>, %48, %cst_26 [1] : vector<16x32xf32> to vector<16xf32>
    %52 = vector.shape_cast %51 : vector<16xf32> to vector<16x1xf32>
    %cst_27 = arith.constant 3.200000e+01 : f32
    %53 = vector.broadcast %cst_27 : f32 to vector<16x1xf32>
    %54 = arith.divf %52, %53 : vector<16x1xf32>
    %55 = vector.broadcast %54 : vector<16x1xf32> to vector<16x32xf32>
    %56 = arith.subf %48, %55 : vector<16x32xf32>
    %57 = arith.mulf %56, %56 : vector<16x32xf32>
    %cst_28 = arith.constant dense<0.000000e+00> : vector<16xf32>
    %58 = vector.multi_reduction <add>, %57, %cst_28 [1] : vector<16x32xf32> to vector<16xf32>
    %59 = vector.shape_cast %58 : vector<16xf32> to vector<16x1xf32>
    %cst_29 = arith.constant 3.200000e+01 : f32
    %60 = vector.broadcast %cst_29 : f32 to vector<16x1xf32>
    %61 = arith.divf %59, %60 : vector<16x1xf32>
    %cst_30 = arith.constant 9.99999974E-6 : f32
    %62 = vector.broadcast %cst_30 : f32 to vector<16x1xf32>
    %63 = arith.addf %61, %62 : vector<16x1xf32>
    %64 = math.rsqrt %63 : vector<16x1xf32>
    %65 = vector.broadcast %64 : vector<16x1xf32> to vector<16x32xf32>
    %66 = arith.mulf %56, %65 : vector<16x32xf32>
    %67 = vector.broadcast %49 : vector<1x32xf32> to vector<16x32xf32>
    %68 = arith.mulf %66, %67 : vector<16x32xf32>
    %69 = vector.broadcast %50 : vector<1x32xf32> to vector<16x32xf32>
    %70 = arith.addf %68, %69 : vector<16x32xf32>
    %c0_31 = arith.constant 0 : index
    %c0_32 = arith.constant 0 : index
    %71 = vector.load %arg2[%c0_31, %c0_32] : memref<16x16xf32, #tpu.memory_space<vmem>>, vector<16x16xf32>
    %72 = arith.truncf %70 : vector<16x32xf32> to vector<16x32xbf16>
    %c0_33 = arith.constant 0 : index
    %c0_34 = arith.constant 0 : index
    %c0_35 = arith.constant 0 : index
    %73 = vector.load %arg8[%c0_33, %c0_34, %c0_35] : memref<2x32x128xbf16, #tpu.memory_space<vmem>>, vector<1x32x128xbf16>
    %74 = vector.shape_cast %73 : vector<1x32x128xbf16> to vector<32x128xbf16>
    %cst_36 = arith.constant dense<0.000000e+00> : vector<16x128xf32>
    %75 = tpu.matmul %72, %74, %cst_36 {dimension_numbers = #tpu.dot_dimension_numbers<[1], [0], [0], [1], [0, 0, 1, 1], [], []>} : vector<16x32xbf16>, vector<32x128xbf16>, vector<16x128xf32> -> vector<16x128xf32>
    %c0_37 = arith.constant 0 : index
    %c0_38 = arith.constant 0 : index
    %c0_39 = arith.constant 0 : index
    %76 = vector.load %arg9[%c0_37, %c0_38, %c0_39] : memref<2x1x128xf32, #tpu.memory_space<vmem>>, vector<1x1x128xf32>
    %77 = vector.shape_cast %76 : vector<1x1x128xf32> to vector<1x128xf32>
    %78 = vector.broadcast %77 : vector<1x128xf32> to vector<16x128xf32>
    %79 = arith.addf %75, %78 : vector<16x128xf32>
    %80 = vector.extract_strided_slice %79 {offsets = [0, 0], sizes = [16, 8], strides = [1, 1]} : vector<16x128xf32> to vector<16x8xf32>
    %81 = vector.extract_strided_slice %79 {offsets = [0, 32], sizes = [16, 8], strides = [1, 1]} : vector<16x128xf32> to vector<16x8xf32>
    %82 = vector.extract_strided_slice %79 {offsets = [0, 64], sizes = [16, 8], strides = [1, 1]} : vector<16x128xf32> to vector<16x8xf32>
    %83 = arith.truncf %80 : vector<16x8xf32> to vector<16x8xbf16>
    %84 = arith.truncf %81 : vector<16x8xf32> to vector<16x8xbf16>
    %cst_40 = arith.constant dense<0.000000e+00> : vector<16x16xf32>
    %85 = tpu.matmul %83, %84, %cst_40 {dimension_numbers = #tpu.dot_dimension_numbers<[1], [1], [0], [0], [0, 0, 1, 0], [], []>} : vector<16x8xbf16>, vector<16x8xbf16>, vector<16x16xf32> -> vector<16x16xf32>
    %86 = arith.addf %85, %71 : vector<16x16xf32>
    %cst_41 = arith.constant dense<0xFF800000> : vector<16xf32>
    %87 = vector.multi_reduction <maximumf>, %86, %cst_41 [1] : vector<16x16xf32> to vector<16xf32>
    %88 = vector.shape_cast %87 : vector<16xf32> to vector<16x1xf32>
    %89 = vector.broadcast %88 : vector<16x1xf32> to vector<16x16xf32>
    %90 = arith.subf %86, %89 : vector<16x16xf32>
    %91 = math.exp %90 : vector<16x16xf32>
    %cst_42 = arith.constant dense<0.000000e+00> : vector<16xf32>
    %92 = vector.multi_reduction <add>, %91, %cst_42 [1] : vector<16x16xf32> to vector<16xf32>
    %93 = vector.shape_cast %92 : vector<16xf32> to vector<16x1xf32>
    %94 = vector.broadcast %93 : vector<16x1xf32> to vector<16x16xf32>
    %95 = arith.divf %91, %94 : vector<16x16xf32>
    %96 = arith.truncf %95 : vector<16x16xf32> to vector<16x16xbf16>
    %97 = arith.truncf %82 : vector<16x8xf32> to vector<16x8xbf16>
    %cst_43 = arith.constant dense<0.000000e+00> : vector<16x8xf32>
    %98 = tpu.matmul %96, %97, %cst_43 {dimension_numbers = #tpu.dot_dimension_numbers<[1], [0], [0], [1], [0, 0, 1, 1], [], []>} : vector<16x16xbf16>, vector<16x8xbf16>, vector<16x8xf32> -> vector<16x8xf32>
    %99 = vector.extract_strided_slice %79 {offsets = [0, 8], sizes = [16, 8], strides = [1, 1]} : vector<16x128xf32> to vector<16x8xf32>
    %100 = vector.extract_strided_slice %79 {offsets = [0, 40], sizes = [16, 8], strides = [1, 1]} : vector<16x128xf32> to vector<16x8xf32>
    %101 = vector.extract_strided_slice %79 {offsets = [0, 72], sizes = [16, 8], strides = [1, 1]} : vector<16x128xf32> to vector<16x8xf32>
    %102 = arith.truncf %99 : vector<16x8xf32> to vector<16x8xbf16>
    %103 = arith.truncf %100 : vector<16x8xf32> to vector<16x8xbf16>
    %cst_44 = arith.constant dense<0.000000e+00> : vector<16x16xf32>
    %104 = tpu.matmul %102, %103, %cst_44 {dimension_numbers = #tpu.dot_dimension_numbers<[1], [1], [0], [0], [0, 0, 1, 0], [], []>} : vector<16x8xbf16>, vector<16x8xbf16>, vector<16x16xf32> -> vector<16x16xf32>
    %105 = arith.addf %104, %71 : vector<16x16xf32>
    %cst_45 = arith.constant dense<0xFF800000> : vector<16xf32>
    %106 = vector.multi_reduction <maximumf>, %105, %cst_45 [1] : vector<16x16xf32> to vector<16xf32>
    %107 = vector.shape_cast %106 : vector<16xf32> to vector<16x1xf32>
    %108 = vector.broadcast %107 : vector<16x1xf32> to vector<16x16xf32>
    %109 = arith.subf %105, %108 : vector<16x16xf32>
    %110 = math.exp %109 : vector<16x16xf32>
    %cst_46 = arith.constant dense<0.000000e+00> : vector<16xf32>
    %111 = vector.multi_reduction <add>, %110, %cst_46 [1] : vector<16x16xf32> to vector<16xf32>
    %112 = vector.shape_cast %111 : vector<16xf32> to vector<16x1xf32>
    %113 = vector.broadcast %112 : vector<16x1xf32> to vector<16x16xf32>
    %114 = arith.divf %110, %113 : vector<16x16xf32>
    %115 = arith.truncf %114 : vector<16x16xf32> to vector<16x16xbf16>
    %116 = arith.truncf %101 : vector<16x8xf32> to vector<16x8xbf16>
    %cst_47 = arith.constant dense<0.000000e+00> : vector<16x8xf32>
    %117 = tpu.matmul %115, %116, %cst_47 {dimension_numbers = #tpu.dot_dimension_numbers<[1], [0], [0], [1], [0, 0, 1, 1], [], []>} : vector<16x16xbf16>, vector<16x8xbf16>, vector<16x8xf32> -> vector<16x8xf32>
    %118 = vector.extract_strided_slice %79 {offsets = [0, 16], sizes = [16, 8], strides = [1, 1]} : vector<16x128xf32> to vector<16x8xf32>
    %119 = vector.extract_strided_slice %79 {offsets = [0, 48], sizes = [16, 8], strides = [1, 1]} : vector<16x128xf32> to vector<16x8xf32>
    %120 = vector.extract_strided_slice %79 {offsets = [0, 80], sizes = [16, 8], strides = [1, 1]} : vector<16x128xf32> to vector<16x8xf32>
    %121 = arith.truncf %118 : vector<16x8xf32> to vector<16x8xbf16>
    %122 = arith.truncf %119 : vector<16x8xf32> to vector<16x8xbf16>
    %cst_48 = arith.constant dense<0.000000e+00> : vector<16x16xf32>
    %123 = tpu.matmul %121, %122, %cst_48 {dimension_numbers = #tpu.dot_dimension_numbers<[1], [1], [0], [0], [0, 0, 1, 0], [], []>} : vector<16x8xbf16>, vector<16x8xbf16>, vector<16x16xf32> -> vector<16x16xf32>
    %124 = arith.addf %123, %71 : vector<16x16xf32>
    %cst_49 = arith.constant dense<0xFF800000> : vector<16xf32>
    %125 = vector.multi_reduction <maximumf>, %124, %cst_49 [1] : vector<16x16xf32> to vector<16xf32>
    %126 = vector.shape_cast %125 : vector<16xf32> to vector<16x1xf32>
    %127 = vector.broadcast %126 : vector<16x1xf32> to vector<16x16xf32>
    %128 = arith.subf %124, %127 : vector<16x16xf32>
    %129 = math.exp %128 : vector<16x16xf32>
    %cst_50 = arith.constant dense<0.000000e+00> : vector<16xf32>
    %130 = vector.multi_reduction <add>, %129, %cst_50 [1] : vector<16x16xf32> to vector<16xf32>
    %131 = vector.shape_cast %130 : vector<16xf32> to vector<16x1xf32>
    %132 = vector.broadcast %131 : vector<16x1xf32> to vector<16x16xf32>
    %133 = arith.divf %129, %132 : vector<16x16xf32>
    %134 = arith.truncf %133 : vector<16x16xf32> to vector<16x16xbf16>
    %135 = arith.truncf %120 : vector<16x8xf32> to vector<16x8xbf16>
    %cst_51 = arith.constant dense<0.000000e+00> : vector<16x8xf32>
    %136 = tpu.matmul %134, %135, %cst_51 {dimension_numbers = #tpu.dot_dimension_numbers<[1], [0], [0], [1], [0, 0, 1, 1], [], []>} : vector<16x16xbf16>, vector<16x8xbf16>, vector<16x8xf32> -> vector<16x8xf32>
    %137 = vector.extract_strided_slice %79 {offsets = [0, 24], sizes = [16, 8], strides = [1, 1]} : vector<16x128xf32> to vector<16x8xf32>
    %138 = vector.extract_strided_slice %79 {offsets = [0, 56], sizes = [16, 8], strides = [1, 1]} : vector<16x128xf32> to vector<16x8xf32>
    %139 = vector.extract_strided_slice %79 {offsets = [0, 88], sizes = [16, 8], strides = [1, 1]} : vector<16x128xf32> to vector<16x8xf32>
    %140 = arith.truncf %137 : vector<16x8xf32> to vector<16x8xbf16>
    %141 = arith.truncf %138 : vector<16x8xf32> to vector<16x8xbf16>
    %cst_52 = arith.constant dense<0.000000e+00> : vector<16x16xf32>
    %142 = tpu.matmul %140, %141, %cst_52 {dimension_numbers = #tpu.dot_dimension_numbers<[1], [1], [0], [0], [0, 0, 1, 0], [], []>} : vector<16x8xbf16>, vector<16x8xbf16>, vector<16x16xf32> -> vector<16x16xf32>
    %143 = arith.addf %142, %71 : vector<16x16xf32>
    %cst_53 = arith.constant dense<0xFF800000> : vector<16xf32>
    %144 = vector.multi_reduction <maximumf>, %143, %cst_53 [1] : vector<16x16xf32> to vector<16xf32>
    %145 = vector.shape_cast %144 : vector<16xf32> to vector<16x1xf32>
    %146 = vector.broadcast %145 : vector<16x1xf32> to vector<16x16xf32>
    %147 = arith.subf %143, %146 : vector<16x16xf32>
    %148 = math.exp %147 : vector<16x16xf32>
    %cst_54 = arith.constant dense<0.000000e+00> : vector<16xf32>
    %149 = vector.multi_reduction <add>, %148, %cst_54 [1] : vector<16x16xf32> to vector<16xf32>
    %150 = vector.shape_cast %149 : vector<16xf32> to vector<16x1xf32>
    %151 = vector.broadcast %150 : vector<16x1xf32> to vector<16x16xf32>
    %152 = arith.divf %148, %151 : vector<16x16xf32>
    %153 = arith.truncf %152 : vector<16x16xf32> to vector<16x16xbf16>
    %154 = arith.truncf %139 : vector<16x8xf32> to vector<16x8xbf16>
    %cst_55 = arith.constant dense<0.000000e+00> : vector<16x8xf32>
    %155 = tpu.matmul %153, %154, %cst_55 {dimension_numbers = #tpu.dot_dimension_numbers<[1], [0], [0], [1], [0, 0, 1, 1], [], []>} : vector<16x16xbf16>, vector<16x8xbf16>, vector<16x8xf32> -> vector<16x8xf32>
    %156 = tpu.concatenate %98, %117, %136, %155 in 1 : vector<16x8xf32>, vector<16x8xf32>, vector<16x8xf32>, vector<16x8xf32> -> vector<16x32xf32>
    %157 = arith.truncf %156 : vector<16x32xf32> to vector<16x32xbf16>
    %c0_56 = arith.constant 0 : index
    %c0_57 = arith.constant 0 : index
    %c0_58 = arith.constant 0 : index
    %158 = vector.load %arg10[%c0_56, %c0_57, %c0_58] : memref<2x32x32xbf16, #tpu.memory_space<vmem>>, vector<1x32x32xbf16>
    %159 = vector.shape_cast %158 : vector<1x32x32xbf16> to vector<32x32xbf16>
    %cst_59 = arith.constant dense<0.000000e+00> : vector<16x32xf32>
    %160 = tpu.matmul %157, %159, %cst_59 {dimension_numbers = #tpu.dot_dimension_numbers<[1], [0], [0], [1], [0, 0, 1, 1], [], []>} : vector<16x32xbf16>, vector<32x32xbf16>, vector<16x32xf32> -> vector<16x32xf32>
    %c0_60 = arith.constant 0 : index
    %c0_61 = arith.constant 0 : index
    %c0_62 = arith.constant 0 : index
    %161 = vector.load %arg11[%c0_60, %c0_61, %c0_62] : memref<2x1x32xf32, #tpu.memory_space<vmem>>, vector<1x1x32xf32>
    %162 = vector.shape_cast %161 : vector<1x1x32xf32> to vector<1x32xf32>
    %163 = vector.broadcast %162 : vector<1x32xf32> to vector<16x32xf32>
    %164 = arith.addf %160, %163 : vector<16x32xf32>
    %165 = arith.addf %70, %164 : vector<16x32xf32>
    %c0_63 = arith.constant 0 : index
    %c0_64 = arith.constant 0 : index
    %c0_65 = arith.constant 0 : index
    %166 = vector.load %arg16[%c0_63, %c0_64, %c0_65] : memref<2x1x32xf32, #tpu.memory_space<vmem>>, vector<1x1x32xf32>
    %167 = vector.shape_cast %166 : vector<1x1x32xf32> to vector<1x32xf32>
    %c0_66 = arith.constant 0 : index
    %c0_67 = arith.constant 0 : index
    %c0_68 = arith.constant 0 : index
    %168 = vector.load %arg17[%c0_66, %c0_67, %c0_68] : memref<2x1x32xf32, #tpu.memory_space<vmem>>, vector<1x1x32xf32>
    %169 = vector.shape_cast %168 : vector<1x1x32xf32> to vector<1x32xf32>
    %cst_69 = arith.constant dense<0.000000e+00> : vector<16xf32>
    %170 = vector.multi_reduction <add>, %165, %cst_69 [1] : vector<16x32xf32> to vector<16xf32>
    %171 = vector.shape_cast %170 : vector<16xf32> to vector<16x1xf32>
    %cst_70 = arith.constant 3.200000e+01 : f32
    %172 = vector.broadcast %cst_70 : f32 to vector<16x1xf32>
    %173 = arith.divf %171, %172 : vector<16x1xf32>
    %174 = vector.broadcast %173 : vector<16x1xf32> to vector<16x32xf32>
    %175 = arith.subf %165, %174 : vector<16x32xf32>
    %176 = arith.mulf %175, %175 : vector<16x32xf32>
    %cst_71 = arith.constant dense<0.000000e+00> : vector<16xf32>
    %177 = vector.multi_reduction <add>, %176, %cst_71 [1] : vector<16x32xf32> to vector<16xf32>
    %178 = vector.shape_cast %177 : vector<16xf32> to vector<16x1xf32>
    %cst_72 = arith.constant 3.200000e+01 : f32
    %179 = vector.broadcast %cst_72 : f32 to vector<16x1xf32>
    %180 = arith.divf %178, %179 : vector<16x1xf32>
    %cst_73 = arith.constant 9.99999974E-6 : f32
    %181 = vector.broadcast %cst_73 : f32 to vector<16x1xf32>
    %182 = arith.addf %180, %181 : vector<16x1xf32>
    %183 = math.rsqrt %182 : vector<16x1xf32>
    %184 = vector.broadcast %183 : vector<16x1xf32> to vector<16x32xf32>
    %185 = arith.mulf %175, %184 : vector<16x32xf32>
    %186 = vector.broadcast %167 : vector<1x32xf32> to vector<16x32xf32>
    %187 = arith.mulf %185, %186 : vector<16x32xf32>
    %188 = vector.broadcast %169 : vector<1x32xf32> to vector<16x32xf32>
    %189 = arith.addf %187, %188 : vector<16x32xf32>
    %190 = arith.truncf %189 : vector<16x32xf32> to vector<16x32xbf16>
    %c0_74 = arith.constant 0 : index
    %c0_75 = arith.constant 0 : index
    %c0_76 = arith.constant 0 : index
    %191 = vector.load %arg12[%c0_74, %c0_75, %c0_76] : memref<2x32x512xbf16, #tpu.memory_space<vmem>>, vector<1x32x512xbf16>
    %192 = vector.shape_cast %191 : vector<1x32x512xbf16> to vector<32x512xbf16>
    %cst_77 = arith.constant dense<0.000000e+00> : vector<16x512xf32>
    %193 = tpu.matmul %190, %192, %cst_77 {dimension_numbers = #tpu.dot_dimension_numbers<[1], [0], [0], [1], [0, 0, 1, 1], [], []>} : vector<16x32xbf16>, vector<32x512xbf16>, vector<16x512xf32> -> vector<16x512xf32>
    %c0_78 = arith.constant 0 : index
    %c0_79 = arith.constant 0 : index
    %c0_80 = arith.constant 0 : index
    %194 = vector.load %arg13[%c0_78, %c0_79, %c0_80] : memref<2x1x512xf32, #tpu.memory_space<vmem>>, vector<1x1x512xf32>
    %195 = vector.shape_cast %194 : vector<1x1x512xf32> to vector<1x512xf32>
    %196 = vector.broadcast %195 : vector<1x512xf32> to vector<16x512xf32>
    %197 = arith.addf %193, %196 : vector<16x512xf32>
    %cst_81 = arith.constant 5.000000e-01 : f32
    %198 = vector.broadcast %cst_81 : f32 to vector<16x512xf32>
    %199 = arith.mulf %198, %197 : vector<16x512xf32>
    %cst_82 = arith.constant 0.707106769 : f32
    %200 = vector.broadcast %cst_82 : f32 to vector<16x512xf32>
    %201 = arith.mulf %197, %200 : vector<16x512xf32>
    %202 = math.absf %201 : vector<16x512xf32>
    %cst_83 = arith.constant 0.327591091 : f32
    %203 = vector.broadcast %cst_83 : f32 to vector<16x512xf32>
    %204 = arith.mulf %203, %202 : vector<16x512xf32>
    %cst_84 = arith.constant 1.000000e+00 : f32
    %205 = vector.broadcast %cst_84 : f32 to vector<16x512xf32>
    %206 = arith.addf %205, %204 : vector<16x512xf32>
    %cst_85 = arith.constant 1.000000e+00 : f32
    %207 = vector.broadcast %cst_85 : f32 to vector<16x512xf32>
    %208 = arith.divf %207, %206 : vector<16x512xf32>
    %cst_86 = arith.constant 1.06140542 : f32
    %209 = vector.broadcast %cst_86 : f32 to vector<16x512xf32>
    %210 = arith.mulf %209, %208 : vector<16x512xf32>
    %cst_87 = arith.constant -1.45315206 : f32
    %211 = vector.broadcast %cst_87 : f32 to vector<16x512xf32>
    %212 = arith.addf %210, %211 : vector<16x512xf32>
    %213 = arith.mulf %212, %208 : vector<16x512xf32>
    %cst_88 = arith.constant 1.42141378 : f32
    %214 = vector.broadcast %cst_88 : f32 to vector<16x512xf32>
    %215 = arith.addf %213, %214 : vector<16x512xf32>
    %216 = arith.mulf %215, %208 : vector<16x512xf32>
    %cst_89 = arith.constant -0.284496725 : f32
    %217 = vector.broadcast %cst_89 : f32 to vector<16x512xf32>
    %218 = arith.addf %216, %217 : vector<16x512xf32>
    %219 = arith.mulf %218, %208 : vector<16x512xf32>
    %cst_90 = arith.constant 0.254829586 : f32
    %220 = vector.broadcast %cst_90 : f32 to vector<16x512xf32>
    %221 = arith.addf %219, %220 : vector<16x512xf32>
    %222 = arith.mulf %221, %208 : vector<16x512xf32>
    %cst_91 = arith.constant 0.000000e+00 : f32
    %223 = vector.broadcast %cst_91 : f32 to vector<16x512xf32>
    %224 = arith.subf %223, %202 : vector<16x512xf32>
    %225 = arith.mulf %224, %202 : vector<16x512xf32>
    %226 = math.exp %225 : vector<16x512xf32>
    %227 = arith.mulf %222, %226 : vector<16x512xf32>
    %cst_92 = arith.constant 1.000000e+00 : f32
    %228 = vector.broadcast %cst_92 : f32 to vector<16x512xf32>
    %229 = arith.subf %228, %227 : vector<16x512xf32>
    %cst_93 = arith.constant 0.000000e+00 : f32
    %230 = vector.broadcast %cst_93 : f32 to vector<16x512xf32>
    %231 = arith.cmpf oge, %201, %230 : vector<16x512xf32>
    %cst_94 = arith.constant 0.000000e+00 : f32
    %232 = vector.broadcast %cst_94 : f32 to vector<16x512xf32>
    %233 = arith.subf %232, %229 : vector<16x512xf32>
    %234 = arith.select %231, %229, %233 : vector<16x512xi1>, vector<16x512xf32>
    %cst_95 = arith.constant 1.000000e+00 : f32
    %235 = vector.broadcast %cst_95 : f32 to vector<16x512xf32>
    %236 = arith.addf %235, %234 : vector<16x512xf32>
    %237 = arith.mulf %199, %236 : vector<16x512xf32>
    %238 = arith.truncf %237 : vector<16x512xf32> to vector<16x512xbf16>
    %c0_96 = arith.constant 0 : index
    %c0_97 = arith.constant 0 : index
    %c0_98 = arith.constant 0 : index
    %239 = vector.load %arg14[%c0_96, %c0_97, %c0_98] : memref<2x512x32xbf16, #tpu.memory_space<vmem>>, vector<1x512x32xbf16>
    %240 = vector.shape_cast %239 : vector<1x512x32xbf16> to vector<512x32xbf16>
    %cst_99 = arith.constant dense<0.000000e+00> : vector<16x32xf32>
    %241 = tpu.matmul %238, %240, %cst_99 {dimension_numbers = #tpu.dot_dimension_numbers<[1], [0], [0], [1], [0, 0, 1, 1], [], []>} : vector<16x512xbf16>, vector<512x32xbf16>, vector<16x32xf32> -> vector<16x32xf32>
    %c0_100 = arith.constant 0 : index
    %c0_101 = arith.constant 0 : index
    %c0_102 = arith.constant 0 : index
    %242 = vector.load %arg15[%c0_100, %c0_101, %c0_102] : memref<2x1x32xf32, #tpu.memory_space<vmem>>, vector<1x1x32xf32>
    %243 = vector.shape_cast %242 : vector<1x1x32xf32> to vector<1x32xf32>
    %244 = vector.broadcast %243 : vector<1x32xf32> to vector<16x32xf32>
    %245 = arith.addf %241, %244 : vector<16x32xf32>
    %246 = arith.addf %189, %245 : vector<16x32xf32>
    %c0_103 = arith.constant 0 : index
    %c0_104 = arith.constant 0 : index
    %c0_105 = arith.constant 0 : index
    %247 = vector.load %arg18[%c0_103, %c0_104, %c0_105] : memref<2x1x32xf32, #tpu.memory_space<vmem>>, vector<1x1x32xf32>
    %248 = vector.shape_cast %247 : vector<1x1x32xf32> to vector<1x32xf32>
    %c0_106 = arith.constant 0 : index
    %c0_107 = arith.constant 0 : index
    %c0_108 = arith.constant 0 : index
    %249 = vector.load %arg19[%c0_106, %c0_107, %c0_108] : memref<2x1x32xf32, #tpu.memory_space<vmem>>, vector<1x1x32xf32>
    %250 = vector.shape_cast %249 : vector<1x1x32xf32> to vector<1x32xf32>
    %cst_109 = arith.constant dense<0.000000e+00> : vector<16xf32>
    %251 = vector.multi_reduction <add>, %246, %cst_109 [1] : vector<16x32xf32> to vector<16xf32>
    %252 = vector.shape_cast %251 : vector<16xf32> to vector<16x1xf32>
    %cst_110 = arith.constant 3.200000e+01 : f32
    %253 = vector.broadcast %cst_110 : f32 to vector<16x1xf32>
    %254 = arith.divf %252, %253 : vector<16x1xf32>
    %255 = vector.broadcast %254 : vector<16x1xf32> to vector<16x32xf32>
    %256 = arith.subf %246, %255 : vector<16x32xf32>
    %257 = arith.mulf %256, %256 : vector<16x32xf32>
    %cst_111 = arith.constant dense<0.000000e+00> : vector<16xf32>
    %258 = vector.multi_reduction <add>, %257, %cst_111 [1] : vector<16x32xf32> to vector<16xf32>
    %259 = vector.shape_cast %258 : vector<16xf32> to vector<16x1xf32>
    %cst_112 = arith.constant 3.200000e+01 : f32
    %260 = vector.broadcast %cst_112 : f32 to vector<16x1xf32>
    %261 = arith.divf %259, %260 : vector<16x1xf32>
    %cst_113 = arith.constant 9.99999974E-6 : f32
    %262 = vector.broadcast %cst_113 : f32 to vector<16x1xf32>
    %263 = arith.addf %261, %262 : vector<16x1xf32>
    %264 = math.rsqrt %263 : vector<16x1xf32>
    %265 = vector.broadcast %264 : vector<16x1xf32> to vector<16x32xf32>
    %266 = arith.mulf %256, %265 : vector<16x32xf32>
    %267 = vector.broadcast %248 : vector<1x32xf32> to vector<16x32xf32>
    %268 = arith.mulf %266, %267 : vector<16x32xf32>
    %269 = vector.broadcast %250 : vector<1x32xf32> to vector<16x32xf32>
    %270 = arith.addf %268, %269 : vector<16x32xf32>
    %271 = arith.addf %70, %270 : vector<16x32xf32>
    %272 = arith.truncf %271 : vector<16x32xf32> to vector<16x32xbf16>
    %c1 = arith.constant 1 : index
    %c0_114 = arith.constant 0 : index
    %c0_115 = arith.constant 0 : index
    %273 = vector.load %arg8[%c1, %c0_114, %c0_115] : memref<2x32x128xbf16, #tpu.memory_space<vmem>>, vector<1x32x128xbf16>
    %274 = vector.shape_cast %273 : vector<1x32x128xbf16> to vector<32x128xbf16>
    %cst_116 = arith.constant dense<0.000000e+00> : vector<16x128xf32>
    %275 = tpu.matmul %272, %274, %cst_116 {dimension_numbers = #tpu.dot_dimension_numbers<[1], [0], [0], [1], [0, 0, 1, 1], [], []>} : vector<16x32xbf16>, vector<32x128xbf16>, vector<16x128xf32> -> vector<16x128xf32>
    %c1_117 = arith.constant 1 : index
    %c0_118 = arith.constant 0 : index
    %c0_119 = arith.constant 0 : index
    %276 = vector.load %arg9[%c1_117, %c0_118, %c0_119] : memref<2x1x128xf32, #tpu.memory_space<vmem>>, vector<1x1x128xf32>
    %277 = vector.shape_cast %276 : vector<1x1x128xf32> to vector<1x128xf32>
    %278 = vector.broadcast %277 : vector<1x128xf32> to vector<16x128xf32>
    %279 = arith.addf %275, %278 : vector<16x128xf32>
    %280 = vector.extract_strided_slice %279 {offsets = [0, 0], sizes = [16, 8], strides = [1, 1]} : vector<16x128xf32> to vector<16x8xf32>
    %281 = vector.extract_strided_slice %279 {offsets = [0, 32], sizes = [16, 8], strides = [1, 1]} : vector<16x128xf32> to vector<16x8xf32>
    %282 = vector.extract_strided_slice %279 {offsets = [0, 64], sizes = [16, 8], strides = [1, 1]} : vector<16x128xf32> to vector<16x8xf32>
    %283 = arith.truncf %280 : vector<16x8xf32> to vector<16x8xbf16>
    %284 = arith.truncf %281 : vector<16x8xf32> to vector<16x8xbf16>
    %cst_120 = arith.constant dense<0.000000e+00> : vector<16x16xf32>
    %285 = tpu.matmul %283, %284, %cst_120 {dimension_numbers = #tpu.dot_dimension_numbers<[1], [1], [0], [0], [0, 0, 1, 0], [], []>} : vector<16x8xbf16>, vector<16x8xbf16>, vector<16x16xf32> -> vector<16x16xf32>
    %286 = arith.addf %285, %71 : vector<16x16xf32>
    %cst_121 = arith.constant dense<0xFF800000> : vector<16xf32>
    %287 = vector.multi_reduction <maximumf>, %286, %cst_121 [1] : vector<16x16xf32> to vector<16xf32>
    %288 = vector.shape_cast %287 : vector<16xf32> to vector<16x1xf32>
    %289 = vector.broadcast %288 : vector<16x1xf32> to vector<16x16xf32>
    %290 = arith.subf %286, %289 : vector<16x16xf32>
    %291 = math.exp %290 : vector<16x16xf32>
    %cst_122 = arith.constant dense<0.000000e+00> : vector<16xf32>
    %292 = vector.multi_reduction <add>, %291, %cst_122 [1] : vector<16x16xf32> to vector<16xf32>
    %293 = vector.shape_cast %292 : vector<16xf32> to vector<16x1xf32>
    %294 = vector.broadcast %293 : vector<16x1xf32> to vector<16x16xf32>
    %295 = arith.divf %291, %294 : vector<16x16xf32>
    %296 = arith.truncf %295 : vector<16x16xf32> to vector<16x16xbf16>
    %297 = arith.truncf %282 : vector<16x8xf32> to vector<16x8xbf16>
    %cst_123 = arith.constant dense<0.000000e+00> : vector<16x8xf32>
    %298 = tpu.matmul %296, %297, %cst_123 {dimension_numbers = #tpu.dot_dimension_numbers<[1], [0], [0], [1], [0, 0, 1, 1], [], []>} : vector<16x16xbf16>, vector<16x8xbf16>, vector<16x8xf32> -> vector<16x8xf32>
    %299 = vector.extract_strided_slice %279 {offsets = [0, 8], sizes = [16, 8], strides = [1, 1]} : vector<16x128xf32> to vector<16x8xf32>
    %300 = vector.extract_strided_slice %279 {offsets = [0, 40], sizes = [16, 8], strides = [1, 1]} : vector<16x128xf32> to vector<16x8xf32>
    %301 = vector.extract_strided_slice %279 {offsets = [0, 72], sizes = [16, 8], strides = [1, 1]} : vector<16x128xf32> to vector<16x8xf32>
    %302 = arith.truncf %299 : vector<16x8xf32> to vector<16x8xbf16>
    %303 = arith.truncf %300 : vector<16x8xf32> to vector<16x8xbf16>
    %cst_124 = arith.constant dense<0.000000e+00> : vector<16x16xf32>
    %304 = tpu.matmul %302, %303, %cst_124 {dimension_numbers = #tpu.dot_dimension_numbers<[1], [1], [0], [0], [0, 0, 1, 0], [], []>} : vector<16x8xbf16>, vector<16x8xbf16>, vector<16x16xf32> -> vector<16x16xf32>
    %305 = arith.addf %304, %71 : vector<16x16xf32>
    %cst_125 = arith.constant dense<0xFF800000> : vector<16xf32>
    %306 = vector.multi_reduction <maximumf>, %305, %cst_125 [1] : vector<16x16xf32> to vector<16xf32>
    %307 = vector.shape_cast %306 : vector<16xf32> to vector<16x1xf32>
    %308 = vector.broadcast %307 : vector<16x1xf32> to vector<16x16xf32>
    %309 = arith.subf %305, %308 : vector<16x16xf32>
    %310 = math.exp %309 : vector<16x16xf32>
    %cst_126 = arith.constant dense<0.000000e+00> : vector<16xf32>
    %311 = vector.multi_reduction <add>, %310, %cst_126 [1] : vector<16x16xf32> to vector<16xf32>
    %312 = vector.shape_cast %311 : vector<16xf32> to vector<16x1xf32>
    %313 = vector.broadcast %312 : vector<16x1xf32> to vector<16x16xf32>
    %314 = arith.divf %310, %313 : vector<16x16xf32>
    %315 = arith.truncf %314 : vector<16x16xf32> to vector<16x16xbf16>
    %316 = arith.truncf %301 : vector<16x8xf32> to vector<16x8xbf16>
    %cst_127 = arith.constant dense<0.000000e+00> : vector<16x8xf32>
    %317 = tpu.matmul %315, %316, %cst_127 {dimension_numbers = #tpu.dot_dimension_numbers<[1], [0], [0], [1], [0, 0, 1, 1], [], []>} : vector<16x16xbf16>, vector<16x8xbf16>, vector<16x8xf32> -> vector<16x8xf32>
    %318 = vector.extract_strided_slice %279 {offsets = [0, 16], sizes = [16, 8], strides = [1, 1]} : vector<16x128xf32> to vector<16x8xf32>
    %319 = vector.extract_strided_slice %279 {offsets = [0, 48], sizes = [16, 8], strides = [1, 1]} : vector<16x128xf32> to vector<16x8xf32>
    %320 = vector.extract_strided_slice %279 {offsets = [0, 80], sizes = [16, 8], strides = [1, 1]} : vector<16x128xf32> to vector<16x8xf32>
    %321 = arith.truncf %318 : vector<16x8xf32> to vector<16x8xbf16>
    %322 = arith.truncf %319 : vector<16x8xf32> to vector<16x8xbf16>
    %cst_128 = arith.constant dense<0.000000e+00> : vector<16x16xf32>
    %323 = tpu.matmul %321, %322, %cst_128 {dimension_numbers = #tpu.dot_dimension_numbers<[1], [1], [0], [0], [0, 0, 1, 0], [], []>} : vector<16x8xbf16>, vector<16x8xbf16>, vector<16x16xf32> -> vector<16x16xf32>
    %324 = arith.addf %323, %71 : vector<16x16xf32>
    %cst_129 = arith.constant dense<0xFF800000> : vector<16xf32>
    %325 = vector.multi_reduction <maximumf>, %324, %cst_129 [1] : vector<16x16xf32> to vector<16xf32>
    %326 = vector.shape_cast %325 : vector<16xf32> to vector<16x1xf32>
    %327 = vector.broadcast %326 : vector<16x1xf32> to vector<16x16xf32>
    %328 = arith.subf %324, %327 : vector<16x16xf32>
    %329 = math.exp %328 : vector<16x16xf32>
    %cst_130 = arith.constant dense<0.000000e+00> : vector<16xf32>
    %330 = vector.multi_reduction <add>, %329, %cst_130 [1] : vector<16x16xf32> to vector<16xf32>
    %331 = vector.shape_cast %330 : vector<16xf32> to vector<16x1xf32>
    %332 = vector.broadcast %331 : vector<16x1xf32> to vector<16x16xf32>
    %333 = arith.divf %329, %332 : vector<16x16xf32>
    %334 = arith.truncf %333 : vector<16x16xf32> to vector<16x16xbf16>
    %335 = arith.truncf %320 : vector<16x8xf32> to vector<16x8xbf16>
    %cst_131 = arith.constant dense<0.000000e+00> : vector<16x8xf32>
    %336 = tpu.matmul %334, %335, %cst_131 {dimension_numbers = #tpu.dot_dimension_numbers<[1], [0], [0], [1], [0, 0, 1, 1], [], []>} : vector<16x16xbf16>, vector<16x8xbf16>, vector<16x8xf32> -> vector<16x8xf32>
    %337 = vector.extract_strided_slice %279 {offsets = [0, 24], sizes = [16, 8], strides = [1, 1]} : vector<16x128xf32> to vector<16x8xf32>
    %338 = vector.extract_strided_slice %279 {offsets = [0, 56], sizes = [16, 8], strides = [1, 1]} : vector<16x128xf32> to vector<16x8xf32>
    %339 = vector.extract_strided_slice %279 {offsets = [0, 88], sizes = [16, 8], strides = [1, 1]} : vector<16x128xf32> to vector<16x8xf32>
    %340 = arith.truncf %337 : vector<16x8xf32> to vector<16x8xbf16>
    %341 = arith.truncf %338 : vector<16x8xf32> to vector<16x8xbf16>
    %cst_132 = arith.constant dense<0.000000e+00> : vector<16x16xf32>
    %342 = tpu.matmul %340, %341, %cst_132 {dimension_numbers = #tpu.dot_dimension_numbers<[1], [1], [0], [0], [0, 0, 1, 0], [], []>} : vector<16x8xbf16>, vector<16x8xbf16>, vector<16x16xf32> -> vector<16x16xf32>
    %343 = arith.addf %342, %71 : vector<16x16xf32>
    %cst_133 = arith.constant dense<0xFF800000> : vector<16xf32>
    %344 = vector.multi_reduction <maximumf>, %343, %cst_133 [1] : vector<16x16xf32> to vector<16xf32>
    %345 = vector.shape_cast %344 : vector<16xf32> to vector<16x1xf32>
    %346 = vector.broadcast %345 : vector<16x1xf32> to vector<16x16xf32>
    %347 = arith.subf %343, %346 : vector<16x16xf32>
    %348 = math.exp %347 : vector<16x16xf32>
    %cst_134 = arith.constant dense<0.000000e+00> : vector<16xf32>
    %349 = vector.multi_reduction <add>, %348, %cst_134 [1] : vector<16x16xf32> to vector<16xf32>
    %350 = vector.shape_cast %349 : vector<16xf32> to vector<16x1xf32>
    %351 = vector.broadcast %350 : vector<16x1xf32> to vector<16x16xf32>
    %352 = arith.divf %348, %351 : vector<16x16xf32>
    %353 = arith.truncf %352 : vector<16x16xf32> to vector<16x16xbf16>
    %354 = arith.truncf %339 : vector<16x8xf32> to vector<16x8xbf16>
    %cst_135 = arith.constant dense<0.000000e+00> : vector<16x8xf32>
    %355 = tpu.matmul %353, %354, %cst_135 {dimension_numbers = #tpu.dot_dimension_numbers<[1], [0], [0], [1], [0, 0, 1, 1], [], []>} : vector<16x16xbf16>, vector<16x8xbf16>, vector<16x8xf32> -> vector<16x8xf32>
    %356 = tpu.concatenate %298, %317, %336, %355 in 1 : vector<16x8xf32>, vector<16x8xf32>, vector<16x8xf32>, vector<16x8xf32> -> vector<16x32xf32>
    %357 = arith.truncf %356 : vector<16x32xf32> to vector<16x32xbf16>
    %c1_136 = arith.constant 1 : index
    %c0_137 = arith.constant 0 : index
    %c0_138 = arith.constant 0 : index
    %358 = vector.load %arg10[%c1_136, %c0_137, %c0_138] : memref<2x32x32xbf16, #tpu.memory_space<vmem>>, vector<1x32x32xbf16>
    %359 = vector.shape_cast %358 : vector<1x32x32xbf16> to vector<32x32xbf16>
    %cst_139 = arith.constant dense<0.000000e+00> : vector<16x32xf32>
    %360 = tpu.matmul %357, %359, %cst_139 {dimension_numbers = #tpu.dot_dimension_numbers<[1], [0], [0], [1], [0, 0, 1, 1], [], []>} : vector<16x32xbf16>, vector<32x32xbf16>, vector<16x32xf32> -> vector<16x32xf32>
    %c1_140 = arith.constant 1 : index
    %c0_141 = arith.constant 0 : index
    %c0_142 = arith.constant 0 : index
    %361 = vector.load %arg11[%c1_140, %c0_141, %c0_142] : memref<2x1x32xf32, #tpu.memory_space<vmem>>, vector<1x1x32xf32>
    %362 = vector.shape_cast %361 : vector<1x1x32xf32> to vector<1x32xf32>
    %363 = vector.broadcast %362 : vector<1x32xf32> to vector<16x32xf32>
    %364 = arith.addf %360, %363 : vector<16x32xf32>
    %365 = arith.addf %271, %364 : vector<16x32xf32>
    %c1_143 = arith.constant 1 : index
    %c0_144 = arith.constant 0 : index
    %c0_145 = arith.constant 0 : index
    %366 = vector.load %arg16[%c1_143, %c0_144, %c0_145] : memref<2x1x32xf32, #tpu.memory_space<vmem>>, vector<1x1x32xf32>
    %367 = vector.shape_cast %366 : vector<1x1x32xf32> to vector<1x32xf32>
    %c1_146 = arith.constant 1 : index
    %c0_147 = arith.constant 0 : index
    %c0_148 = arith.constant 0 : index
    %368 = vector.load %arg17[%c1_146, %c0_147, %c0_148] : memref<2x1x32xf32, #tpu.memory_space<vmem>>, vector<1x1x32xf32>
    %369 = vector.shape_cast %368 : vector<1x1x32xf32> to vector<1x32xf32>
    %cst_149 = arith.constant dense<0.000000e+00> : vector<16xf32>
    %370 = vector.multi_reduction <add>, %365, %cst_149 [1] : vector<16x32xf32> to vector<16xf32>
    %371 = vector.shape_cast %370 : vector<16xf32> to vector<16x1xf32>
    %cst_150 = arith.constant 3.200000e+01 : f32
    %372 = vector.broadcast %cst_150 : f32 to vector<16x1xf32>
    %373 = arith.divf %371, %372 : vector<16x1xf32>
    %374 = vector.broadcast %373 : vector<16x1xf32> to vector<16x32xf32>
    %375 = arith.subf %365, %374 : vector<16x32xf32>
    %376 = arith.mulf %375, %375 : vector<16x32xf32>
    %cst_151 = arith.constant dense<0.000000e+00> : vector<16xf32>
    %377 = vector.multi_reduction <add>, %376, %cst_151 [1] : vector<16x32xf32> to vector<16xf32>
    %378 = vector.shape_cast %377 : vector<16xf32> to vector<16x1xf32>
    %cst_152 = arith.constant 3.200000e+01 : f32
    %379 = vector.broadcast %cst_152 : f32 to vector<16x1xf32>
    %380 = arith.divf %378, %379 : vector<16x1xf32>
    %cst_153 = arith.constant 9.99999974E-6 : f32
    %381 = vector.broadcast %cst_153 : f32 to vector<16x1xf32>
    %382 = arith.addf %380, %381 : vector<16x1xf32>
    %383 = math.rsqrt %382 : vector<16x1xf32>
    %384 = vector.broadcast %383 : vector<16x1xf32> to vector<16x32xf32>
    %385 = arith.mulf %375, %384 : vector<16x32xf32>
    %386 = vector.broadcast %367 : vector<1x32xf32> to vector<16x32xf32>
    %387 = arith.mulf %385, %386 : vector<16x32xf32>
    %388 = vector.broadcast %369 : vector<1x32xf32> to vector<16x32xf32>
    %389 = arith.addf %387, %388 : vector<16x32xf32>
    %390 = arith.truncf %389 : vector<16x32xf32> to vector<16x32xbf16>
    %c1_154 = arith.constant 1 : index
    %c0_155 = arith.constant 0 : index
    %c0_156 = arith.constant 0 : index
    %391 = vector.load %arg12[%c1_154, %c0_155, %c0_156] : memref<2x32x512xbf16, #tpu.memory_space<vmem>>, vector<1x32x512xbf16>
    %392 = vector.shape_cast %391 : vector<1x32x512xbf16> to vector<32x512xbf16>
    %cst_157 = arith.constant dense<0.000000e+00> : vector<16x512xf32>
    %393 = tpu.matmul %390, %392, %cst_157 {dimension_numbers = #tpu.dot_dimension_numbers<[1], [0], [0], [1], [0, 0, 1, 1], [], []>} : vector<16x32xbf16>, vector<32x512xbf16>, vector<16x512xf32> -> vector<16x512xf32>
    %c1_158 = arith.constant 1 : index
    %c0_159 = arith.constant 0 : index
    %c0_160 = arith.constant 0 : index
    %394 = vector.load %arg13[%c1_158, %c0_159, %c0_160] : memref<2x1x512xf32, #tpu.memory_space<vmem>>, vector<1x1x512xf32>
    %395 = vector.shape_cast %394 : vector<1x1x512xf32> to vector<1x512xf32>
    %396 = vector.broadcast %395 : vector<1x512xf32> to vector<16x512xf32>
    %397 = arith.addf %393, %396 : vector<16x512xf32>
    %cst_161 = arith.constant 5.000000e-01 : f32
    %398 = vector.broadcast %cst_161 : f32 to vector<16x512xf32>
    %399 = arith.mulf %398, %397 : vector<16x512xf32>
    %cst_162 = arith.constant 0.707106769 : f32
    %400 = vector.broadcast %cst_162 : f32 to vector<16x512xf32>
    %401 = arith.mulf %397, %400 : vector<16x512xf32>
    %402 = math.absf %401 : vector<16x512xf32>
    %cst_163 = arith.constant 0.327591091 : f32
    %403 = vector.broadcast %cst_163 : f32 to vector<16x512xf32>
    %404 = arith.mulf %403, %402 : vector<16x512xf32>
    %cst_164 = arith.constant 1.000000e+00 : f32
    %405 = vector.broadcast %cst_164 : f32 to vector<16x512xf32>
    %406 = arith.addf %405, %404 : vector<16x512xf32>
    %cst_165 = arith.constant 1.000000e+00 : f32
    %407 = vector.broadcast %cst_165 : f32 to vector<16x512xf32>
    %408 = arith.divf %407, %406 : vector<16x512xf32>
    %cst_166 = arith.constant 1.06140542 : f32
    %409 = vector.broadcast %cst_166 : f32 to vector<16x512xf32>
    %410 = arith.mulf %409, %408 : vector<16x512xf32>
    %cst_167 = arith.constant -1.45315206 : f32
    %411 = vector.broadcast %cst_167 : f32 to vector<16x512xf32>
    %412 = arith.addf %410, %411 : vector<16x512xf32>
    %413 = arith.mulf %412, %408 : vector<16x512xf32>
    %cst_168 = arith.constant 1.42141378 : f32
    %414 = vector.broadcast %cst_168 : f32 to vector<16x512xf32>
    %415 = arith.addf %413, %414 : vector<16x512xf32>
    %416 = arith.mulf %415, %408 : vector<16x512xf32>
    %cst_169 = arith.constant -0.284496725 : f32
    %417 = vector.broadcast %cst_169 : f32 to vector<16x512xf32>
    %418 = arith.addf %416, %417 : vector<16x512xf32>
    %419 = arith.mulf %418, %408 : vector<16x512xf32>
    %cst_170 = arith.constant 0.254829586 : f32
    %420 = vector.broadcast %cst_170 : f32 to vector<16x512xf32>
    %421 = arith.addf %419, %420 : vector<16x512xf32>
    %422 = arith.mulf %421, %408 : vector<16x512xf32>
    %cst_171 = arith.constant 0.000000e+00 : f32
    %423 = vector.broadcast %cst_171 : f32 to vector<16x512xf32>
    %424 = arith.subf %423, %402 : vector<16x512xf32>
    %425 = arith.mulf %424, %402 : vector<16x512xf32>
    %426 = math.exp %425 : vector<16x512xf32>
    %427 = arith.mulf %422, %426 : vector<16x512xf32>
    %cst_172 = arith.constant 1.000000e+00 : f32
    %428 = vector.broadcast %cst_172 : f32 to vector<16x512xf32>
    %429 = arith.subf %428, %427 : vector<16x512xf32>
    %cst_173 = arith.constant 0.000000e+00 : f32
    %430 = vector.broadcast %cst_173 : f32 to vector<16x512xf32>
    %431 = arith.cmpf oge, %401, %430 : vector<16x512xf32>
    %cst_174 = arith.constant 0.000000e+00 : f32
    %432 = vector.broadcast %cst_174 : f32 to vector<16x512xf32>
    %433 = arith.subf %432, %429 : vector<16x512xf32>
    %434 = arith.select %431, %429, %433 : vector<16x512xi1>, vector<16x512xf32>
    %cst_175 = arith.constant 1.000000e+00 : f32
    %435 = vector.broadcast %cst_175 : f32 to vector<16x512xf32>
    %436 = arith.addf %435, %434 : vector<16x512xf32>
    %437 = arith.mulf %399, %436 : vector<16x512xf32>
    %438 = arith.truncf %437 : vector<16x512xf32> to vector<16x512xbf16>
    %c1_176 = arith.constant 1 : index
    %c0_177 = arith.constant 0 : index
    %c0_178 = arith.constant 0 : index
    %439 = vector.load %arg14[%c1_176, %c0_177, %c0_178] : memref<2x512x32xbf16, #tpu.memory_space<vmem>>, vector<1x512x32xbf16>
    %440 = vector.shape_cast %439 : vector<1x512x32xbf16> to vector<512x32xbf16>
    %cst_179 = arith.constant dense<0.000000e+00> : vector<16x32xf32>
    %441 = tpu.matmul %438, %440, %cst_179 {dimension_numbers = #tpu.dot_dimension_numbers<[1], [0], [0], [1], [0, 0, 1, 1], [], []>} : vector<16x512xbf16>, vector<512x32xbf16>, vector<16x32xf32> -> vector<16x32xf32>
    %c1_180 = arith.constant 1 : index
    %c0_181 = arith.constant 0 : index
    %c0_182 = arith.constant 0 : index
    %442 = vector.load %arg15[%c1_180, %c0_181, %c0_182] : memref<2x1x32xf32, #tpu.memory_space<vmem>>, vector<1x1x32xf32>
    %443 = vector.shape_cast %442 : vector<1x1x32xf32> to vector<1x32xf32>
    %444 = vector.broadcast %443 : vector<1x32xf32> to vector<16x32xf32>
    %445 = arith.addf %441, %444 : vector<16x32xf32>
    %446 = arith.addf %389, %445 : vector<16x32xf32>
    %c1_183 = arith.constant 1 : index
    %c0_184 = arith.constant 0 : index
    %c0_185 = arith.constant 0 : index
    %447 = vector.load %arg18[%c1_183, %c0_184, %c0_185] : memref<2x1x32xf32, #tpu.memory_space<vmem>>, vector<1x1x32xf32>
    %448 = vector.shape_cast %447 : vector<1x1x32xf32> to vector<1x32xf32>
    %c1_186 = arith.constant 1 : index
    %c0_187 = arith.constant 0 : index
    %c0_188 = arith.constant 0 : index
    %449 = vector.load %arg19[%c1_186, %c0_187, %c0_188] : memref<2x1x32xf32, #tpu.memory_space<vmem>>, vector<1x1x32xf32>
    %450 = vector.shape_cast %449 : vector<1x1x32xf32> to vector<1x32xf32>
    %cst_189 = arith.constant dense<0.000000e+00> : vector<16xf32>
    %451 = vector.multi_reduction <add>, %446, %cst_189 [1] : vector<16x32xf32> to vector<16xf32>
    %452 = vector.shape_cast %451 : vector<16xf32> to vector<16x1xf32>
    %cst_190 = arith.constant 3.200000e+01 : f32
    %453 = vector.broadcast %cst_190 : f32 to vector<16x1xf32>
    %454 = arith.divf %452, %453 : vector<16x1xf32>
    %455 = vector.broadcast %454 : vector<16x1xf32> to vector<16x32xf32>
    %456 = arith.subf %446, %455 : vector<16x32xf32>
    %457 = arith.mulf %456, %456 : vector<16x32xf32>
    %cst_191 = arith.constant dense<0.000000e+00> : vector<16xf32>
    %458 = vector.multi_reduction <add>, %457, %cst_191 [1] : vector<16x32xf32> to vector<16xf32>
    %459 = vector.shape_cast %458 : vector<16xf32> to vector<16x1xf32>
    %cst_192 = arith.constant 3.200000e+01 : f32
    %460 = vector.broadcast %cst_192 : f32 to vector<16x1xf32>
    %461 = arith.divf %459, %460 : vector<16x1xf32>
    %cst_193 = arith.constant 9.99999974E-6 : f32
    %462 = vector.broadcast %cst_193 : f32 to vector<16x1xf32>
    %463 = arith.addf %461, %462 : vector<16x1xf32>
    %464 = math.rsqrt %463 : vector<16x1xf32>
    %465 = vector.broadcast %464 : vector<16x1xf32> to vector<16x32xf32>
    %466 = arith.mulf %456, %465 : vector<16x32xf32>
    %467 = vector.broadcast %448 : vector<1x32xf32> to vector<16x32xf32>
    %468 = arith.mulf %466, %467 : vector<16x32xf32>
    %469 = vector.broadcast %450 : vector<1x32xf32> to vector<16x32xf32>
    %470 = arith.addf %468, %469 : vector<16x32xf32>
    %471 = arith.addf %271, %470 : vector<16x32xf32>
    %c0_194 = arith.constant 0 : index
    %c0_195 = arith.constant 0 : index
    %472 = vector.load %arg3[%c0_194, %c0_195] : memref<8x16xf32, #tpu.memory_space<vmem>>, vector<8x16xf32>
    %cst_196 = arith.constant dense<0.000000e+00> : vector<8x32xf32>
    %473 = tpu.matmul %472, %471, %cst_196 {dimension_numbers = #tpu.dot_dimension_numbers<[1], [0], [0], [1], [0, 0, 1, 1], [], []>} : vector<8x16xf32>, vector<16x32xf32>, vector<8x32xf32> -> vector<8x32xf32>
    %c0_197 = arith.constant 0 : index
    %c0_198 = arith.constant 0 : index
    %474 = vector.load %arg20[%c0_197, %c0_198] : memref<1x32xf32, #tpu.memory_space<vmem>>, vector<1x32xf32>
    %c0_199 = arith.constant 0 : index
    %c0_200 = arith.constant 0 : index
    %475 = vector.load %arg21[%c0_199, %c0_200] : memref<1x32xf32, #tpu.memory_space<vmem>>, vector<1x32xf32>
    %cst_201 = arith.constant dense<0.000000e+00> : vector<8xf32>
    %476 = vector.multi_reduction <add>, %473, %cst_201 [1] : vector<8x32xf32> to vector<8xf32>
    %477 = vector.shape_cast %476 : vector<8xf32> to vector<8x1xf32>
    %cst_202 = arith.constant 3.200000e+01 : f32
    %478 = vector.broadcast %cst_202 : f32 to vector<8x1xf32>
    %479 = arith.divf %477, %478 : vector<8x1xf32>
    %480 = vector.broadcast %479 : vector<8x1xf32> to vector<8x32xf32>
    %481 = arith.subf %473, %480 : vector<8x32xf32>
    %482 = arith.mulf %481, %481 : vector<8x32xf32>
    %cst_203 = arith.constant dense<0.000000e+00> : vector<8xf32>
    %483 = vector.multi_reduction <add>, %482, %cst_203 [1] : vector<8x32xf32> to vector<8xf32>
    %484 = vector.shape_cast %483 : vector<8xf32> to vector<8x1xf32>
    %cst_204 = arith.constant 3.200000e+01 : f32
    %485 = vector.broadcast %cst_204 : f32 to vector<8x1xf32>
    %486 = arith.divf %484, %485 : vector<8x1xf32>
    %cst_205 = arith.constant 9.99999974E-6 : f32
    %487 = vector.broadcast %cst_205 : f32 to vector<8x1xf32>
    %488 = arith.addf %486, %487 : vector<8x1xf32>
    %489 = math.rsqrt %488 : vector<8x1xf32>
    %490 = vector.broadcast %489 : vector<8x1xf32> to vector<8x32xf32>
    %491 = arith.mulf %481, %490 : vector<8x32xf32>
    %492 = vector.broadcast %474 : vector<1x32xf32> to vector<8x32xf32>
    %493 = arith.mulf %491, %492 : vector<8x32xf32>
    %494 = vector.broadcast %475 : vector<1x32xf32> to vector<8x32xf32>
    %495 = arith.addf %493, %494 : vector<8x32xf32>
    %cst_206 = arith.constant 0.000000e+00 : f32
    %496 = vector.broadcast %cst_206 : f32 to vector<8x32xf32>
    %497 = arith.maximumf %495, %496 : vector<8x32xf32>
    %498 = arith.truncf %497 : vector<8x32xf32> to vector<8x32xbf16>
    %c0_207 = arith.constant 0 : index
    %c0_208 = arith.constant 0 : index
    %499 = vector.load %arg22[%c0_207, %c0_208] : memref<32x128xbf16, #tpu.memory_space<vmem>>, vector<32x128xbf16>
    %cst_209 = arith.constant dense<0.000000e+00> : vector<8x128xf32>
    %500 = tpu.matmul %498, %499, %cst_209 {dimension_numbers = #tpu.dot_dimension_numbers<[1], [0], [0], [1], [0, 0, 1, 1], [], []>} : vector<8x32xbf16>, vector<32x128xbf16>, vector<8x128xf32> -> vector<8x128xf32>
    %c0_210 = arith.constant 0 : index
    %c0_211 = arith.constant 0 : index
    %501 = vector.load %arg23[%c0_210, %c0_211] : memref<1x128xf32, #tpu.memory_space<vmem>>, vector<1x128xf32>
    %502 = vector.broadcast %501 : vector<1x128xf32> to vector<8x128xf32>
    %503 = arith.addf %500, %502 : vector<8x128xf32>
    %c0_212 = arith.constant 0 : index
    %c0_213 = arith.constant 0 : index
    %504 = vector.load %arg24[%c0_212, %c0_213] : memref<8x128xf32, #tpu.memory_space<vmem>>, vector<8x128xf32>
    tpu.vector_store %arg24[%c0_212, %c0_213], %503 {strides = array<i32>} : memref<8x128xf32, #tpu.memory_space<vmem>>, vector<8x128xf32>,
    return
  }
}

</mosaic_0001>

<llo_original>
// kernel: tile.7
$region0: #{tile.7}
  %s0 = inlined_call_operand.vmem [shape: f32[2,6,32], index: 0, kind: input, shape index: {}]
  %s1 = inlined_call_operand.vmem [shape: f32[12,32], index: 1, kind: output, shape index: {}]
  %v2 = vld [vmem:[%s0] sm:$0x3f]
  %vm3 = vcmask 261120
  %4 = vst.msk [vmem:[%s1] sm:$0x3f] %vm3, %v2
  %s5 = scalar_lea.vmem %s0, 8
  %v6 = vld [vmem:[%s5] sm:$0x3f]
  %vm7 = vcmask 261120
  %s8 = scalar_lea.vmem %s1, 6
  %9 = vst.msk [vmem:[%s8] sm:$0x3f] %vm7, %v6

// kernel: easytrans_forward.1
$region0: #{easytrans_forward.1}
  #allocation0 [shape = 'u32[]', space=smem, size = 0x4, offset = 0x4, fixed_abs, tag = 'smem constant byte address 0x4 - core index']
  #allocation1 [shape = 'u32[144,128]{1,0:T(1,128)}', space=vmem, size = 0x12000, scoped, tag = 'internal scratch']
  %s0 = inlined_call_operand.vmem [shape: f32[16,160], index: 0, kind: input, shape index: {}]
  %s1 = inlined_call_operand.vmem [shape: f32[16,32], index: 1, kind: input, shape index: {}]
  %s2 = inlined_call_operand.vmem [shape: f32[16,16], index: 2, kind: input, shape index: {}]
  %s3 = inlined_call_operand.vmem [shape: f32[8,16], index: 3, kind: input, shape index: {}]
  %s4 = inlined_call_operand.vmem [shape: bf16[160,32], index: 4, kind: input, shape index: {}]
  %s5 = inlined_call_operand.vmem [shape: f32[1,32], index: 5, kind: input, shape index: {}]
  %s6 = inlined_call_operand.vmem [shape: f32[1,32], index: 6, kind: input, shape index: {}]
  %s7 = inlined_call_operand.vmem [shape: f32[1,32], index: 7, kind: input, shape index: {}]
  %s8 = inlined_call_operand.vmem [shape: bf16[2,32,128], index: 8, kind: input, shape index: {}]
  %s9 = inlined_call_operand.vmem [shape: f32[2,1,128], index: 9, kind: input, shape index: {}]
  %s10 = inlined_call_operand.vmem [shape: bf16[2,32,32], index: 10, kind: input, shape index: {}]
  %s11 = inlined_call_operand.vmem [shape: f32[2,1,32], index: 11, kind: input, shape index: {}]
  %s12 = inlined_call_operand.vmem [shape: bf16[2,32,512], index: 12, kind: input, shape index: {}]
  %s13 = inlined_call_operand.vmem [shape: f32[2,1,512], index: 13, kind: input, shape index: {}]
  %s14 = inlined_call_operand.vmem [shape: bf16[2,512,32], index: 14, kind: input, shape index: {}]
  %s15 = inlined_call_operand.vmem [shape: f32[2,1,32], index: 15, kind: input, shape index: {}]
  %s16 = inlined_call_operand.vmem [shape: f32[2,1,32], index: 16, kind: input, shape index: {}]
  %s17 = inlined_call_operand.vmem [shape: f32[2,1,32], index: 17, kind: input, shape index: {}]
  %s18 = inlined_call_operand.vmem [shape: f32[2,1,32], index: 18, kind: input, shape index: {}]
  %s19 = inlined_call_operand.vmem [shape: f32[2,1,32], index: 19, kind: input, shape index: {}]
  %s20 = inlined_call_operand.vmem [shape: f32[1,32], index: 20, kind: input, shape index: {}]
  %s21 = inlined_call_operand.vmem [shape: f32[1,32], index: 21, kind: input, shape index: {}]
  %s22 = inlined_call_operand.vmem [shape: bf16[32,128], index: 22, kind: input, shape index: {}]
  %s23 = inlined_call_operand.vmem [shape: f32[1,128], index: 23, kind: input, shape index: {}]
  %s24 = inlined_call_operand.vmem [shape: f32[8,128], index: 24, kind: output, shape index: {}]
  %s25 = sld [smem:[#allocation0]]
  $region106: #{easytrans_forward.1} parent=0
    _
  %s27 = ssub.s32 1, %s25
  %s28 = scalar_select 0, %s27, %s25
  // Predicated region
  $region2: #{easytrans_forward.1} parent=0 // pred_check
    _
  $region3: #{easytrans_forward.1} parent=0 // pred_check_branch
    %30 = sbr.rel (0) target = $region5
  $region4: #{easytrans_forward.1} parent=0 // pred_region
    _
  $region5: #{easytrans_forward.1} parent=0 // pred_fallthru
    _
  // Predicated region
  $region6: #{easytrans_forward.1} parent=0 // pred_check
    _
  $region7: #{easytrans_forward.1} parent=0 // pred_check_branch
    %32 = sbr.rel (0) target = $region9
  $region8: #{easytrans_forward.1} parent=0 // pred_region
    _
  $region9: #{easytrans_forward.1} parent=0 // pred_fallthru
    _
  // Predicated region
  $region10: #{easytrans_forward.1} parent=0 // pred_check
    _
  $region11: #{easytrans_forward.1} parent=0 // pred_check_branch
    %34 = sbr.rel (0) target = $region13
  $region12: #{easytrans_forward.1} parent=0 // pred_region
    _
  $region13: #{easytrans_forward.1} parent=0 // pred_fallthru
    _
  // Predicated region
  $region14: #{easytrans_forward.1} parent=0 // pred_check
    _
  $region15: #{easytrans_forward.1} parent=0 // pred_check_branch
    %36 = sbr.rel (0) target = $region17
  $region16: #{easytrans_forward.1} parent=0 // pred_region
    _
  $region17: #{easytrans_forward.1} parent=0 // pred_fallthru
    _
  // Predicated region
  $region18: #{easytrans_forward.1} parent=0 // pred_check
    _
  $region19: #{easytrans_forward.1} parent=0 // pred_check_branch
    %38 = sbr.rel (0) target = $region21
  $region20: #{easytrans_forward.1} parent=0 // pred_region
    _
  $region21: #{easytrans_forward.1} parent=0 // pred_fallthru
    _
  // Predicated region
  $region22: #{easytrans_forward.1} parent=0 // pred_check
    _
  $region23: #{easytrans_forward.1} parent=0 // pred_check_branch
    %40 = sbr.rel (0) target = $region25
  $region24: #{easytrans_forward.1} parent=0 // pred_region
    _
  $region25: #{easytrans_forward.1} parent=0 // pred_fallthru
    _
  // Predicated region
  $region26: #{easytrans_forward.1} parent=0 // pred_check
    _
  $region27: #{easytrans_forward.1} parent=0 // pred_check_branch
    %42 = sbr.rel (0) target = $region29
  $region28: #{easytrans_forward.1} parent=0 // pred_region
    _
  $region29: #{easytrans_forward.1} parent=0 // pred_fallthru
    _
  // Predicated region
  $region30: #{easytrans_forward.1} parent=0 // pred_check
    _
  $region31: #{easytrans_forward.1} parent=0 // pred_check_branch
    %44 = sbr.rel (0) target = $region33
  $region32: #{easytrans_forward.1} parent=0 // pred_region
    _
  $region33: #{easytrans_forward.1} parent=0 // pred_fallthru
    _
  // Predicated region
  $region34: #{easytrans_forward.1} parent=0 // pred_check
    _
  $region35: #{easytrans_forward.1} parent=0 // pred_check_branch
    %46 = sbr.rel (0) target = $region37
  $region36: #{easytrans_forward.1} parent=0 // pred_region
    _
  $region37: #{easytrans_forward.1} parent=0 // pred_fallthru
    _
  // Predicated region
  $region38: #{easytrans_forward.1} parent=0 // pred_check
    _
  $region39: #{easytrans_forward.1} parent=0 // pred_check_branch
    %48 = sbr.rel (0) target = $region41
  $region40: #{easytrans_forward.1} parent=0 // pred_region
    _
  $region41: #{easytrans_forward.1} parent=0 // pred_fallthru
    _
  // Predicated region
  $region42: #{easytrans_forward.1} parent=0 // pred_check
    _
  $region43: #{easytrans_forward.1} parent=0 // pred_check_branch
    %50 = sbr.rel (0) target = $region45
  $region44: #{easytrans_forward.1} parent=0 // pred_region
    _
  $region45: #{easytrans_forward.1} parent=0 // pred_fallthru
    _
  // Predicated region
  $region46: #{easytrans_forward.1} parent=0 // pred_check
    _
  $region47: #{easytrans_forward.1} parent=0 // pred_check_branch
    %52 = sbr.rel (0) target = $region49
  $region48: #{easytrans_forward.1} parent=0 // pred_region
    _
  $region49: #{easytrans_forward.1} parent=0 // pred_fallthru
    _
  // Predicated region
  $region50: #{easytrans_forward.1} parent=0 // pred_check
    _
  $region51: #{easytrans_forward.1} parent=0 // pred_check_branch
    %54 = sbr.rel (0) target = $region53
  $region52: #{easytrans_forward.1} parent=0 // pred_region
    _
  $region53: #{easytrans_forward.1} parent=0 // pred_fallthru
    _
  // Predicated region
  $region54: #{easytrans_forward.1} parent=0 // pred_check
    _
  $region55: #{easytrans_forward.1} parent=0 // pred_check_branch
    %56 = sbr.rel (0) target = $region57
  $region56: #{easytrans_forward.1} parent=0 // pred_region
    _
  $region57: #{easytrans_forward.1} parent=0 // pred_fallthru
    _
  // Predicated region
  $region58: #{easytrans_forward.1} parent=0 // pred_check
    _
  $region59: #{easytrans_forward.1} parent=0 // pred_check_branch
    %58 = sbr.rel (0) target = $region61
  $region60: #{easytrans_forward.1} parent=0 // pred_region
    _
  $region61: #{easytrans_forward.1} parent=0 // pred_fallthru
    _
  // Predicated region
  $region62: #{easytrans_forward.1} parent=0 // pred_check
    _
  $region63: #{easytrans_forward.1} parent=0 // pred_check_branch
    %60 = sbr.rel (0) target = $region65
  $region64: #{easytrans_forward.1} parent=0 // pred_region
    _
  $region65: #{easytrans_forward.1} parent=0 // pred_fallthru
    _
  // Predicated region
  $region66: #{easytrans_forward.1} parent=0 // pred_check
    _
  $region67: #{easytrans_forward.1} parent=0 // pred_check_branch
    %62 = sbr.rel (0) target = $region69
  $region68: #{easytrans_forward.1} parent=0 // pred_region
    _
  $region69: #{easytrans_forward.1} parent=0 // pred_fallthru
    _
  // Predicated region
  $region70: #{easytrans_forward.1} parent=0 // pred_check
    _
  $region71: #{easytrans_forward.1} parent=0 // pred_check_branch
    %64 = sbr.rel (0) target = $region73
  $region72: #{easytrans_forward.1} parent=0 // pred_region
    _
  $region73: #{easytrans_forward.1} parent=0 // pred_fallthru
    _
  // Predicated region
  $region74: #{easytrans_forward.1} parent=0 // pred_check
    _
  $region75: #{easytrans_forward.1} parent=0 // pred_check_branch
    %66 = sbr.rel (0) target = $region77
  $region76: #{easytrans_forward.1} parent=0 // pred_region
    _
  $region77: #{easytrans_forward.1} parent=0 // pred_fallthru
    _
  // Predicated region
  $region78: #{easytrans_forward.1} parent=0 // pred_check
    _
  $region79: #{easytrans_forward.1} parent=0 // pred_check_branch
    %68 = sbr.rel (0) target = $region81
  $region80: #{easytrans_forward.1} parent=0 // pred_region
    _
  $region81: #{easytrans_forward.1} parent=0 // pred_fallthru
    _
  // Predicated region
  $region82: #{easytrans_forward.1} parent=0 // pred_check
    _
  $region83: #{easytrans_forward.1} parent=0 // pred_check_branch
    %70 = sbr.rel (0) target = $region85
  $region84: #{easytrans_forward.1} parent=0 // pred_region
    _
  $region85: #{easytrans_forward.1} parent=0 // pred_fallthru
    _
  // Predicated region
  $region86: #{easytrans_forward.1} parent=0 // pred_check
    _
  $region87: #{easytrans_forward.1} parent=0 // pred_check_branch
    %72 = sbr.rel (0) target = $region89
  $region88: #{easytrans_forward.1} parent=0 // pred_region
    _
  $region89: #{easytrans_forward.1} parent=0 // pred_fallthru
    _
  // Predicated region
  $region90: #{easytrans_forward.1} parent=0 // pred_check
    _
  $region91: #{easytrans_forward.1} parent=0 // pred_check_branch
    %74 = sbr.rel (0) target = $region93
  $region92: #{easytrans_forward.1} parent=0 // pred_region
    _
  $region93: #{easytrans_forward.1} parent=0 // pred_fallthru
    _
  // Predicated region
  $region94: #{easytrans_forward.1} parent=0 // pred_check
    _
  $region95: #{easytrans_forward.1} parent=0 // pred_check_branch
    %76 = sbr.rel (0) target = $region97
  $region96: #{easytrans_forward.1} parent=0 // pred_region
    _
  $region97: #{easytrans_forward.1} parent=0 // pred_fallthru
    _
  %v78 = vld [vmem:[%s0] sm:$0xff]
  %v79 = vld [vmem:[%s0 + $0x8] sm:$0xff]
  %v80 = vld [vmem:[%s0 + $0x10] sm:$0xff]
  %v81 = vld [vmem:[%s0 + $0x18] sm:$0xff]
  %v82 = vpack.c.bf16 %v80, %v78
  %v83 = vpack.c.bf16 %v81, %v79
  %v84 = vld [vmem:[%s4] sm:$0xf]
  %v85 = vld [vmem:[%s4 + $0x4] sm:$0xf]
  %v86 = vld [vmem:[%s4 + $0x8] sm:$0xf]
  %v87 = vld [vmem:[%s4 + $0xc] sm:$0xf]
  %v88 = vld [vmem:[%s4 + $0x10] sm:$0xf]
  %v89 = vld [vmem:[%s4 + $0x14] sm:$0xf]
  %v90 = vld [vmem:[%s4 + $0x18] sm:$0xf]
  %v91 = vld [vmem:[%s4 + $0x1c] sm:$0xf]
  %v92 = vld [vmem:[%s4 + $0x20] sm:$0xf]
  %v93 = vld [vmem:[%s4 + $0x24] sm:$0xf]
  %v94 = vld [vmem:[%s4 + $0x28] sm:$0xf]
  %v95 = vld [vmem:[%s4 + $0x2c] sm:$0xf]
  %v96 = vld [vmem:[%s4 + $0x30] sm:$0xf]
  %v97 = vld [vmem:[%s4 + $0x34] sm:$0xf]
  %v98 = vld [vmem:[%s4 + $0x38] sm:$0xf]
  %v99 = vld [vmem:[%s4 + $0x3c] sm:$0xf]
  %v100 = vld [vmem:[%s4 + $0x40] sm:$0xf]
  %v101 = vld [vmem:[%s4 + $0x44] sm:$0xf]
  %v102 = vld [vmem:[%s4 + $0x48] sm:$0xf]
  %v103 = vld [vmem:[%s4 + $0x4c] sm:$0xf]
  %v104 = vld [vmem:[%s5] sm:$0x1]
  %v106 = vlaneseq
  %v107 = vshrl.u32 %v106, 7
  %v108 = vsub.s32 0, %v107
  %v109 = vrot.slane %v104, %v108
  %v131 = vunpack.c.l.b16 %v84
  %v132 = vunpack.c.l.b16 %v85
  %v133 = vunpack.c.l.b16 %v86
  %v134 = vunpack.c.l.b16 %v87
  %v135 = vunpack.c.l.b16 %v88
  %v136 = vunpack.c.l.b16 %v89
  %v137 = vunpack.c.l.b16 %v90
  %v138 = vunpack.c.l.b16 %v91
  %v139 = vunpack.c.l.b16 %v92
  %v140 = vunpack.c.l.b16 %v93
  %v141 = vunpack.c.l.b16 %v94
  %v142 = vunpack.c.l.b16 %v95
  %v143 = vunpack.c.l.b16 %v96
  %v144 = vunpack.c.l.b16 %v97
  %v145 = vunpack.c.l.b16 %v98
  %v146 = vunpack.c.l.b16 %v99
  %v147 = vunpack.c.l.b16 %v100
  %v148 = vunpack.c.l.b16 %v101
  %v149 = vunpack.c.l.b16 %v102
  %v150 = vunpack.c.l.b16 %v103
  %v151 = vpack.c.b16 %v132, %v131
  %v152 = vpack.c.b16 %v134, %v133
  %v153 = vpack.c.b16 %v136, %v135
  %v154 = vpack.c.b16 %v138, %v137
  %v155 = vpack.c.b16 %v140, %v139
  %v156 = vpack.c.b16 %v142, %v141
  %v157 = vpack.c.b16 %v144, %v143
  %v158 = vpack.c.b16 %v146, %v145
  %v159 = vpack.c.b16 %v148, %v147
  %v160 = vpack.c.b16 %v150, %v149
  %vm171 = vcmask 261120
  %v173 = vsel %vm171, %v83, 0
  %175 = vmatprep.subr.bf16.mxu0 0
  %176 = vmatpush1.bf16.msra.mxu0 %v151
  %177 = vmatprep.subr.bf16.mxu0 0
  %178 = vmatpush1.bf16.msra.mxu0 %v152
  %179 = vmatprep.subr.bf16.mxu0 0
  %180 = vmatpush1.bf16.msra.mxu0 %v153
  %181 = vmatprep.subr.bf16.mxu0 0
  %182 = vmatpush1.bf16.msra.mxu0 %v154
  %183 = vmatprep.subr.bf16.mxu0 0
  %184 = vmatpush1.bf16.msra.mxu0 %v155
  %185 = vmatprep.subr.bf16.mxu0 0
  %186 = vmatpush1.bf16.msra.mxu0 %v156
  %187 = vmatprep.subr.bf16.mxu0 0
  %188 = vmatpush1.bf16.msra.mxu0 %v157
  %189 = vmatprep.subr.bf16.mxu0 0
  %190 = vmatpush1.bf16.msra.mxu0 %v158
  %191 = vmatprep.subr.bf16.mxu0 0
  %192 = vmatpush1.bf16.msra.mxu0 %v159
  %193 = vmatprep.subr.bf16.mxu0 0
  %194 = vmatpush1.bf16.msra.mxu0 %v160
  %195 = vmatprep.subr.bf16.mxu0 0
  %196 = vmatpush1.bf16.msra.mxu0 0
  %197 = vmatprep.subr.bf16.mxu0 0
  %198 = vmatpush1.bf16.msra.mxu0 0
  %199 = vmatprep.subr.bf16.mxu0 0
  %200 = vmatpush1.bf16.msra.mxu0 0
  %201 = vmatprep.subr.bf16.mxu0 0
  %202 = vmatpush1.bf16.msra.mxu0 0
  %203 = vmatprep.subr.bf16.mxu0 0
  %204 = vmatpush1.bf16.msra.mxu0 0
  %205 = vmatprep.subr.bf16.mxu0 0
  %206 = vmatpush1.bf16.msra.mxu0 0
  %207 = vmatprep.mubr.bf16.mxu0 %v173
  %208 = vmatmul.mubr.bf16.gmra.mrb[0].mxu0 %v82
  %v209 = vpop.f32.mrb[0].mxu0
  %v210 = vadd.f32 %v109, %v209
  %v211 = vpop.f32.mrb[0].mxu0
  %v212 = vpop.f32.mrb[0].mxu0
  %v213 = vadd.f32 %v109, %v212
  %v214 = vpop.f32.mrb[0].mxu0
  %215 = vdwg.mxu0
  %v216 = vld [vmem:[%s1] sm:$0xff]
  %v217 = vld [vmem:[%s1 + $0x8] sm:$0xff]
  %v218 = vadd.f32 %v210, %v216
  %v219 = vadd.f32 %v213, %v217
  %v220 = vmul.f32 %v218, 0.5
  %v221 = vmul.f32 %v219, 0.5
  %v222 = vmul.f32 %v218, 0.70710677
  %v223 = vmul.f32 %v219, 0.70710677
  %v224 = vand.u32 2147483647, %v222
  %v225 = vand.u32 2147483647, %v223
  %v226 = vmul.f32 %v224, 0.3275911
  %v227 = vmul.f32 %v225, 0.3275911
  %v228 = vadd.f32 %v226, 1.0
  %v229 = vadd.f32 %v227, 1.0
  %v230 = vrcp.pop %v228
  %v231 = vmul.f32 1.0, %v230
  %v232 = vrcp.pop %v229
  %v233 = vmul.f32 1.0, %v232
  %v234 = vmul.f32 %v231, 1.0614054
  %v235 = vmul.f32 %v233, 1.0614054
  %v236 = vadd.f32 %v234, -1.4531521
  %v237 = vadd.f32 %v235, -1.4531521
  %v238 = vmul.f32 %v236, %v231
  %v239 = vmul.f32 %v237, %v233
  %v240 = vadd.f32 %v238, 1.4214138
  %v241 = vadd.f32 %v239, 1.4214138
  %v242 = vmul.f32 %v240, %v231
  %v243 = vmul.f32 %v241, %v233
  %v244 = vadd.f32 %v242, -0.28449672
  %v245 = vadd.f32 %v243, -0.28449672
  %v246 = vmul.f32 %v244, %v231
  %v247 = vmul.f32 %v245, %v233
  %v248 = vadd.f32 %v246, 0.2548296
  %v249 = vadd.f32 %v247, 0.2548296
  %v250 = vmul.f32 %v248, %v231
  %v251 = vmul.f32 %v249, %v233
  %v252 = vsub.f32 0.0, %v224
  %v253 = vsub.f32 0.0, %v225
  %v254 = vmul.f32 %v252, %v224
  %v255 = vmul.f32 %v253, %v225
  %v256 = vmul.f32 %v254, 1.442695
  %v257 = vpow.pop %v256
  %v258 = vmul.f32 %v255, 1.442695
  %v259 = vpow.pop %v258
  %v260 = vmul.f32 %v250, %v257
  %v261 = vmul.f32 %v251, %v259
  %v262 = vsub.f32 1.0, %v260
  %v263 = vsub.f32 1.0, %v261
  %vm264 = vcmp.ge.f32.partialorder %v222, 0.0
  %vm265 = vcmp.ge.f32.partialorder %v223, 0.0
  %v266 = vsub.f32 0.0, %v262
  %v267 = vsub.f32 0.0, %v263
  %v268 = vsel %vm264, %v262, %v266
  %v269 = vsel %vm265, %v263, %v267
  %v270 = vadd.f32 %v268, 1.0
  %v271 = vadd.f32 %v269, 1.0
  %v272 = vmul.f32 %v220, %v270
  %v273 = vmul.f32 %v221, %v271
  %v274 = vld [vmem:[%s6] sm:$0x1]
  %v275 = vld [vmem:[%s7] sm:$0x1]
  %v276 = vsel %vm171, %v272, 0.0
  %277 = vadd.xlane.f32.xlu0 %v276
  %v278 = vpop.xlane.xlu0 %277
  %v279 = vsel %vm171, %v273, 0.0
  %280 = vadd.xlane.f32.xlu0 %v279
  %v281 = vpop.xlane.xlu0 %280
  %v282 = vrcp.pop 32.0
  %v283 = vmul.f32 %v278, %v282
  %v284 = vmul.f32 %v281, %v282
  %v285 = vsub.f32 %v272, %v283
  %v286 = vsub.f32 %v273, %v284
  %v287 = vmul.f32 %v285, %v285
  %v288 = vmul.f32 %v286, %v286
  %v289 = vsel %vm171, %v287, 0.0
  %290 = vadd.xlane.f32.xlu0 %v289
  %v291 = vpop.xlane.xlu0 %290
  %v292 = vsel %vm171, %v288, 0.0
  %293 = vadd.xlane.f32.xlu0 %v292
  %v294 = vpop.xlane.xlu0 %293
  %v295 = vmul.f32 %v291, %v282
  %v296 = vmul.f32 %v294, %v282
  %v297 = vadd.f32 %v295, 1e-05
  %v298 = vadd.f32 %v296, 1e-05
  %v299 = vrsqrt.pop %v297
  %v300 = vrsqrt.pop %v298
  %v301 = vmul.f32 %v285, %v299
  %v302 = vmul.f32 %v286, %v300
  %v304 = vlaneseq
  %v305 = vshrl.u32 %v304, 7
  %v306 = vsub.s32 0, %v305
  %v307 = vrot.slane %v274, %v306
  %v309 = vmul.f32 %v301, %v307
  %v310 = vmul.f32 %v302, %v307
  %v312 = vlaneseq
  %v313 = vshrl.u32 %v312, 7
  %v314 = vsub.s32 0, %v313
  %v315 = vrot.slane %v275, %v314
  %v317 = vadd.f32 %v309, %v315
  %v318 = vadd.f32 %v310, %v315
  %v319 = vld [vmem:[%s2] sm:$0xff]
  %v320 = vld [vmem:[%s2 + $0x8] sm:$0xff]
  %v321 = vpack.c.bf16 %v318, %v317
  %v322 = vld [vmem:[%s8] sm:$0xf]
  %v323 = vld [vmem:[%s8 + $0x4] sm:$0xf]
  %v324 = vld [vmem:[%s8 + $0x8] sm:$0xf]
  %v325 = vld [vmem:[%s8 + $0xc] sm:$0xf]
  %v326 = vld [vmem:[%s9] sm:$0x1]
  %v328 = vlaneseq
  %v329 = vshrl.u32 %v328, 7
  %v330 = vsub.s32 0, %v329
  %v331 = vrot.slane %v326, %v330
  %v337 = vunpack.c.l.b16 %v322
  %v338 = vunpack.c.l.b16 %v323
  %v339 = vunpack.c.l.b16 %v324
  %v340 = vunpack.c.l.b16 %v325
  %v341 = vpack.c.b16 %v338, %v337
  %v342 = vpack.c.b16 %v340, %v339
  %v346 = vsel %vm171, %v321, 0
  %348 = vmatprep.subr.bf16.mxu0 0
  %349 = vmatpush1.bf16.msra.mxu0 %v341
  %350 = vmatprep.subr.bf16.mxu0 0
  %351 = vmatpush1.bf16.msra.mxu0 %v342
  %352 = vmatprep.subr.bf16.mxu0 0
  %353 = vmatpush1.bf16.msra.mxu0 0
  %354 = vmatprep.subr.bf16.mxu0 0
  %355 = vmatpush1.bf16.msra.mxu0 0
  %356 = vmatprep.subr.bf16.mxu0 0
  %357 = vmatpush1.bf16.msra.mxu0 0
  %358 = vmatprep.subr.bf16.mxu0 0
  %359 = vmatpush1.bf16.msra.mxu0 0
  %360 = vmatprep.subr.bf16.mxu0 0
  %361 = vmatpush1.bf16.msra.mxu0 0
  %362 = vmatprep.subr.bf16.mxu0 0
  %363 = vmatpush1.bf16.msra.mxu0 0
  %364 = vmatprep.subr.bf16.mxu0 0
  %365 = vmatpush1.bf16.msra.mxu0 0
  %366 = vmatprep.subr.bf16.mxu0 0
  %367 = vmatpush1.bf16.msra.mxu0 0
  %368 = vmatprep.subr.bf16.mxu0 0
  %369 = vmatpush1.bf16.msra.mxu0 0
  %370 = vmatprep.subr.bf16.mxu0 0
  %371 = vmatpush1.bf16.msra.mxu0 0
  %372 = vmatprep.subr.bf16.mxu0 0
  %373 = vmatpush1.bf16.msra.mxu0 0
  %374 = vmatprep.subr.bf16.mxu0 0
  %375 = vmatpush1.bf16.msra.mxu0 0
  %376 = vmatprep.subr.bf16.mxu0 0
  %377 = vmatpush1.bf16.msra.mxu0 0
  %378 = vmatprep.subr.bf16.mxu0 0
  %379 = vmatpush1.bf16.msra.mxu0 0
  %380 = vmatprep.mubr.bf16.mxu0 0
  %381 = vmatmul.mubr.bf16.gmra.mrb[0].mxu0 %v346
  %v382 = vpop.f32.mrb[0].mxu0
  %v383 = vadd.f32 %v331, %v382
  %v384 = vpop.f32.mrb[0].mxu0
  %v385 = vpop.f32.mrb[0].mxu0
  %v386 = vadd.f32 %v331, %v385
  %v387 = vpop.f32.mrb[0].mxu0
  %388 = vdwg.mxu0
  %v389 = vpack.c.bf16 %v386, %v383
  %391 = vrot.lane.b32.xlu0 %v389, 96
  %v392 = vpop.permute.xlu0 %391
  %vm393 = vcmask 64512
  %v395 = vsel %vm393, %v389, 0
  %v398 = vsel %vm393, %v392, 0
  %400 = vmatprep.subr.bf16.mxu0 0
  %401 = vmatpush1.bf16.xpose.msra.mxu0 %v398
  %402 = vmatprep.subr.bf16.mxu0 0
  %403 = vmatpush1.bf16.xpose.msra.mxu0 0
  %404 = vmatprep.subr.bf16.mxu0 0
  %405 = vmatpush1.bf16.xpose.msra.mxu0 0
  %406 = vmatprep.subr.bf16.mxu0 0
  %407 = vmatpush1.bf16.xpose.msra.mxu0 0
  %408 = vmatprep.subr.bf16.mxu0 0
  %409 = vmatpush1.bf16.xpose.msra.mxu0 0
  %410 = vmatprep.subr.bf16.mxu0 0
  %411 = vmatpush1.bf16.xpose.msra.mxu0 0
  %412 = vmatprep.subr.bf16.mxu0 0
  %413 = vmatpush1.bf16.xpose.msra.mxu0 0
  %414 = vmatprep.subr.bf16.mxu0 0
  %415 = vmatpush1.bf16.xpose.msra.mxu0 0
  %416 = vmatprep.subr.bf16.mxu0 0
  %417 = vmatpush1.bf16.xpose.msra.mxu0 0
  %418 = vmatprep.subr.bf16.mxu0 0
  %419 = vmatpush1.bf16.xpose.msra.mxu0 0
  %420 = vmatprep.subr.bf16.mxu0 0
  %421 = vmatpush1.bf16.xpose.msra.mxu0 0
  %422 = vmatprep.subr.bf16.mxu0 0
  %423 = vmatpush1.bf16.xpose.msra.mxu0 0
  %424 = vmatprep.subr.bf16.mxu0 0
  %425 = vmatpush1.bf16.xpose.msra.mxu0 0
  %426 = vmatprep.subr.bf16.mxu0 0
  %427 = vmatpush1.bf16.xpose.msra.mxu0 0
  %428 = vmatprep.subr.bf16.mxu0 0
  %429 = vmatpush1.bf16.xpose.msra.mxu0 0
  %430 = vmatprep.subr.bf16.mxu0 0
  %431 = vmatpush1.bf16.xpose.msra.mxu0 0
  %432 = vmatprep.mubr.bf16.mxu0 0
  %433 = vmatmul.mubr.bf16.gmra.mrb[0].mxu0 %v395
  %v434 = vpop.f32.mrb[0].mxu0
  %v435 = vadd.f32 %v319, %v434
  %v436 = vpop.f32.mrb[0].mxu0
  %v437 = vpop.f32.mrb[0].mxu0
  %v438 = vadd.f32 %v320, %v437
  %v439 = vpop.f32.mrb[0].mxu0
  %440 = vdwg.mxu0
  %vm441 = vcmask 130048
  %v442 = vsel %vm441, %v435, -inf
  %443 = vmax.xlane.f32.xlu0 %v442
  %v444 = vpop.xlane.xlu0 %443
  %v445 = vsel %vm441, %v438, -inf
  %446 = vmax.xlane.f32.xlu0 %v445
  %v447 = vpop.xlane.xlu0 %446
  %v448 = vsub.f32 %v435, %v444
  %v449 = vsub.f32 %v438, %v447
  %v450 = vmul.f32 %v448, 1.442695
  %v451 = vpow.pop %v450
  %v452 = vmul.f32 %v449, 1.442695
  %v453 = vpow.pop %v452
  %v454 = vsel %vm441, %v451, 0.0
  %455 = vadd.xlane.f32.xlu0 %v454
  %v456 = vpop.xlane.xlu0 %455
  %v457 = vsel %vm441, %v453, 0.0
  %458 = vadd.xlane.f32.xlu0 %v457
  %v459 = vpop.xlane.xlu0 %458
  %v460 = vrcp.pop %v456
  %v461 = vmul.f32 %v451, %v460
  %v462 = vrcp.pop %v459
  %v463 = vmul.f32 %v453, %v462
  %v464 = vpack.c.bf16 %v463, %v461
  %465 = vrot.lane.b32.xlu0 %v389, 64
  %v466 = vpop.permute.xlu0 %465
  %v469 = vsel %vm441, %v464, 0
  %471 = vmatprep.subr.bf16.mxu0 0
  %472 = vmatpush1.bf16.msra.mxu0 %v466
  %473 = vmatprep.subr.bf16.mxu0 0
  %474 = vmatpush1.bf16.msra.mxu0 0
  %475 = vmatprep.subr.bf16.mxu0 0
  %476 = vmatpush1.bf16.msra.mxu0 0
  %477 = vmatprep.subr.bf16.mxu0 0
  %478 = vmatpush1.bf16.msra.mxu0 0
  %479 = vmatprep.subr.bf16.mxu0 0
  %480 = vmatpush1.bf16.msra.mxu0 0
  %481 = vmatprep.subr.bf16.mxu0 0
  %482 = vmatpush1.bf16.msra.mxu0 0
  %483 = vmatprep.subr.bf16.mxu0 0
  %484 = vmatpush1.bf16.msra.mxu0 0
  %485 = vmatprep.subr.bf16.mxu0 0
  %486 = vmatpush1.bf16.msra.mxu0 0
  %487 = vmatprep.subr.bf16.mxu0 0
  %488 = vmatpush1.bf16.msra.mxu0 0
  %489 = vmatprep.subr.bf16.mxu0 0
  %490 = vmatpush1.bf16.msra.mxu0 0
  %491 = vmatprep.subr.bf16.mxu0 0
  %492 = vmatpush1.bf16.msra.mxu0 0
  %493 = vmatprep.subr.bf16.mxu0 0
  %494 = vmatpush1.bf16.msra.mxu0 0
  %495 = vmatprep.subr.bf16.mxu0 0
  %496 = vmatpush1.bf16.msra.mxu0 0
  %497 = vmatprep.subr.bf16.mxu0 0
  %498 = vmatpush1.bf16.msra.mxu0 0
  %499 = vmatprep.subr.bf16.mxu0 0
  %500 = vmatpush1.bf16.msra.mxu0 0
  %501 = vmatprep.subr.bf16.mxu0 0
  %502 = vmatpush1.bf16.msra.mxu0 0
  %503 = vmatprep.mubr.bf16.mxu0 0
  %504 = vmatmul.mubr.bf16.gmra.mrb[0].mxu0 %v469
  %v505 = vpop.f32.mrb[0].mxu0
  %v506 = vadd.f32 0.0, %v505
  %v507 = vpop.f32.mrb[0].mxu0
  %v508 = vpop.f32.mrb[0].mxu0
  %v509 = vadd.f32 0.0, %v508
  %v510 = vpop.f32.mrb[0].mxu0
  %511 = vdwg.mxu0
  %512 = vrot.lane.b32.xlu0 %v389, 120
  %v513 = vpop.permute.xlu0 %512
  %514 = vrot.lane.b32.xlu0 %v389, 88
  %v515 = vpop.permute.xlu0 %514
  %v517 = vsel %vm393, %v513, 0
  %v520 = vsel %vm393, %v515, 0
  %522 = vmatprep.subr.bf16.mxu0 0
  %523 = vmatpush1.bf16.xpose.msra.mxu0 %v520
  %524 = vmatprep.subr.bf16.mxu0 0
  %525 = vmatpush1.bf16.xpose.msra.mxu0 0
  %526 = vmatprep.subr.bf16.mxu0 0
  %527 = vmatpush1.bf16.xpose.msra.mxu0 0
  %528 = vmatprep.subr.bf16.mxu0 0
  %529 = vmatpush1.bf16.xpose.msra.mxu0 0
  %530 = vmatprep.subr.bf16.mxu0 0
  %531 = vmatpush1.bf16.xpose.msra.mxu0 0
  %532 = vmatprep.subr.bf16.mxu0 0
  %533 = vmatpush1.bf16.xpose.msra.mxu0 0
  %534 = vmatprep.subr.bf16.mxu0 0
  %535 = vmatpush1.bf16.xpose.msra.mxu0 0
  %536 = vmatprep.subr.bf16.mxu0 0
  %537 = vmatpush1.bf16.xpose.msra.mxu0 0
  %538 = vmatprep.subr.bf16.mxu0 0
  %539 = vmatpush1.bf16.xpose.msra.mxu0 0
  %540 = vmatprep.subr.bf16.mxu0 0
  %541 = vmatpush1.bf16.xpose.msra.mxu0 0
  %542 = vmatprep.subr.bf16.mxu0 0
  %543 = vmatpush1.bf16.xpose.msra.mxu0 0
  %544 = vmatprep.subr.bf16.mxu0 0
  %545 = vmatpush1.bf16.xpose.msra.mxu0 0
  %546 = vmatprep.subr.bf16.mxu0 0
  %547 = vmatpush1.bf16.xpose.msra.mxu0 0
  %548 = vmatprep.subr.bf16.mxu0 0
  %549 = vmatpush1.bf16.xpose.msra.mxu0 0
  %550 = vmatprep.subr.bf16.mxu0 0
  %551 = vmatpush1.bf16.xpose.msra.mxu0 0
  %552 = vmatprep.subr.bf16.mxu0 0
  %553 = vmatpush1.bf16.xpose.msra.mxu0 0
  %554 = vmatprep.mubr.bf16.mxu0 0
  %555 = vmatmul.mubr.bf16.gmra.mrb[0].mxu0 %v517
  %v556 = vpop.f32.mrb[0].mxu0
  %v557 = vadd.f32 %v319, %v556
  %v558 = vpop.f32.mrb[0].mxu0
  %v559 = vpop.f32.mrb[0].mxu0
  %v560 = vadd.f32 %v320, %v559
  %v561 = vpop.f32.mrb[0].mxu0
  %562 = vdwg.mxu0
  %v563 = vsel %vm441, %v557, -inf
  %564 = vmax.xlane.f32.xlu0 %v563
  %v565 = vpop.xlane.xlu0 %564
  %v566 = vsel %vm441, %v560, -inf
  %567 = vmax.xlane.f32.xlu0 %v566
  %v568 = vpop.xlane.xlu0 %567
  %v569 = vsub.f32 %v557, %v565
  %v570 = vsub.f32 %v560, %v568
  %v571 = vmul.f32 %v569, 1.442695
  %v572 = vpow.pop %v571
  %v573 = vmul.f32 %v570, 1.442695
  %v574 = vpow.pop %v573
  %v575 = vsel %vm441, %v572, 0.0
  %576 = vadd.xlane.f32.xlu0 %v575
  %v577 = vpop.xlane.xlu0 %576
  %v578 = vsel %vm441, %v574, 0.0
  %579 = vadd.xlane.f32.xlu0 %v578
  %v580 = vpop.xlane.xlu0 %579
  %v581 = vrcp.pop %v577
  %v582 = vmul.f32 %v572, %v581
  %v583 = vrcp.pop %v580
  %v584 = vmul.f32 %v574, %v583
  %v585 = vpack.c.bf16 %v584, %v582
  %586 = vrot.lane.b32.xlu0 %v389, 56
  %v587 = vpop.permute.xlu0 %586
  %v590 = vsel %vm441, %v585, 0
  %592 = vmatprep.subr.bf16.mxu0 0
  %593 = vmatpush1.bf16.msra.mxu0 %v587
  %594 = vmatprep.subr.bf16.mxu0 0
  %595 = vmatpush1.bf16.msra.mxu0 0
  %596 = vmatprep.subr.bf16.mxu0 0
  %597 = vmatpush1.bf16.msra.mxu0 0
  %598 = vmatprep.subr.bf16.mxu0 0
  %599 = vmatpush1.bf16.msra.mxu0 0
  %600 = vmatprep.subr.bf16.mxu0 0
  %601 = vmatpush1.bf16.msra.mxu0 0
  %602 = vmatprep.subr.bf16.mxu0 0
  %603 = vmatpush1.bf16.msra.mxu0 0
  %604 = vmatprep.subr.bf16.mxu0 0
  %605 = vmatpush1.bf16.msra.mxu0 0
  %606 = vmatprep.subr.bf16.mxu0 0
  %607 = vmatpush1.bf16.msra.mxu0 0
  %608 = vmatprep.subr.bf16.mxu0 0
  %609 = vmatpush1.bf16.msra.mxu0 0
  %610 = vmatprep.subr.bf16.mxu0 0
  %611 = vmatpush1.bf16.msra.mxu0 0
  %612 = vmatprep.subr.bf16.mxu0 0
  %613 = vmatpush1.bf16.msra.mxu0 0
  %614 = vmatprep.subr.bf16.mxu0 0
  %615 = vmatpush1.bf16.msra.mxu0 0
  %616 = vmatprep.subr.bf16.mxu0 0
  %617 = vmatpush1.bf16.msra.mxu0 0
  %618 = vmatprep.subr.bf16.mxu0 0
  %619 = vmatpush1.bf16.msra.mxu0 0
  %620 = vmatprep.subr.bf16.mxu0 0
  %621 = vmatpush1.bf16.msra.mxu0 0
  %622 = vmatprep.subr.bf16.mxu0 0
  %623 = vmatpush1.bf16.msra.mxu0 0
  %624 = vmatprep.mubr.bf16.mxu0 0
  %625 = vmatmul.mubr.bf16.gmra.mrb[0].mxu0 %v590
  %v626 = vpop.f32.mrb[0].mxu0
  %v627 = vadd.f32 0.0, %v626
  %v628 = vpop.f32.mrb[0].mxu0
  %v629 = vpop.f32.mrb[0].mxu0
  %v630 = vadd.f32 0.0, %v629
  %v631 = vpop.f32.mrb[0].mxu0
  %632 = vdwg.mxu0
  %633 = vrot.lane.b32.xlu0 %v389, 112
  %v634 = vpop.permute.xlu0 %633
  %635 = vrot.lane.b32.xlu0 %v389, 80
  %v636 = vpop.permute.xlu0 %635
  %v638 = vsel %vm393, %v634, 0
  %v641 = vsel %vm393, %v636, 0
  %643 = vmatprep.subr.bf16.mxu0 0
  %644 = vmatpush1.bf16.xpose.msra.mxu0 %v641
  %645 = vmatprep.subr.bf16.mxu0 0
  %646 = vmatpush1.bf16.xpose.msra.mxu0 0
  %647 = vmatprep.subr.bf16.mxu0 0
  %648 = vmatpush1.bf16.xpose.msra.mxu0 0
  %649 = vmatprep.subr.bf16.mxu0 0
  %650 = vmatpush1.bf16.xpose.msra.mxu0 0
  %651 = vmatprep.subr.bf16.mxu0 0
  %652 = vmatpush1.bf16.xpose.msra.mxu0 0
  %653 = vmatprep.subr.bf16.mxu0 0
  %654 = vmatpush1.bf16.xpose.msra.mxu0 0
  %655 = vmatprep.subr.bf16.mxu0 0
  %656 = vmatpush1.bf16.xpose.msra.mxu0 0
  %657 = vmatprep.subr.bf16.mxu0 0
  %658 = vmatpush1.bf16.xpose.msra.mxu0 0
  %659 = vmatprep.subr.bf16.mxu0 0
  %660 = vmatpush1.bf16.xpose.msra.mxu0 0
  %661 = vmatprep.subr.bf16.mxu0 0
  %662 = vmatpush1.bf16.xpose.msra.mxu0 0
  %663 = vmatprep.subr.bf16.mxu0 0
  %664 = vmatpush1.bf16.xpose.msra.mxu0 0
  %665 = vmatprep.subr.bf16.mxu0 0
  %666 = vmatpush1.bf16.xpose.msra.mxu0 0
  %667 = vmatprep.subr.bf16.mxu0 0
  %668 = vmatpush1.bf16.xpose.msra.mxu0 0
  %669 = vmatprep.subr.bf16.mxu0 0
  %670 = vmatpush1.bf16.xpose.msra.mxu0 0
  %671 = vmatprep.subr.bf16.mxu0 0
  %672 = vmatpush1.bf16.xpose.msra.mxu0 0
  %673 = vmatprep.subr.bf16.mxu0 0
  %674 = vmatpush1.bf16.xpose.msra.mxu0 0
  %675 = vmatprep.mubr.bf16.mxu0 0
  %676 = vmatmul.mubr.bf16.gmra.mrb[0].mxu0 %v638
  %v677 = vpop.f32.mrb[0].mxu0
  %v678 = vadd.f32 %v319, %v677
  %v679 = vpop.f32.mrb[0].mxu0
  %v680 = vpop.f32.mrb[0].mxu0
  %v681 = vadd.f32 %v320, %v680
  %v682 = vpop.f32.mrb[0].mxu0
  %683 = vdwg.mxu0
  %v684 = vsel %vm441, %v678, -inf
  %685 = vmax.xlane.f32.xlu0 %v684
  %v686 = vpop.xlane.xlu0 %685
  %v687 = vsel %vm441, %v681, -inf
  %688 = vmax.xlane.f32.xlu0 %v687
  %v689 = vpop.xlane.xlu0 %688
  %v690 = vsub.f32 %v678, %v686
  %v691 = vsub.f32 %v681, %v689
  %v692 = vmul.f32 %v690, 1.442695
  %v693 = vpow.pop %v692
  %v694 = vmul.f32 %v691, 1.442695
  %v695 = vpow.pop %v694
  %v696 = vsel %vm441, %v693, 0.0
  %697 = vadd.xlane.f32.xlu0 %v696
  %v698 = vpop.xlane.xlu0 %697
  %v699 = vsel %vm441, %v695, 0.0
  %700 = vadd.xlane.f32.xlu0 %v699
  %v701 = vpop.xlane.xlu0 %700
  %v702 = vrcp.pop %v698
  %v703 = vmul.f32 %v693, %v702
  %v704 = vrcp.pop %v701
  %v705 = vmul.f32 %v695, %v704
  %v706 = vpack.c.bf16 %v705, %v703
  %707 = vrot.lane.b32.xlu0 %v389, 48
  %v708 = vpop.permute.xlu0 %707
  %v711 = vsel %vm441, %v706, 0
  %713 = vmatprep.subr.bf16.mxu0 0
  %714 = vmatpush1.bf16.msra.mxu0 %v708
  %715 = vmatprep.subr.bf16.mxu0 0
  %716 = vmatpush1.bf16.msra.mxu0 0
  %717 = vmatprep.subr.bf16.mxu0 0
  %718 = vmatpush1.bf16.msra.mxu0 0
  %719 = vmatprep.subr.bf16.mxu0 0
  %720 = vmatpush1.bf16.msra.mxu0 0
  %721 = vmatprep.subr.bf16.mxu0 0
  %722 = vmatpush1.bf16.msra.mxu0 0
  %723 = vmatprep.subr.bf16.mxu0 0
  %724 = vmatpush1.bf16.msra.mxu0 0
  %725 = vmatprep.subr.bf16.mxu0 0
  %726 = vmatpush1.bf16.msra.mxu0 0
  %727 = vmatprep.subr.bf16.mxu0 0
  %728 = vmatpush1.bf16.msra.mxu0 0
  %729 = vmatprep.subr.bf16.mxu0 0
  %730 = vmatpush1.bf16.msra.mxu0 0
  %731 = vmatprep.subr.bf16.mxu0 0
  %732 = vmatpush1.bf16.msra.mxu0 0
  %733 = vmatprep.subr.bf16.mxu0 0
  %734 = vmatpush1.bf16.msra.mxu0 0
  %735 = vmatprep.subr.bf16.mxu0 0
  %736 = vmatpush1.bf16.msra.mxu0 0
  %737 = vmatprep.subr.bf16.mxu0 0
  %738 = vmatpush1.bf16.msra.mxu0 0
  %739 = vmatprep.subr.bf16.mxu0 0
  %740 = vmatpush1.bf16.msra.mxu0 0
  %741 = vmatprep.subr.bf16.mxu0 0
  %742 = vmatpush1.bf16.msra.mxu0 0
  %743 = vmatprep.subr.bf16.mxu0 0
  %744 = vmatpush1.bf16.msra.mxu0 0
  %745 = vmatprep.mubr.bf16.mxu0 0
  %746 = vmatmul.mubr.bf16.gmra.mrb[0].mxu0 %v711
  %v747 = vpop.f32.mrb[0].mxu0
  %v748 = vadd.f32 0.0, %v747
  %v749 = vpop.f32.mrb[0].mxu0
  %v750 = vpop.f32.mrb[0].mxu0
  %v751 = vadd.f32 0.0, %v750
  %v752 = vpop.f32.mrb[0].mxu0
  %753 = vdwg.mxu0
  %754 = vrot.lane.b32.xlu0 %v389, 104
  %v755 = vpop.permute.xlu0 %754
  %756 = vrot.lane.b32.xlu0 %v389, 72
  %v757 = vpop.permute.xlu0 %756
  %v759 = vsel %vm393, %v755, 0
  %v762 = vsel %vm393, %v757, 0
  %764 = vmatprep.subr.bf16.mxu0 0
  %765 = vmatpush1.bf16.xpose.msra.mxu0 %v762
  %766 = vmatprep.subr.bf16.mxu0 0
  %767 = vmatpush1.bf16.xpose.msra.mxu0 0
  %768 = vmatprep.subr.bf16.mxu0 0
  %769 = vmatpush1.bf16.xpose.msra.mxu0 0
  %770 = vmatprep.subr.bf16.mxu0 0
  %771 = vmatpush1.bf16.xpose.msra.mxu0 0
  %772 = vmatprep.subr.bf16.mxu0 0
  %773 = vmatpush1.bf16.xpose.msra.mxu0 0
  %774 = vmatprep.subr.bf16.mxu0 0
  %775 = vmatpush1.bf16.xpose.msra.mxu0 0
  %776 = vmatprep.subr.bf16.mxu0 0
  %777 = vmatpush1.bf16.xpose.msra.mxu0 0
  %778 = vmatprep.subr.bf16.mxu0 0
  %779 = vmatpush1.bf16.xpose.msra.mxu0 0
  %780 = vmatprep.subr.bf16.mxu0 0
  %781 = vmatpush1.bf16.xpose.msra.mxu0 0
  %782 = vmatprep.subr.bf16.mxu0 0
  %783 = vmatpush1.bf16.xpose.msra.mxu0 0
  %784 = vmatprep.subr.bf16.mxu0 0
  %785 = vmatpush1.bf16.xpose.msra.mxu0 0
  %786 = vmatprep.subr.bf16.mxu0 0
  %787 = vmatpush1.bf16.xpose.msra.mxu0 0
  %788 = vmatprep.subr.bf16.mxu0 0
  %789 = vmatpush1.bf16.xpose.msra.mxu0 0
  %790 = vmatprep.subr.bf16.mxu0 0
  %791 = vmatpush1.bf16.xpose.msra.mxu0 0
  %792 = vmatprep.subr.bf16.mxu0 0
  %793 = vmatpush1.bf16.xpose.msra.mxu0 0
  %794 = vmatprep.subr.bf16.mxu0 0
  %795 = vmatpush1.bf16.xpose.msra.mxu0 0
  %796 = vmatprep.mubr.bf16.mxu0 0
  %797 = vmatmul.mubr.bf16.gmra.mrb[0].mxu0 %v759
  %v798 = vpop.f32.mrb[0].mxu0
  %v799 = vadd.f32 %v319, %v798
  %v800 = vpop.f32.mrb[0].mxu0
  %v801 = vpop.f32.mrb[0].mxu0
  %v802 = vadd.f32 %v320, %v801
  %v803 = vpop.f32.mrb[0].mxu0
  %804 = vdwg.mxu0
  %v805 = vsel %vm441, %v799, -inf
  %806 = vmax.xlane.f32.xlu0 %v805
  %v807 = vpop.xlane.xlu0 %806
  %v808 = vsel %vm441, %v802, -inf
  %809 = vmax.xlane.f32.xlu0 %v808
  %v810 = vpop.xlane.xlu0 %809
  %v811 = vsub.f32 %v799, %v807
  %v812 = vsub.f32 %v802, %v810
  %v813 = vmul.f32 %v811, 1.442695
  %v814 = vpow.pop %v813
  %v815 = vmul.f32 %v812, 1.442695
  %v816 = vpow.pop %v815
  %v817 = vsel %vm441, %v814, 0.0
  %818 = vadd.xlane.f32.xlu0 %v817
  %v819 = vpop.xlane.xlu0 %818
  %v820 = vsel %vm441, %v816, 0.0
  %821 = vadd.xlane.f32.xlu0 %v820
  %v822 = vpop.xlane.xlu0 %821
  %v823 = vrcp.pop %v819
  %v824 = vmul.f32 %v814, %v823
  %v825 = vrcp.pop %v822
  %v826 = vmul.f32 %v816, %v825
  %v827 = vpack.c.bf16 %v826, %v824
  %828 = vrot.lane.b32.xlu0 %v389, 40
  %v829 = vpop.permute.xlu0 %828
  %v832 = vsel %vm441, %v827, 0
  %834 = vmatprep.subr.bf16.mxu0 0
  %835 = vmatpush1.bf16.msra.mxu0 %v829
  %836 = vmatprep.subr.bf16.mxu0 0
  %837 = vmatpush1.bf16.msra.mxu0 0
  %838 = vmatprep.subr.bf16.mxu0 0
  %839 = vmatpush1.bf16.msra.mxu0 0
  %840 = vmatprep.subr.bf16.mxu0 0
  %841 = vmatpush1.bf16.msra.mxu0 0
  %842 = vmatprep.subr.bf16.mxu0 0
  %843 = vmatpush1.bf16.msra.mxu0 0
  %844 = vmatprep.subr.bf16.mxu0 0
  %845 = vmatpush1.bf16.msra.mxu0 0
  %846 = vmatprep.subr.bf16.mxu0 0
  %847 = vmatpush1.bf16.msra.mxu0 0
  %848 = vmatprep.subr.bf16.mxu0 0
  %849 = vmatpush1.bf16.msra.mxu0 0
  %850 = vmatprep.subr.bf16.mxu0 0
  %851 = vmatpush1.bf16.msra.mxu0 0
  %852 = vmatprep.subr.bf16.mxu0 0
  %853 = vmatpush1.bf16.msra.mxu0 0
  %854 = vmatprep.subr.bf16.mxu0 0
  %855 = vmatpush1.bf16.msra.mxu0 0
  %856 = vmatprep.subr.bf16.mxu0 0
  %857 = vmatpush1.bf16.msra.mxu0 0
  %858 = vmatprep.subr.bf16.mxu0 0
  %859 = vmatpush1.bf16.msra.mxu0 0
  %860 = vmatprep.subr.bf16.mxu0 0
  %861 = vmatpush1.bf16.msra.mxu0 0
  %862 = vmatprep.subr.bf16.mxu0 0
  %863 = vmatpush1.bf16.msra.mxu0 0
  %864 = vmatprep.subr.bf16.mxu0 0
  %865 = vmatpush1.bf16.msra.mxu0 0
  %866 = vmatprep.mubr.bf16.mxu0 0
  %867 = vmatmul.mubr.bf16.gmra.mrb[0].mxu0 %v832
  %v868 = vpop.f32.mrb[0].mxu0
  %v869 = vadd.f32 0.0, %v868
  %v870 = vpop.f32.mrb[0].mxu0
  %v871 = vpop.f32.mrb[0].mxu0
  %v872 = vadd.f32 0.0, %v871
  %v873 = vpop.f32.mrb[0].mxu0
  %874 = vdwg.mxu0
  %877 = vrot.lane.b32.xlu0 %v627, 8
  %v878 = vpop.permute.xlu0 %877
  %879 = vrot.lane.b32.xlu0 %v630, 8
  %v880 = vpop.permute.xlu0 %879
  %885 = vrot.lane.b32.xlu0 %v748, 16
  %v886 = vpop.permute.xlu0 %885
  %887 = vrot.lane.b32.xlu0 %v751, 16
  %v888 = vpop.permute.xlu0 %887
  %893 = vrot.lane.b32.xlu0 %v869, 24
  %v894 = vpop.permute.xlu0 %893
  %895 = vrot.lane.b32.xlu0 %v872, 24
  %v896 = vpop.permute.xlu0 %895
  %v899 = vsel %vm393, %v506, %v878
  %v900 = vsel %vm393, %v509, %v880
  %v901 = vsel %vm441, %v899, %v886
  %v902 = vsel %vm441, %v900, %v888
  %vm903 = vcmask 195584
  %v904 = vsel %vm903, %v901, %v894
  %v905 = vsel %vm903, %v902, %v896
  %v906 = vpack.c.bf16 %v905, %v904
  %v907 = vld [vmem:[%s10] sm:$0xf]
  %v908 = vld [vmem:[%s10 + $0x4] sm:$0xf]
  %v909 = vld [vmem:[%s10 + $0x8] sm:$0xf]
  %v910 = vld [vmem:[%s10 + $0xc] sm:$0xf]
  %v911 = vld [vmem:[%s11] sm:$0x1]
  %v913 = vlaneseq
  %v914 = vshrl.u32 %v913, 7
  %v915 = vsub.s32 0, %v914
  %v916 = vrot.slane %v911, %v915
  %v922 = vunpack.c.l.b16 %v907
  %v923 = vunpack.c.l.b16 %v908
  %v924 = vunpack.c.l.b16 %v909
  %v925 = vunpack.c.l.b16 %v910
  %v926 = vpack.c.b16 %v923, %v922
  %v927 = vpack.c.b16 %v925, %v924
  %v931 = vsel %vm171, %v906, 0
  %933 = vmatprep.subr.bf16.mxu0 0
  %934 = vmatpush1.bf16.msra.mxu0 %v926
  %935 = vmatprep.subr.bf16.mxu0 0
  %936 = vmatpush1.bf16.msra.mxu0 %v927
  %937 = vmatprep.subr.bf16.mxu0 0
  %938 = vmatpush1.bf16.msra.mxu0 0
  %939 = vmatprep.subr.bf16.mxu0 0
  %940 = vmatpush1.bf16.msra.mxu0 0
  %941 = vmatprep.subr.bf16.mxu0 0
  %942 = vmatpush1.bf16.msra.mxu0 0
  %943 = vmatprep.subr.bf16.mxu0 0
  %944 = vmatpush1.bf16.msra.mxu0 0
  %945 = vmatprep.subr.bf16.mxu0 0
  %946 = vmatpush1.bf16.msra.mxu0 0
  %947 = vmatprep.subr.bf16.mxu0 0
  %948 = vmatpush1.bf16.msra.mxu0 0
  %949 = vmatprep.subr.bf16.mxu0 0
  %950 = vmatpush1.bf16.msra.mxu0 0
  %951 = vmatprep.subr.bf16.mxu0 0
  %952 = vmatpush1.bf16.msra.mxu0 0
  %953 = vmatprep.subr.bf16.mxu0 0
  %954 = vmatpush1.bf16.msra.mxu0 0
  %955 = vmatprep.subr.bf16.mxu0 0
  %956 = vmatpush1.bf16.msra.mxu0 0
  %957 = vmatprep.subr.bf16.mxu0 0
  %958 = vmatpush1.bf16.msra.mxu0 0
  %959 = vmatprep.subr.bf16.mxu0 0
  %960 = vmatpush1.bf16.msra.mxu0 0
  %961 = vmatprep.subr.bf16.mxu0 0
  %962 = vmatpush1.bf16.msra.mxu0 0
  %963 = vmatprep.subr.bf16.mxu0 0
  %964 = vmatpush1.bf16.msra.mxu0 0
  %965 = vmatprep.mubr.bf16.mxu0 0
  %966 = vmatmul.mubr.bf16.gmra.mrb[0].mxu0 %v931
  %v967 = vpop.f32.mrb[0].mxu0
  %v968 = vadd.f32 %v916, %v967
  %v969 = vpop.f32.mrb[0].mxu0
  %v970 = vpop.f32.mrb[0].mxu0
  %v971 = vadd.f32 %v916, %v970
  %v972 = vpop.f32.mrb[0].mxu0
  %973 = vdwg.mxu0
  %v974 = vadd.f32 %v317, %v968
  %v975 = vadd.f32 %v318, %v971
  %v976 = vld [vmem:[%s16] sm:$0x1]
  %v977 = vld [vmem:[%s17] sm:$0x1]
  %v978 = vsel %vm171, %v974, 0.0
  %979 = vadd.xlane.f32.xlu0 %v978
  %v980 = vpop.xlane.xlu0 %979
  %v981 = vsel %vm171, %v975, 0.0
  %982 = vadd.xlane.f32.xlu0 %v981
  %v983 = vpop.xlane.xlu0 %982
  %v984 = vmul.f32 %v980, %v282
  %v985 = vmul.f32 %v983, %v282
  %v986 = vsub.f32 %v974, %v984
  %v987 = vsub.f32 %v975, %v985
  %v988 = vmul.f32 %v986, %v986
  %v989 = vmul.f32 %v987, %v987
  %v990 = vsel %vm171, %v988, 0.0
  %991 = vadd.xlane.f32.xlu0 %v990
  %v992 = vpop.xlane.xlu0 %991
  %v993 = vsel %vm171, %v989, 0.0
  %994 = vadd.xlane.f32.xlu0 %v993
  %v995 = vpop.xlane.xlu0 %994
  %v996 = vmul.f32 %v992, %v282
  %v997 = vmul.f32 %v995, %v282
  %v998 = vadd.f32 %v996, 1e-05
  %v999 = vadd.f32 %v997, 1e-05
  %v1000 = vrsqrt.pop %v998
  %v1001 = vrsqrt.pop %v999
  %v1002 = vmul.f32 %v986, %v1000
  %v1003 = vmul.f32 %v987, %v1001
  %v1005 = vlaneseq
  %v1006 = vshrl.u32 %v1005, 7
  %v1007 = vsub.s32 0, %v1006
  %v1008 = vrot.slane %v976, %v1007
  %v1010 = vmul.f32 %v1002, %v1008
  %v1011 = vmul.f32 %v1003, %v1008
  %v1013 = vlaneseq
  %v1014 = vshrl.u32 %v1013, 7
  %v1015 = vsub.s32 0, %v1014
  %v1016 = vrot.slane %v977, %v1015
  %v1018 = vadd.f32 %v1010, %v1016
  %v1019 = vadd.f32 %v1011, %v1016
  %v1020 = vpack.c.bf16 %v1019, %v1018
  %v1021 = vld [vmem:[%s12] sm:$0xff]
  %v1022 = vld [vmem:[%s12 + $0x8] sm:$0xff]
  %v1023 = vld [vmem:[%s12 + $0x10] sm:$0xff]
  %v1024 = vld [vmem:[%s12 + $0x18] sm:$0xff]
  %v1025 = vld [vmem:[%s12 + $0x20] sm:$0xff]
  %v1026 = vld [vmem:[%s12 + $0x28] sm:$0xff]
  %v1027 = vld [vmem:[%s12 + $0x30] sm:$0xff]
  %v1028 = vld [vmem:[%s12 + $0x38] sm:$0xff]
  %v1029 = vld [vmem:[%s13] sm:$0xf]
  %v1031 = vlaneseq
  %v1032 = vshrl.u32 %v1031, 7
  %v1033 = vsub.s32 0, %v1032
  %v1034 = vrot.slane %v1029, %v1033
  %v1035 = vlaneseq
  %v1036 = vshrl.u32 %v1035, 7
  %v1037 = vsub.s32 1, %v1036
  %v1038 = vrot.slane %v1029, %v1037
  %v1039 = vlaneseq
  %v1040 = vshrl.u32 %v1039, 7
  %v1041 = vsub.s32 2, %v1040
  %v1042 = vrot.slane %v1029, %v1041
  %v1043 = vlaneseq
  %v1044 = vshrl.u32 %v1043, 7
  %v1045 = vsub.s32 3, %v1044
  %v1046 = vrot.slane %v1029, %v1045
  %v1059 = vunpack.c.l.b16 %v1021
  %v1060 = vunpack.c.h.b16 %v1021
  %v1061 = vunpack.c.l.b16 %v1022
  %v1062 = vunpack.c.h.b16 %v1022
  %v1063 = vunpack.c.l.b16 %v1023
  %v1064 = vunpack.c.h.b16 %v1023
  %v1065 = vunpack.c.l.b16 %v1024
  %v1066 = vunpack.c.h.b16 %v1024
  %v1067 = vunpack.c.l.b16 %v1025
  %v1068 = vunpack.c.h.b16 %v1025
  %v1069 = vunpack.c.l.b16 %v1026
  %v1070 = vunpack.c.h.b16 %v1026
  %v1071 = vunpack.c.l.b16 %v1027
  %v1072 = vunpack.c.h.b16 %v1027
  %v1073 = vunpack.c.l.b16 %v1028
  %v1074 = vunpack.c.h.b16 %v1028
  %v1075 = vpack.c.b16 %v1063, %v1059
  %v1076 = vpack.c.b16 %v1064, %v1060
  %v1077 = vpack.c.b16 %v1065, %v1061
  %v1078 = vpack.c.b16 %v1066, %v1062
  %v1079 = vpack.c.b16 %v1071, %v1067
  %v1080 = vpack.c.b16 %v1072, %v1068
  %v1081 = vpack.c.b16 %v1073, %v1069
  %v1082 = vpack.c.b16 %v1074, %v1070
  %v1092 = vsel %vm171, %v1020, 0
  %1094 = vmatprep.subr.bf16.mxu0 %v1076
  %1095 = vmatpush1.bf16.msra.mxu0 %v1075
  %1096 = vmatprep.subr.bf16.mxu0 %v1080
  %1097 = vmatpush1.bf16.msra.mxu0 %v1079
  %1098 = vmatprep.subr.bf16.mxu0 0
  %1099 = vmatpush1.bf16.msra.mxu0 0
  %1100 = vmatprep.subr.bf16.mxu0 0
  %1101 = vmatpush1.bf16.msra.mxu0 0
  %1102 = vmatprep.subr.bf16.mxu0 0
  %1103 = vmatpush1.bf16.msra.mxu0 0
  %1104 = vmatprep.subr.bf16.mxu0 0
  %1105 = vmatpush1.bf16.msra.mxu0 0
  %1106 = vmatprep.subr.bf16.mxu0 0
  %1107 = vmatpush1.bf16.msra.mxu0 0
  %1108 = vmatprep.subr.bf16.mxu0 0
  %1109 = vmatpush1.bf16.msra.mxu0 0
  %1110 = vmatprep.subr.bf16.mxu0 0
  %1111 = vmatpush1.bf16.msra.mxu0 0
  %1112 = vmatprep.subr.bf16.mxu0 0
  %1113 = vmatpush1.bf16.msra.mxu0 0
  %1114 = vmatprep.subr.bf16.mxu0 0
  %1115 = vmatpush1.bf16.msra.mxu0 0
  %1116 = vmatprep.subr.bf16.mxu0 0
  %1117 = vmatpush1.bf16.msra.mxu0 0
  %1118 = vmatprep.subr.bf16.mxu0 0
  %1119 = vmatpush1.bf16.msra.mxu0 0
  %1120 = vmatprep.subr.bf16.mxu0 0
  %1121 = vmatpush1.bf16.msra.mxu0 0
  %1122 = vmatprep.subr.bf16.mxu0 0
  %1123 = vmatpush1.bf16.msra.mxu0 0
  %1124 = vmatprep.subr.bf16.mxu0 0
  %1125 = vmatpush1.bf16.msra.mxu0 0
  %1126 = vmatprep.mubr.bf16.mxu0 0
  %1127 = vmatmul.mubr.bf16.gmra.mrb[0].mxu0 %v1092
  %v1128 = vpop.f32.mrb[0].mxu0
  %v1129 = vadd.f32 %v1034, %v1128
  %v1130 = vpop.f32.mrb[0].mxu0
  %v1131 = vadd.f32 %v1038, %v1130
  %v1132 = vpop.f32.mrb[0].mxu0
  %v1133 = vadd.f32 %v1034, %v1132
  %v1134 = vpop.f32.mrb[0].mxu0
  %v1135 = vadd.f32 %v1038, %v1134
  %1136 = vdwg.mxu0
  %1137 = vmatprep.subr.bf16.mxu0 %v1078
  %1138 = vmatpush1.bf16.msra.mxu0 %v1077
  %1139 = vmatprep.subr.bf16.mxu0 %v1082
  %1140 = vmatpush1.bf16.msra.mxu0 %v1081
  %1141 = vmatprep.subr.bf16.mxu0 0
  %1142 = vmatpush1.bf16.msra.mxu0 0
  %1143 = vmatprep.subr.bf16.mxu0 0
  %1144 = vmatpush1.bf16.msra.mxu0 0
  %1145 = vmatprep.subr.bf16.mxu0 0
  %1146 = vmatpush1.bf16.msra.mxu0 0
  %1147 = vmatprep.subr.bf16.mxu0 0
  %1148 = vmatpush1.bf16.msra.mxu0 0
  %1149 = vmatprep.subr.bf16.mxu0 0
  %1150 = vmatpush1.bf16.msra.mxu0 0
  %1151 = vmatprep.subr.bf16.mxu0 0
  %1152 = vmatpush1.bf16.msra.mxu0 0
  %1153 = vmatprep.subr.bf16.mxu0 0
  %1154 = vmatpush1.bf16.msra.mxu0 0
  %1155 = vmatprep.subr.bf16.mxu0 0
  %1156 = vmatpush1.bf16.msra.mxu0 0
  %1157 = vmatprep.subr.bf16.mxu0 0
  %1158 = vmatpush1.bf16.msra.mxu0 0
  %1159 = vmatprep.subr.bf16.mxu0 0
  %1160 = vmatpush1.bf16.msra.mxu0 0
  %1161 = vmatprep.subr.bf16.mxu0 0
  %1162 = vmatpush1.bf16.msra.mxu0 0
  %1163 = vmatprep.subr.bf16.mxu0 0
  %1164 = vmatpush1.bf16.msra.mxu0 0
  %1165 = vmatprep.subr.bf16.mxu0 0
  %1166 = vmatpush1.bf16.msra.mxu0 0
  %1167 = vmatprep.subr.bf16.mxu0 0
  %1168 = vmatpush1.bf16.msra.mxu0 0
  %1169 = vmatprep.mubr.bf16.mxu0 0
  %1170 = vmatmul.mubr.bf16.gmra.mrb[0].mxu0 %v1092
  %v1171 = vpop.f32.mrb[0].mxu0
  %v1172 = vadd.f32 %v1042, %v1171
  %v1173 = vpop.f32.mrb[0].mxu0
  %v1174 = vadd.f32 %v1046, %v1173
  %v1175 = vpop.f32.mrb[0].mxu0
  %v1176 = vadd.f32 %v1042, %v1175
  %v1177 = vpop.f32.mrb[0].mxu0
  %v1178 = vadd.f32 %v1046, %v1177
  %1179 = vdwg.mxu0
  %v1180 = vmul.f32 %v1129, 0.5
  %v1181 = vmul.f32 %v1131, 0.5
  %v1182 = vmul.f32 %v1172, 0.5
  %v1183 = vmul.f32 %v1174, 0.5
  %v1184 = vmul.f32 %v1133, 0.5
  %v1185 = vmul.f32 %v1135, 0.5
  %v1186 = vmul.f32 %v1176, 0.5
  %v1187 = vmul.f32 %v1178, 0.5
  %v1188 = vmul.f32 %v1129, 0.70710677
  %v1189 = vmul.f32 %v1131, 0.70710677
  %v1190 = vmul.f32 %v1172, 0.70710677
  %v1191 = vmul.f32 %v1174, 0.70710677
  %v1192 = vmul.f32 %v1133, 0.70710677
  %v1193 = vmul.f32 %v1135, 0.70710677
  %v1194 = vmul.f32 %v1176, 0.70710677
  %v1195 = vmul.f32 %v1178, 0.70710677
  %v1196 = vand.u32 2147483647, %v1188
  %v1197 = vand.u32 2147483647, %v1189
  %v1198 = vand.u32 2147483647, %v1190
  %v1199 = vand.u32 2147483647, %v1191
  %v1200 = vand.u32 2147483647, %v1192
  %v1201 = vand.u32 2147483647, %v1193
  %v1202 = vand.u32 2147483647, %v1194
  %v1203 = vand.u32 2147483647, %v1195
  %v1204 = vmul.f32 %v1196, 0.3275911
  %v1205 = vmul.f32 %v1197, 0.3275911
  %v1206 = vmul.f32 %v1198, 0.3275911
  %v1207 = vmul.f32 %v1199, 0.3275911
  %v1208 = vmul.f32 %v1200, 0.3275911
  %v1209 = vmul.f32 %v1201, 0.3275911
  %v1210 = vmul.f32 %v1202, 0.3275911
  %v1211 = vmul.f32 %v1203, 0.3275911
  %v1212 = vadd.f32 %v1204, 1.0
  %v1213 = vadd.f32 %v1205, 1.0
  %v1214 = vadd.f32 %v1206, 1.0
  %v1215 = vadd.f32 %v1207, 1.0
  %v1216 = vadd.f32 %v1208, 1.0
  %v1217 = vadd.f32 %v1209, 1.0
  %v1218 = vadd.f32 %v1210, 1.0
  %v1219 = vadd.f32 %v1211, 1.0
  %v1220 = vrcp.pop %v1212
  %v1221 = vmul.f32 1.0, %v1220
  %v1222 = vrcp.pop %v1213
  %v1223 = vmul.f32 1.0, %v1222
  %v1224 = vrcp.pop %v1214
  %v1225 = vmul.f32 1.0, %v1224
  %v1226 = vrcp.pop %v1215
  %v1227 = vmul.f32 1.0, %v1226
  %v1228 = vrcp.pop %v1216
  %v1229 = vmul.f32 1.0, %v1228
  %v1230 = vrcp.pop %v1217
  %v1231 = vmul.f32 1.0, %v1230
  %v1232 = vrcp.pop %v1218
  %v1233 = vmul.f32 1.0, %v1232
  %v1234 = vrcp.pop %v1219
  %v1235 = vmul.f32 1.0, %v1234
  %v1236 = vmul.f32 %v1221, 1.0614054
  %v1237 = vmul.f32 %v1223, 1.0614054
  %v1238 = vmul.f32 %v1225, 1.0614054
  %v1239 = vmul.f32 %v1227, 1.0614054
  %v1240 = vmul.f32 %v1229, 1.0614054
  %v1241 = vmul.f32 %v1231, 1.0614054
  %v1242 = vmul.f32 %v1233, 1.0614054
  %v1243 = vmul.f32 %v1235, 1.0614054
  %v1244 = vadd.f32 %v1236, -1.4531521
  %v1245 = vadd.f32 %v1237, -1.4531521
  %v1246 = vadd.f32 %v1238, -1.4531521
  %v1247 = vadd.f32 %v1239, -1.4531521
  %v1248 = vadd.f32 %v1240, -1.4531521
  %v1249 = vadd.f32 %v1241, -1.4531521
  %v1250 = vadd.f32 %v1242, -1.4531521
  %v1251 = vadd.f32 %v1243, -1.4531521
  %v1252 = vmul.f32 %v1244, %v1221
  %v1253 = vmul.f32 %v1245, %v1223
  %v1254 = vmul.f32 %v1246, %v1225
  %v1255 = vmul.f32 %v1247, %v1227
  %v1256 = vmul.f32 %v1248, %v1229
  %v1257 = vmul.f32 %v1249, %v1231
  %v1258 = vmul.f32 %v1250, %v1233
  %v1259 = vmul.f32 %v1251, %v1235
  %v1260 = vadd.f32 %v1252, 1.4214138
  %v1261 = vadd.f32 %v1253, 1.4214138
  %v1262 = vadd.f32 %v1254, 1.4214138
  %v1263 = vadd.f32 %v1255, 1.4214138
  %v1264 = vadd.f32 %v1256, 1.4214138
  %v1265 = vadd.f32 %v1257, 1.4214138
  %v1266 = vadd.f32 %v1258, 1.4214138
  %v1267 = vadd.f32 %v1259, 1.4214138
  %v1268 = vmul.f32 %v1260, %v1221
  %v1269 = vmul.f32 %v1261, %v1223
  %v1270 = vmul.f32 %v1262, %v1225
  %v1271 = vmul.f32 %v1263, %v1227
  %v1272 = vmul.f32 %v1264, %v1229
  %v1273 = vmul.f32 %v1265, %v1231
  %v1274 = vmul.f32 %v1266, %v1233
  %v1275 = vmul.f32 %v1267, %v1235
  %v1276 = vadd.f32 %v1268, -0.28449672
  %v1277 = vadd.f32 %v1269, -0.28449672
  %v1278 = vadd.f32 %v1270, -0.28449672
  %v1279 = vadd.f32 %v1271, -0.28449672
  %v1280 = vadd.f32 %v1272, -0.28449672
  %v1281 = vadd.f32 %v1273, -0.28449672
  %v1282 = vadd.f32 %v1274, -0.28449672
  %v1283 = vadd.f32 %v1275, -0.28449672
  %v1284 = vmul.f32 %v1276, %v1221
  %v1285 = vmul.f32 %v1277, %v1223
  %v1286 = vmul.f32 %v1278, %v1225
  %v1287 = vmul.f32 %v1279, %v1227
  %v1288 = vmul.f32 %v1280, %v1229
  %v1289 = vmul.f32 %v1281, %v1231
  %v1290 = vmul.f32 %v1282, %v1233
  %v1291 = vmul.f32 %v1283, %v1235
  %v1292 = vadd.f32 %v1284, 0.2548296
  %v1293 = vadd.f32 %v1285, 0.2548296
  %v1294 = vadd.f32 %v1286, 0.2548296
  %v1295 = vadd.f32 %v1287, 0.2548296
  %v1296 = vadd.f32 %v1288, 0.2548296
  %v1297 = vadd.f32 %v1289, 0.2548296
  %v1298 = vadd.f32 %v1290, 0.2548296
  %v1299 = vadd.f32 %v1291, 0.2548296
  %v1300 = vmul.f32 %v1292, %v1221
  %v1301 = vmul.f32 %v1293, %v1223
  %v1302 = vmul.f32 %v1294, %v1225
  %v1303 = vmul.f32 %v1295, %v1227
  %v1304 = vmul.f32 %v1296, %v1229
  %v1305 = vmul.f32 %v1297, %v1231
  %v1306 = vmul.f32 %v1298, %v1233
  %v1307 = vmul.f32 %v1299, %v1235
  %v1308 = vsub.f32 0.0, %v1196
  %v1309 = vsub.f32 0.0, %v1197
  %v1310 = vsub.f32 0.0, %v1198
  %v1311 = vsub.f32 0.0, %v1199
  %v1312 = vsub.f32 0.0, %v1200
  %v1313 = vsub.f32 0.0, %v1201
  %v1314 = vsub.f32 0.0, %v1202
  %v1315 = vsub.f32 0.0, %v1203
  %v1316 = vmul.f32 %v1308, %v1196
  %v1317 = vmul.f32 %v1309, %v1197
  %v1318 = vmul.f32 %v1310, %v1198
  %v1319 = vmul.f32 %v1311, %v1199
  %v1320 = vmul.f32 %v1312, %v1200
  %v1321 = vmul.f32 %v1313, %v1201
  %v1322 = vmul.f32 %v1314, %v1202
  %v1323 = vmul.f32 %v1315, %v1203
  %v1324 = vmul.f32 %v1316, 1.442695
  %v1325 = vpow.pop %v1324
  %v1326 = vmul.f32 %v1317, 1.442695
  %v1327 = vpow.pop %v1326
  %v1328 = vmul.f32 %v1318, 1.442695
  %v1329 = vpow.pop %v1328
  %v1330 = vmul.f32 %v1319, 1.442695
  %v1331 = vpow.pop %v1330
  %v1332 = vmul.f32 %v1320, 1.442695
  %v1333 = vpow.pop %v1332
  %v1334 = vmul.f32 %v1321, 1.442695
  %v1335 = vpow.pop %v1334
  %v1336 = vmul.f32 %v1322, 1.442695
  %v1337 = vpow.pop %v1336
  %v1338 = vmul.f32 %v1323, 1.442695
  %v1339 = vpow.pop %v1338
  %v1340 = vmul.f32 %v1300, %v1325
  %v1341 = vmul.f32 %v1301, %v1327
  %v1342 = vmul.f32 %v1302, %v1329
  %v1343 = vmul.f32 %v1303, %v1331
  %v1344 = vmul.f32 %v1304, %v1333
  %v1345 = vmul.f32 %v1305, %v1335
  %v1346 = vmul.f32 %v1306, %v1337
  %v1347 = vmul.f32 %v1307, %v1339
  %v1348 = vsub.f32 1.0, %v1340
  %v1349 = vsub.f32 1.0, %v1341
  %v1350 = vsub.f32 1.0, %v1342
  %v1351 = vsub.f32 1.0, %v1343
  %v1352 = vsub.f32 1.0, %v1344
  %v1353 = vsub.f32 1.0, %v1345
  %v1354 = vsub.f32 1.0, %v1346
  %v1355 = vsub.f32 1.0, %v1347
  %vm1356 = vcmp.ge.f32.partialorder %v1188, 0.0
  %vm1357 = vcmp.ge.f32.partialorder %v1189, 0.0
  %vm1358 = vcmp.ge.f32.partialorder %v1190, 0.0
  %vm1359 = vcmp.ge.f32.partialorder %v1191, 0.0
  %vm1360 = vcmp.ge.f32.partialorder %v1192, 0.0
  %vm1361 = vcmp.ge.f32.partialorder %v1193, 0.0
  %vm1362 = vcmp.ge.f32.partialorder %v1194, 0.0
  %vm1363 = vcmp.ge.f32.partialorder %v1195, 0.0
  %v1364 = vsub.f32 0.0, %v1348
  %v1365 = vsub.f32 0.0, %v1349
  %v1366 = vsub.f32 0.0, %v1350
  %v1367 = vsub.f32 0.0, %v1351
  %v1368 = vsub.f32 0.0, %v1352
  %v1369 = vsub.f32 0.0, %v1353
  %v1370 = vsub.f32 0.0, %v1354
  %v1371 = vsub.f32 0.0, %v1355
  %v1372 = vsel %vm1356, %v1348, %v1364
  %v1373 = vsel %vm1357, %v1349, %v1365
  %v1374 = vsel %vm1358, %v1350, %v1366
  %v1375 = vsel %vm1359, %v1351, %v1367
  %v1376 = vsel %vm1360, %v1352, %v1368
  %v1377 = vsel %vm1361, %v1353, %v1369
  %v1378 = vsel %vm1362, %v1354, %v1370
  %v1379 = vsel %vm1363, %v1355, %v1371
  %v1380 = vadd.f32 %v1372, 1.0
  %v1381 = vadd.f32 %v1373, 1.0
  %v1382 = vadd.f32 %v1374, 1.0
  %v1383 = vadd.f32 %v1375, 1.0
  %v1384 = vadd.f32 %v1376, 1.0
  %v1385 = vadd.f32 %v1377, 1.0
  %v1386 = vadd.f32 %v1378, 1.0
  %v1387 = vadd.f32 %v1379, 1.0
  %v1388 = vmul.f32 %v1180, %v1380
  %v1389 = vmul.f32 %v1181, %v1381
  %v1390 = vmul.f32 %v1182, %v1382
  %v1391 = vmul.f32 %v1183, %v1383
  %v1392 = vmul.f32 %v1184, %v1384
  %v1393 = vmul.f32 %v1185, %v1385
  %v1394 = vmul.f32 %v1186, %v1386
  %v1395 = vmul.f32 %v1187, %v1387
  %v1396 = vpack.c.bf16 %v1392, %v1388
  %v1397 = vpack.c.bf16 %v1393, %v1389
  %v1398 = vpack.c.bf16 %v1394, %v1390
  %v1399 = vpack.c.bf16 %v1395, %v1391
  %v1400 = vld [vmem:[%s14] sm:$0xf]
  %v1401 = vld [vmem:[%s14 + $0x4] sm:$0xf]
  %v1402 = vld [vmem:[%s14 + $0x8] sm:$0xf]
  %v1403 = vld [vmem:[%s14 + $0xc] sm:$0xf]
  %v1404 = vld [vmem:[%s14 + $0x10] sm:$0xf]
  %v1405 = vld [vmem:[%s14 + $0x14] sm:$0xf]
  %v1406 = vld [vmem:[%s14 + $0x18] sm:$0xf]
  %v1407 = vld [vmem:[%s14 + $0x1c] sm:$0xf]
  %v1408 = vld [vmem:[%s14 + $0x20] sm:$0xf]
  %v1409 = vld [vmem:[%s14 + $0x24] sm:$0xf]
  %v1410 = vld [vmem:[%s14 + $0x28] sm:$0xf]
  %v1411 = vld [vmem:[%s14 + $0x2c] sm:$0xf]
  %v1412 = vld [vmem:[%s14 + $0x30] sm:$0xf]
  %v1413 = vld [vmem:[%s14 + $0x34] sm:$0xf]
  %v1414 = vld [vmem:[%s14 + $0x38] sm:$0xf]
  %v1415 = vld [vmem:[%s14 + $0x3c] sm:$0xf]
  %v1416 = vld [vmem:[%s14 + $0x40] sm:$0xf]
  %v1417 = vld [vmem:[%s14 + $0x44] sm:$0xf]
  %v1418 = vld [vmem:[%s14 + $0x48] sm:$0xf]
  %v1419 = vld [vmem:[%s14 + $0x4c] sm:$0xf]
  %v1420 = vld [vmem:[%s14 + $0x50] sm:$0xf]
  %v1421 = vld [vmem:[%s14 + $0x54] sm:$0xf]
  %v1422 = vld [vmem:[%s14 + $0x58] sm:$0xf]
  %v1423 = vld [vmem:[%s14 + $0x5c] sm:$0xf]
  %v1424 = vld [vmem:[%s14 + $0x60] sm:$0xf]
  %v1425 = vld [vmem:[%s14 + $0x64] sm:$0xf]
  %v1426 = vld [vmem:[%s14 + $0x68] sm:$0xf]
  %v1427 = vld [vmem:[%s14 + $0x6c] sm:$0xf]
  %v1428 = vld [vmem:[%s14 + $0x70] sm:$0xf]
  %v1429 = vld [vmem:[%s14 + $0x74] sm:$0xf]
  %v1430 = vld [vmem:[%s14 + $0x78] sm:$0xf]
  %v1431 = vld [vmem:[%s14 + $0x7c] sm:$0xf]
  %v1432 = vld [vmem:[%s14 + $0x80] sm:$0xf]
  %v1433 = vld [vmem:[%s14 + $0x84] sm:$0xf]
  %v1434 = vld [vmem:[%s14 + $0x88] sm:$0xf]
  %v1435 = vld [vmem:[%s14 + $0x8c] sm:$0xf]
  %v1436 = vld [vmem:[%s14 + $0x90] sm:$0xf]
  %v1437 = vld [vmem:[%s14 + $0x94] sm:$0xf]
  %v1438 = vld [vmem:[%s14 + $0x98] sm:$0xf]
  %v1439 = vld [vmem:[%s14 + $0x9c] sm:$0xf]
  %v1440 = vld [vmem:[%s14 + $0xa0] sm:$0xf]
  %v1441 = vld [vmem:[%s14 + $0xa4] sm:$0xf]
  %v1442 = vld [vmem:[%s14 + $0xa8] sm:$0xf]
  %v1443 = vld [vmem:[%s14 + $0xac] sm:$0xf]
  %v1444 = vld [vmem:[%s14 + $0xb0] sm:$0xf]
  %v1445 = vld [vmem:[%s14 + $0xb4] sm:$0xf]
  %v1446 = vld [vmem:[%s14 + $0xb8] sm:$0xf]
  %v1447 = vld [vmem:[%s14 + $0xbc] sm:$0xf]
  %v1448 = vld [vmem:[%s14 + $0xc0] sm:$0xf]
  %v1449 = vld [vmem:[%s14 + $0xc4] sm:$0xf]
  %v1450 = vld [vmem:[%s14 + $0xc8] sm:$0xf]
  %v1451 = vld [vmem:[%s14 + $0xcc] sm:$0xf]
  %v1452 = vld [vmem:[%s14 + $0xd0] sm:$0xf]
  %v1453 = vld [vmem:[%s14 + $0xd4] sm:$0xf]
  %v1454 = vld [vmem:[%s14 + $0xd8] sm:$0xf]
  %v1455 = vld [vmem:[%s14 + $0xdc] sm:$0xf]
  %v1456 = vld [vmem:[%s14 + $0xe0] sm:$0xf]
  %v1457 = vld [vmem:[%s14 + $0xe4] sm:$0xf]
  %v1458 = vld [vmem:[%s14 + $0xe8] sm:$0xf]
  %v1459 = vld [vmem:[%s14 + $0xec] sm:$0xf]
  %v1460 = vld [vmem:[%s14 + $0xf0] sm:$0xf]
  %v1461 = vld [vmem:[%s14 + $0xf4] sm:$0xf]
  %v1462 = vld [vmem:[%s14 + $0xf8] sm:$0xf]
  %v1463 = vld [vmem:[%s14 + $0xfc] sm:$0xf]
  %v1464 = vld [vmem:[%s15] sm:$0x1]
  %v1466 = vlaneseq
  %v1467 = vshrl.u32 %v1466, 7
  %v1468 = vsub.s32 0, %v1467
  %v1469 = vrot.slane %v1464, %v1468
  %v1535 = vunpack.c.l.b16 %v1400
  %v1536 = vunpack.c.l.b16 %v1401
  %v1537 = vunpack.c.l.b16 %v1402
  %v1538 = vunpack.c.l.b16 %v1403
  %v1539 = vunpack.c.l.b16 %v1404
  %v1540 = vunpack.c.l.b16 %v1405
  %v1541 = vunpack.c.l.b16 %v1406
  %v1542 = vunpack.c.l.b16 %v1407
  %v1543 = vunpack.c.l.b16 %v1408
  %v1544 = vunpack.c.l.b16 %v1409
  %v1545 = vunpack.c.l.b16 %v1410
  %v1546 = vunpack.c.l.b16 %v1411
  %v1547 = vunpack.c.l.b16 %v1412
  %v1548 = vunpack.c.l.b16 %v1413
  %v1549 = vunpack.c.l.b16 %v1414
  %v1550 = vunpack.c.l.b16 %v1415
  %v1551 = vunpack.c.l.b16 %v1416
  %v1552 = vunpack.c.l.b16 %v1417
  %v1553 = vunpack.c.l.b16 %v1418
  %v1554 = vunpack.c.l.b16 %v1419
  %v1555 = vunpack.c.l.b16 %v1420
  %v1556 = vunpack.c.l.b16 %v1421
  %v1557 = vunpack.c.l.b16 %v1422
  %v1558 = vunpack.c.l.b16 %v1423
  %v1559 = vunpack.c.l.b16 %v1424
  %v1560 = vunpack.c.l.b16 %v1425
  %v1561 = vunpack.c.l.b16 %v1426
  %v1562 = vunpack.c.l.b16 %v1427
  %v1563 = vunpack.c.l.b16 %v1428
  %v1564 = vunpack.c.l.b16 %v1429
  %v1565 = vunpack.c.l.b16 %v1430
  %v1566 = vunpack.c.l.b16 %v1431
  %v1567 = vunpack.c.l.b16 %v1432
  %v1568 = vunpack.c.l.b16 %v1433
  %v1569 = vunpack.c.l.b16 %v1434
  %v1570 = vunpack.c.l.b16 %v1435
  %v1571 = vunpack.c.l.b16 %v1436
  %v1572 = vunpack.c.l.b16 %v1437
  %v1573 = vunpack.c.l.b16 %v1438
  %v1574 = vunpack.c.l.b16 %v1439
  %v1575 = vunpack.c.l.b16 %v1440
  %v1576 = vunpack.c.l.b16 %v1441
  %v1577 = vunpack.c.l.b16 %v1442
  %v1578 = vunpack.c.l.b16 %v1443
  %v1579 = vunpack.c.l.b16 %v1444
  %v1580 = vunpack.c.l.b16 %v1445
  %v1581 = vunpack.c.l.b16 %v1446
  %v1582 = vunpack.c.l.b16 %v1447
  %v1583 = vunpack.c.l.b16 %v1448
  %v1584 = vunpack.c.l.b16 %v1449
  %v1585 = vunpack.c.l.b16 %v1450
  %v1586 = vunpack.c.l.b16 %v1451
  %v1587 = vunpack.c.l.b16 %v1452
  %v1588 = vunpack.c.l.b16 %v1453
  %v1589 = vunpack.c.l.b16 %v1454
  %v1590 = vunpack.c.l.b16 %v1455
  %v1591 = vunpack.c.l.b16 %v1456
  %v1592 = vunpack.c.l.b16 %v1457
  %v1593 = vunpack.c.l.b16 %v1458
  %v1594 = vunpack.c.l.b16 %v1459
  %v1595 = vunpack.c.l.b16 %v1460
  %v1596 = vunpack.c.l.b16 %v1461
  %v1597 = vunpack.c.l.b16 %v1462
  %v1598 = vunpack.c.l.b16 %v1463
  %v1599 = vpack.c.b16 %v1536, %v1535
  %v1600 = vpack.c.b16 %v1538, %v1537
  %v1601 = vpack.c.b16 %v1540, %v1539
  %v1602 = vpack.c.b16 %v1542, %v1541
  %v1603 = vpack.c.b16 %v1544, %v1543
  %v1604 = vpack.c.b16 %v1546, %v1545
  %v1605 = vpack.c.b16 %v1548, %v1547
  %v1606 = vpack.c.b16 %v1550, %v1549
  %v1607 = vpack.c.b16 %v1552, %v1551
  %v1608 = vpack.c.b16 %v1554, %v1553
  %v1609 = vpack.c.b16 %v1556, %v1555
  %v1610 = vpack.c.b16 %v1558, %v1557
  %v1611 = vpack.c.b16 %v1560, %v1559
  %v1612 = vpack.c.b16 %v1562, %v1561
  %v1613 = vpack.c.b16 %v1564, %v1563
  %v1614 = vpack.c.b16 %v1566, %v1565
  %v1615 = vpack.c.b16 %v1568, %v1567
  %v1616 = vpack.c.b16 %v1570, %v1569
  %v1617 = vpack.c.b16 %v1572, %v1571
  %v1618 = vpack.c.b16 %v1574, %v1573
  %v1619 = vpack.c.b16 %v1576, %v1575
  %v1620 = vpack.c.b16 %v1578, %v1577
  %v1621 = vpack.c.b16 %v1580, %v1579
  %v1622 = vpack.c.b16 %v1582, %v1581
  %v1623 = vpack.c.b16 %v1584, %v1583
  %v1624 = vpack.c.b16 %v1586, %v1585
  %v1625 = vpack.c.b16 %v1588, %v1587
  %v1626 = vpack.c.b16 %v1590, %v1589
  %v1627 = vpack.c.b16 %v1592, %v1591
  %v1628 = vpack.c.b16 %v1594, %v1593
  %v1629 = vpack.c.b16 %v1596, %v1595
  %v1630 = vpack.c.b16 %v1598, %v1597
  %1663 = vmatprep.subr.bf16.mxu0 0
  %1664 = vmatpush1.bf16.msra.mxu0 %v1599
  %1665 = vmatprep.subr.bf16.mxu0 0
  %1666 = vmatpush1.bf16.msra.mxu0 %v1600
  %1667 = vmatprep.subr.bf16.mxu0 0
  %1668 = vmatpush1.bf16.msra.mxu0 %v1601
  %1669 = vmatprep.subr.bf16.mxu0 0
  %1670 = vmatpush1.bf16.msra.mxu0 %v1602
  %1671 = vmatprep.subr.bf16.mxu0 0
  %1672 = vmatpush1.bf16.msra.mxu0 %v1603
  %1673 = vmatprep.subr.bf16.mxu0 0
  %1674 = vmatpush1.bf16.msra.mxu0 %v1604
  %1675 = vmatprep.subr.bf16.mxu0 0
  %1676 = vmatpush1.bf16.msra.mxu0 %v1605
  %1677 = vmatprep.subr.bf16.mxu0 0
  %1678 = vmatpush1.bf16.msra.mxu0 %v1606
  %1679 = vmatprep.subr.bf16.mxu0 0
  %1680 = vmatpush1.bf16.msra.mxu0 %v1607
  %1681 = vmatprep.subr.bf16.mxu0 0
  %1682 = vmatpush1.bf16.msra.mxu0 %v1608
  %1683 = vmatprep.subr.bf16.mxu0 0
  %1684 = vmatpush1.bf16.msra.mxu0 %v1609
  %1685 = vmatprep.subr.bf16.mxu0 0
  %1686 = vmatpush1.bf16.msra.mxu0 %v1610
  %1687 = vmatprep.subr.bf16.mxu0 0
  %1688 = vmatpush1.bf16.msra.mxu0 %v1611
  %1689 = vmatprep.subr.bf16.mxu0 0
  %1690 = vmatpush1.bf16.msra.mxu0 %v1612
  %1691 = vmatprep.subr.bf16.mxu0 0
  %1692 = vmatpush1.bf16.msra.mxu0 %v1613
  %1693 = vmatprep.subr.bf16.mxu0 0
  %1694 = vmatpush1.bf16.msra.mxu0 %v1614
  %1695 = vmatprep.mubr.bf16.mxu0 %v1397
  %1696 = vmatmul.mubr.bf16.gmra.mrb[0].mxu0 %v1396
  %v1697 = vpop.f32.mrb[0].mxu0
  %v1698 = vadd.f32 %v1469, %v1697
  %v1699 = vpop.f32.mrb[0].mxu0
  %v1700 = vpop.f32.mrb[0].mxu0
  %v1701 = vadd.f32 %v1469, %v1700
  %v1702 = vpop.f32.mrb[0].mxu0
  %1703 = vdwg.mxu0
  %1704 = vmatprep.subr.bf16.mxu0 0
  %1705 = vmatpush1.bf16.msra.mxu0 %v1615
  %1706 = vmatprep.subr.bf16.mxu0 0
  %1707 = vmatpush1.bf16.msra.mxu0 %v1616
  %1708 = vmatprep.subr.bf16.mxu0 0
  %1709 = vmatpush1.bf16.msra.mxu0 %v1617
  %1710 = vmatprep.subr.bf16.mxu0 0
  %1711 = vmatpush1.bf16.msra.mxu0 %v1618
  %1712 = vmatprep.subr.bf16.mxu0 0
  %1713 = vmatpush1.bf16.msra.mxu0 %v1619
  %1714 = vmatprep.subr.bf16.mxu0 0
  %1715 = vmatpush1.bf16.msra.mxu0 %v1620
  %1716 = vmatprep.subr.bf16.mxu0 0
  %1717 = vmatpush1.bf16.msra.mxu0 %v1621
  %1718 = vmatprep.subr.bf16.mxu0 0
  %1719 = vmatpush1.bf16.msra.mxu0 %v1622
  %1720 = vmatprep.subr.bf16.mxu0 0
  %1721 = vmatpush1.bf16.msra.mxu0 %v1623
  %1722 = vmatprep.subr.bf16.mxu0 0
  %1723 = vmatpush1.bf16.msra.mxu0 %v1624
  %1724 = vmatprep.subr.bf16.mxu0 0
  %1725 = vmatpush1.bf16.msra.mxu0 %v1625
  %1726 = vmatprep.subr.bf16.mxu0 0
  %1727 = vmatpush1.bf16.msra.mxu0 %v1626
  %1728 = vmatprep.subr.bf16.mxu0 0
  %1729 = vmatpush1.bf16.msra.mxu0 %v1627
  %1730 = vmatprep.subr.bf16.mxu0 0
  %1731 = vmatpush1.bf16.msra.mxu0 %v1628
  %1732 = vmatprep.subr.bf16.mxu0 0
  %1733 = vmatpush1.bf16.msra.mxu0 %v1629
  %1734 = vmatprep.subr.bf16.mxu0 0
  %1735 = vmatpush1.bf16.msra.mxu0 %v1630
  %1736 = vmatprep.mubr.bf16.mxu0 %v1399
  %1737 = vmatmul.mubr.bf16.gmra.mrb[0].mxu0 %v1398
  %v1738 = vpop.f32.mrb[0].mxu0
  %v1739 = vadd.f32 %v1698, %v1738
  %v1740 = vpop.f32.mrb[0].mxu0
  %v1741 = vpop.f32.mrb[0].mxu0
  %v1742 = vadd.f32 %v1701, %v1741
  %v1743 = vpop.f32.mrb[0].mxu0
  %1744 = vdwg.mxu0
  %v1745 = vadd.f32 %v1018, %v1739
  %v1746 = vadd.f32 %v1019, %v1742
  %v1747 = vld [vmem:[%s18] sm:$0x1]
  %v1748 = vld [vmem:[%s19] sm:$0x1]
  %v1749 = vsel %vm171, %v1745, 0.0
  %1750 = vadd.xlane.f32.xlu0 %v1749
  %v1751 = vpop.xlane.xlu0 %1750
  %v1752 = vsel %vm171, %v1746, 0.0
  %1753 = vadd.xlane.f32.xlu0 %v1752
  %v1754 = vpop.xlane.xlu0 %1753
  %v1755 = vmul.f32 %v1751, %v282
  %v1756 = vmul.f32 %v1754, %v282
  %v1757 = vsub.f32 %v1745, %v1755
  %v1758 = vsub.f32 %v1746, %v1756
  %v1759 = vmul.f32 %v1757, %v1757
  %v1760 = vmul.f32 %v1758, %v1758
  %v1761 = vsel %vm171, %v1759, 0.0
  %1762 = vadd.xlane.f32.xlu0 %v1761
  %v1763 = vpop.xlane.xlu0 %1762
  %v1764 = vsel %vm171, %v1760, 0.0
  %1765 = vadd.xlane.f32.xlu0 %v1764
  %v1766 = vpop.xlane.xlu0 %1765
  %v1767 = vmul.f32 %v1763, %v282
  %v1768 = vmul.f32 %v1766, %v282
  %v1769 = vadd.f32 %v1767, 1e-05
  %v1770 = vadd.f32 %v1768, 1e-05
  %v1771 = vrsqrt.pop %v1769
  %v1772 = vrsqrt.pop %v1770
  %v1773 = vmul.f32 %v1757, %v1771
  %v1774 = vmul.f32 %v1758, %v1772
  %v1776 = vlaneseq
  %v1777 = vshrl.u32 %v1776, 7
  %v1778 = vsub.s32 0, %v1777
  %v1779 = vrot.slane %v1747, %v1778
  %v1781 = vmul.f32 %v1773, %v1779
  %v1782 = vmul.f32 %v1774, %v1779
  %v1784 = vlaneseq
  %v1785 = vshrl.u32 %v1784, 7
  %v1786 = vsub.s32 0, %v1785
  %v1787 = vrot.slane %v1748, %v1786
  %v1789 = vadd.f32 %v1781, %v1787
  %v1790 = vadd.f32 %v1782, %v1787
  %v1791 = vadd.f32 %v317, %v1789
  %v1792 = vadd.f32 %v318, %v1790
  %v1793 = vpack.c.bf16 %v1792, %v1791
  %s1794 = scalar_lea.vmem %s8, 16
  %v1795 = vld [vmem:[%s1794] sm:$0xf]
  %v1796 = vld [vmem:[%s1794 + $0x4] sm:$0xf]
  %v1797 = vld [vmem:[%s1794 + $0x8] sm:$0xf]
  %v1798 = vld [vmem:[%s1794 + $0xc] sm:$0xf]
  %s1799 = scalar_lea.vmem %s9, 1
  %v1800 = vld [vmem:[%s1799] sm:$0x1]
  %v1802 = vlaneseq
  %v1803 = vshrl.u32 %v1802, 7
  %v1804 = vsub.s32 0, %v1803
  %v1805 = vrot.slane %v1800, %v1804
  %v1811 = vunpack.c.l.b16 %v1795
  %v1812 = vunpack.c.l.b16 %v1796
  %v1813 = vunpack.c.l.b16 %v1797
  %v1814 = vunpack.c.l.b16 %v1798
  %v1815 = vpack.c.b16 %v1812, %v1811
  %v1816 = vpack.c.b16 %v1814, %v1813
  %v1820 = vsel %vm171, %v1793, 0
  %1822 = vmatprep.subr.bf16.mxu0 0
  %1823 = vmatpush1.bf16.msra.mxu0 %v1815
  %1824 = vmatprep.subr.bf16.mxu0 0
  %1825 = vmatpush1.bf16.msra.mxu0 %v1816
  %1826 = vmatprep.subr.bf16.mxu0 0
  %1827 = vmatpush1.bf16.msra.mxu0 0
  %1828 = vmatprep.subr.bf16.mxu0 0
  %1829 = vmatpush1.bf16.msra.mxu0 0
  %1830 = vmatprep.subr.bf16.mxu0 0
  %1831 = vmatpush1.bf16.msra.mxu0 0
  %1832 = vmatprep.subr.bf16.mxu0 0
  %1833 = vmatpush1.bf16.msra.mxu0 0
  %1834 = vmatprep.subr.bf16.mxu0 0
  %1835 = vmatpush1.bf16.msra.mxu0 0
  %1836 = vmatprep.subr.bf16.mxu0 0
  %1837 = vmatpush1.bf16.msra.mxu0 0
  %1838 = vmatprep.subr.bf16.mxu0 0
  %1839 = vmatpush1.bf16.msra.mxu0 0
  %1840 = vmatprep.subr.bf16.mxu0 0
  %1841 = vmatpush1.bf16.msra.mxu0 0
  %1842 = vmatprep.subr.bf16.mxu0 0
  %1843 = vmatpush1.bf16.msra.mxu0 0
  %1844 = vmatprep.subr.bf16.mxu0 0
  %1845 = vmatpush1.bf16.msra.mxu0 0
  %1846 = vmatprep.subr.bf16.mxu0 0
  %1847 = vmatpush1.bf16.msra.mxu0 0
  %1848 = vmatprep.subr.bf16.mxu0 0
  %1849 = vmatpush1.bf16.msra.mxu0 0
  %1850 = vmatprep.subr.bf16.mxu0 0
  %1851 = vmatpush1.bf16.msra.mxu0 0
  %1852 = vmatprep.subr.bf16.mxu0 0
  %1853 = vmatpush1.bf16.msra.mxu0 0
  %1854 = vmatprep.mubr.bf16.mxu0 0
  %1855 = vmatmul.mubr.bf16.gmra.mrb[0].mxu0 %v1820
  %v1856 = vpop.f32.mrb[0].mxu0
  %v1857 = vadd.f32 %v1805, %v1856
  %v1858 = vpop.f32.mrb[0].mxu0
  %v1859 = vpop.f32.mrb[0].mxu0
  %v1860 = vadd.f32 %v1805, %v1859
  %v1861 = vpop.f32.mrb[0].mxu0
  %1862 = vdwg.mxu0
  %v1863 = vpack.c.bf16 %v1860, %v1857
  %1865 = vrot.lane.b32.xlu0 %v1863, 96
  %v1866 = vpop.permute.xlu0 %1865
  %v1868 = vsel %vm393, %v1863, 0
  %v1871 = vsel %vm393, %v1866, 0
  %1873 = vmatprep.subr.bf16.mxu0 0
  %1874 = vmatpush1.bf16.xpose.msra.mxu0 %v1871
  %1875 = vmatprep.subr.bf16.mxu0 0
  %1876 = vmatpush1.bf16.xpose.msra.mxu0 0
  %1877 = vmatprep.subr.bf16.mxu0 0
  %1878 = vmatpush1.bf16.xpose.msra.mxu0 0
  %1879 = vmatprep.subr.bf16.mxu0 0
  %1880 = vmatpush1.bf16.xpose.msra.mxu0 0
  %1881 = vmatprep.subr.bf16.mxu0 0
  %1882 = vmatpush1.bf16.xpose.msra.mxu0 0
  %1883 = vmatprep.subr.bf16.mxu0 0
  %1884 = vmatpush1.bf16.xpose.msra.mxu0 0
  %1885 = vmatprep.subr.bf16.mxu0 0
  %1886 = vmatpush1.bf16.xpose.msra.mxu0 0
  %1887 = vmatprep.subr.bf16.mxu0 0
  %1888 = vmatpush1.bf16.xpose.msra.mxu0 0
  %1889 = vmatprep.subr.bf16.mxu0 0
  %1890 = vmatpush1.bf16.xpose.msra.mxu0 0
  %1891 = vmatprep.subr.bf16.mxu0 0
  %1892 = vmatpush1.bf16.xpose.msra.mxu0 0
  %1893 = vmatprep.subr.bf16.mxu0 0
  %1894 = vmatpush1.bf16.xpose.msra.mxu0 0
  %1895 = vmatprep.subr.bf16.mxu0 0
  %1896 = vmatpush1.bf16.xpose.msra.mxu0 0
  %1897 = vmatprep.subr.bf16.mxu0 0
  %1898 = vmatpush1.bf16.xpose.msra.mxu0 0
  %1899 = vmatprep.subr.bf16.mxu0 0
  %1900 = vmatpush1.bf16.xpose.msra.mxu0 0
  %1901 = vmatprep.subr.bf16.mxu0 0
  %1902 = vmatpush1.bf16.xpose.msra.mxu0 0
  %1903 = vmatprep.subr.bf16.mxu0 0
  %1904 = vmatpush1.bf16.xpose.msra.mxu0 0
  %1905 = vmatprep.mubr.bf16.mxu0 0
  %1906 = vmatmul.mubr.bf16.gmra.mrb[0].mxu0 %v1868
  %v1907 = vpop.f32.mrb[0].mxu0
  %v1908 = vadd.f32 %v319, %v1907
  %v1909 = vpop.f32.mrb[0].mxu0
  %v1910 = vpop.f32.mrb[0].mxu0
  %v1911 = vadd.f32 %v320, %v1910
  %v1912 = vpop.f32.mrb[0].mxu0
  %1913 = vdwg.mxu0
  %v1914 = vsel %vm441, %v1908, -inf
  %1915 = vmax.xlane.f32.xlu0 %v1914
  %v1916 = vpop.xlane.xlu0 %1915
  %v1917 = vsel %vm441, %v1911, -inf
  %1918 = vmax.xlane.f32.xlu0 %v1917
  %v1919 = vpop.xlane.xlu0 %1918
  %v1920 = vsub.f32 %v1908, %v1916
  %v1921 = vsub.f32 %v1911, %v1919
  %v1922 = vmul.f32 %v1920, 1.442695
  %v1923 = vpow.pop %v1922
  %v1924 = vmul.f32 %v1921, 1.442695
  %v1925 = vpow.pop %v1924
  %v1926 = vsel %vm441, %v1923, 0.0
  %1927 = vadd.xlane.f32.xlu0 %v1926
  %v1928 = vpop.xlane.xlu0 %1927
  %v1929 = vsel %vm441, %v1925, 0.0
  %1930 = vadd.xlane.f32.xlu0 %v1929
  %v1931 = vpop.xlane.xlu0 %1930
  %v1932 = vrcp.pop %v1928
  %v1933 = vmul.f32 %v1923, %v1932
  %v1934 = vrcp.pop %v1931
  %v1935 = vmul.f32 %v1925, %v1934
  %v1936 = vpack.c.bf16 %v1935, %v1933
  %1937 = vrot.lane.b32.xlu0 %v1863, 64
  %v1938 = vpop.permute.xlu0 %1937
  %v1941 = vsel %vm441, %v1936, 0
  %1943 = vmatprep.subr.bf16.mxu0 0
  %1944 = vmatpush1.bf16.msra.mxu0 %v1938
  %1945 = vmatprep.subr.bf16.mxu0 0
  %1946 = vmatpush1.bf16.msra.mxu0 0
  %1947 = vmatprep.subr.bf16.mxu0 0
  %1948 = vmatpush1.bf16.msra.mxu0 0
  %1949 = vmatprep.subr.bf16.mxu0 0
  %1950 = vmatpush1.bf16.msra.mxu0 0
  %1951 = vmatprep.subr.bf16.mxu0 0
  %1952 = vmatpush1.bf16.msra.mxu0 0
  %1953 = vmatprep.subr.bf16.mxu0 0
  %1954 = vmatpush1.bf16.msra.mxu0 0
  %1955 = vmatprep.subr.bf16.mxu0 0
  %1956 = vmatpush1.bf16.msra.mxu0 0
  %1957 = vmatprep.subr.bf16.mxu0 0
  %1958 = vmatpush1.bf16.msra.mxu0 0
  %1959 = vmatprep.subr.bf16.mxu0 0
  %1960 = vmatpush1.bf16.msra.mxu0 0
  %1961 = vmatprep.subr.bf16.mxu0 0
  %1962 = vmatpush1.bf16.msra.mxu0 0
  %1963 = vmatprep.subr.bf16.mxu0 0
  %1964 = vmatpush1.bf16.msra.mxu0 0
  %1965 = vmatprep.subr.bf16.mxu0 0
  %1966 = vmatpush1.bf16.msra.mxu0 0
  %1967 = vmatprep.subr.bf16.mxu0 0
  %1968 = vmatpush1.bf16.msra.mxu0 0
  %1969 = vmatprep.subr.bf16.mxu0 0
  %1970 = vmatpush1.bf16.msra.mxu0 0
  %1971 = vmatprep.subr.bf16.mxu0 0
  %1972 = vmatpush1.bf16.msra.mxu0 0
  %1973 = vmatprep.subr.bf16.mxu0 0
  %1974 = vmatpush1.bf16.msra.mxu0 0
  %1975 = vmatprep.mubr.bf16.mxu0 0
  %1976 = vmatmul.mubr.bf16.gmra.mrb[0].mxu0 %v1941
  %v1977 = vpop.f32.mrb[0].mxu0
  %v1978 = vadd.f32 0.0, %v1977
  %v1979 = vpop.f32.mrb[0].mxu0
  %v1980 = vpop.f32.mrb[0].mxu0
  %v1981 = vadd.f32 0.0, %v1980
  %v1982 = vpop.f32.mrb[0].mxu0
  %1983 = vdwg.mxu0
  %1984 = vrot.lane.b32.xlu0 %v1863, 120
  %v1985 = vpop.permute.xlu0 %1984
  %1986 = vrot.lane.b32.xlu0 %v1863, 88
  %v1987 = vpop.permute.xlu0 %1986
  %v1989 = vsel %vm393, %v1985, 0
  %v1992 = vsel %vm393, %v1987, 0
  %1994 = vmatprep.subr.bf16.mxu0 0
  %1995 = vmatpush1.bf16.xpose.msra.mxu0 %v1992
  %1996 = vmatprep.subr.bf16.mxu0 0
  %1997 = vmatpush1.bf16.xpose.msra.mxu0 0
  %1998 = vmatprep.subr.bf16.mxu0 0
  %1999 = vmatpush1.bf16.xpose.msra.mxu0 0
  %2000 = vmatprep.subr.bf16.mxu0 0
  %2001 = vmatpush1.bf16.xpose.msra.mxu0 0
  %2002 = vmatprep.subr.bf16.mxu0 0
  %2003 = vmatpush1.bf16.xpose.msra.mxu0 0
  %2004 = vmatprep.subr.bf16.mxu0 0
  %2005 = vmatpush1.bf16.xpose.msra.mxu0 0
  %2006 = vmatprep.subr.bf16.mxu0 0
  %2007 = vmatpush1.bf16.xpose.msra.mxu0 0
  %2008 = vmatprep.subr.bf16.mxu0 0
  %2009 = vmatpush1.bf16.xpose.msra.mxu0 0
  %2010 = vmatprep.subr.bf16.mxu0 0
  %2011 = vmatpush1.bf16.xpose.msra.mxu0 0
  %2012 = vmatprep.subr.bf16.mxu0 0
  %2013 = vmatpush1.bf16.xpose.msra.mxu0 0
  %2014 = vmatprep.subr.bf16.mxu0 0
  %2015 = vmatpush1.bf16.xpose.msra.mxu0 0
  %2016 = vmatprep.subr.bf16.mxu0 0
  %2017 = vmatpush1.bf16.xpose.msra.mxu0 0
  %2018 = vmatprep.subr.bf16.mxu0 0
  %2019 = vmatpush1.bf16.xpose.msra.mxu0 0
  %2020 = vmatprep.subr.bf16.mxu0 0
  %2021 = vmatpush1.bf16.xpose.msra.mxu0 0
  %2022 = vmatprep.subr.bf16.mxu0 0
  %2023 = vmatpush1.bf16.xpose.msra.mxu0 0
  %2024 = vmatprep.subr.bf16.mxu0 0
  %2025 = vmatpush1.bf16.xpose.msra.mxu0 0
  %2026 = vmatprep.mubr.bf16.mxu0 0
  %2027 = vmatmul.mubr.bf16.gmra.mrb[0].mxu0 %v1989
  %v2028 = vpop.f32.mrb[0].mxu0
  %v2029 = vadd.f32 %v319, %v2028
  %v2030 = vpop.f32.mrb[0].mxu0
  %v2031 = vpop.f32.mrb[0].mxu0
  %v2032 = vadd.f32 %v320, %v2031
  %v2033 = vpop.f32.mrb[0].mxu0
  %2034 = vdwg.mxu0
  %v2035 = vsel %vm441, %v2029, -inf
  %2036 = vmax.xlane.f32.xlu0 %v2035
  %v2037 = vpop.xlane.xlu0 %2036
  %v2038 = vsel %vm441, %v2032, -inf
  %2039 = vmax.xlane.f32.xlu0 %v2038
  %v2040 = vpop.xlane.xlu0 %2039
  %v2041 = vsub.f32 %v2029, %v2037
  %v2042 = vsub.f32 %v2032, %v2040
  %v2043 = vmul.f32 %v2041, 1.442695
  %v2044 = vpow.pop %v2043
  %v2045 = vmul.f32 %v2042, 1.442695
  %v2046 = vpow.pop %v2045
  %v2047 = vsel %vm441, %v2044, 0.0
  %2048 = vadd.xlane.f32.xlu0 %v2047
  %v2049 = vpop.xlane.xlu0 %2048
  %v2050 = vsel %vm441, %v2046, 0.0
  %2051 = vadd.xlane.f32.xlu0 %v2050
  %v2052 = vpop.xlane.xlu0 %2051
  %v2053 = vrcp.pop %v2049
  %v2054 = vmul.f32 %v2044, %v2053
  %v2055 = vrcp.pop %v2052
  %v2056 = vmul.f32 %v2046, %v2055
  %v2057 = vpack.c.bf16 %v2056, %v2054
  %2058 = vrot.lane.b32.xlu0 %v1863, 56
  %v2059 = vpop.permute.xlu0 %2058
  %v2062 = vsel %vm441, %v2057, 0
  %2064 = vmatprep.subr.bf16.mxu0 0
  %2065 = vmatpush1.bf16.msra.mxu0 %v2059
  %2066 = vmatprep.subr.bf16.mxu0 0
  %2067 = vmatpush1.bf16.msra.mxu0 0
  %2068 = vmatprep.subr.bf16.mxu0 0
  %2069 = vmatpush1.bf16.msra.mxu0 0
  %2070 = vmatprep.subr.bf16.mxu0 0
  %2071 = vmatpush1.bf16.msra.mxu0 0
  %2072 = vmatprep.subr.bf16.mxu0 0
  %2073 = vmatpush1.bf16.msra.mxu0 0
  %2074 = vmatprep.subr.bf16.mxu0 0
  %2075 = vmatpush1.bf16.msra.mxu0 0
  %2076 = vmatprep.subr.bf16.mxu0 0
  %2077 = vmatpush1.bf16.msra.mxu0 0
  %2078 = vmatprep.subr.bf16.mxu0 0
  %2079 = vmatpush1.bf16.msra.mxu0 0
  %2080 = vmatprep.subr.bf16.mxu0 0
  %2081 = vmatpush1.bf16.msra.mxu0 0
  %2082 = vmatprep.subr.bf16.mxu0 0
  %2083 = vmatpush1.bf16.msra.mxu0 0
  %2084 = vmatprep.subr.bf16.mxu0 0
  %2085 = vmatpush1.bf16.msra.mxu0 0
  %2086 = vmatprep.subr.bf16.mxu0 0
  %2087 = vmatpush1.bf16.msra.mxu0 0
  %2088 = vmatprep.subr.bf16.mxu0 0
  %2089 = vmatpush1.bf16.msra.mxu0 0
  %2090 = vmatprep.subr.bf16.mxu0 0
  %2091 = vmatpush1.bf16.msra.mxu0 0
  %2092 = vmatprep.subr.bf16.mxu0 0
  %2093 = vmatpush1.bf16.msra.mxu0 0
  %2094 = vmatprep.subr.bf16.mxu0 0
  %2095 = vmatpush1.bf16.msra.mxu0 0
  %2096 = vmatprep.mubr.bf16.mxu0 0
  %2097 = vmatmul.mubr.bf16.gmra.mrb[0].mxu0 %v2062
  %v2098 = vpop.f32.mrb[0].mxu0
  %v2099 = vadd.f32 0.0, %v2098
  %v2100 = vpop.f32.mrb[0].mxu0
  %v2101 = vpop.f32.mrb[0].mxu0
  %v2102 = vadd.f32 0.0, %v2101
  %v2103 = vpop.f32.mrb[0].mxu0
  %2104 = vdwg.mxu0
  %2105 = vrot.lane.b32.xlu0 %v1863, 112
  %v2106 = vpop.permute.xlu0 %2105
  %2107 = vrot.lane.b32.xlu0 %v1863, 80
  %v2108 = vpop.permute.xlu0 %2107
  %v2110 = vsel %vm393, %v2106, 0
  %v2113 = vsel %vm393, %v2108, 0
  %2115 = vmatprep.subr.bf16.mxu0 0
  %2116 = vmatpush1.bf16.xpose.msra.mxu0 %v2113
  %2117 = vmatprep.subr.bf16.mxu0 0
  %2118 = vmatpush1.bf16.xpose.msra.mxu0 0
  %2119 = vmatprep.subr.bf16.mxu0 0
  %2120 = vmatpush1.bf16.xpose.msra.mxu0 0
  %2121 = vmatprep.subr.bf16.mxu0 0
  %2122 = vmatpush1.bf16.xpose.msra.mxu0 0
  %2123 = vmatprep.subr.bf16.mxu0 0
  %2124 = vmatpush1.bf16.xpose.msra.mxu0 0
  %2125 = vmatprep.subr.bf16.mxu0 0
  %2126 = vmatpush1.bf16.xpose.msra.mxu0 0
  %2127 = vmatprep.subr.bf16.mxu0 0
  %2128 = vmatpush1.bf16.xpose.msra.mxu0 0
  %2129 = vmatprep.subr.bf16.mxu0 0
  %2130 = vmatpush1.bf16.xpose.msra.mxu0 0
  %2131 = vmatprep.subr.bf16.mxu0 0
  %2132 = vmatpush1.bf16.xpose.msra.mxu0 0
  %2133 = vmatprep.subr.bf16.mxu0 0
  %2134 = vmatpush1.bf16.xpose.msra.mxu0 0
  %2135 = vmatprep.subr.bf16.mxu0 0
  %2136 = vmatpush1.bf16.xpose.msra.mxu0 0
  %2137 = vmatprep.subr.bf16.mxu0 0
  %2138 = vmatpush1.bf16.xpose.msra.mxu0 0
  %2139 = vmatprep.subr.bf16.mxu0 0
  %2140 = vmatpush1.bf16.xpose.msra.mxu0 0
  %2141 = vmatprep.subr.bf16.mxu0 0
  %2142 = vmatpush1.bf16.xpose.msra.mxu0 0
  %2143 = vmatprep.subr.bf16.mxu0 0
  %2144 = vmatpush1.bf16.xpose.msra.mxu0 0
  %2145 = vmatprep.subr.bf16.mxu0 0
  %2146 = vmatpush1.bf16.xpose.msra.mxu0 0
  %2147 = vmatprep.mubr.bf16.mxu0 0
  %2148 = vmatmul.mubr.bf16.gmra.mrb[0].mxu0 %v2110
  %v2149 = vpop.f32.mrb[0].mxu0
  %v2150 = vadd.f32 %v319, %v2149
  %v2151 = vpop.f32.mrb[0].mxu0
  %v2152 = vpop.f32.mrb[0].mxu0
  %v2153 = vadd.f32 %v320, %v2152
  %v2154 = vpop.f32.mrb[0].mxu0
  %2155 = vdwg.mxu0
  %v2156 = vsel %vm441, %v2150, -inf
  %2157 = vmax.xlane.f32.xlu0 %v2156
  %v2158 = vpop.xlane.xlu0 %2157
  %v2159 = vsel %vm441, %v2153, -inf
  %2160 = vmax.xlane.f32.xlu0 %v2159
  %v2161 = vpop.xlane.xlu0 %2160
  %v2162 = vsub.f32 %v2150, %v2158
  %v2163 = vsub.f32 %v2153, %v2161
  %v2164 = vmul.f32 %v2162, 1.442695
  %v2165 = vpow.pop %v2164
  %v2166 = vmul.f32 %v2163, 1.442695
  %v2167 = vpow.pop %v2166
  %v2168 = vsel %vm441, %v2165, 0.0
  %2169 = vadd.xlane.f32.xlu0 %v2168
  %v2170 = vpop.xlane.xlu0 %2169
  %v2171 = vsel %vm441, %v2167, 0.0
  %2172 = vadd.xlane.f32.xlu0 %v2171
  %v2173 = vpop.xlane.xlu0 %2172
  %v2174 = vrcp.pop %v2170
  %v2175 = vmul.f32 %v2165, %v2174
  %v2176 = vrcp.pop %v2173
  %v2177 = vmul.f32 %v2167, %v2176
  %v2178 = vpack.c.bf16 %v2177, %v2175
  %2179 = vrot.lane.b32.xlu0 %v1863, 48
  %v2180 = vpop.permute.xlu0 %2179
  %v2183 = vsel %vm441, %v2178, 0
  %2185 = vmatprep.subr.bf16.mxu0 0
  %2186 = vmatpush1.bf16.msra.mxu0 %v2180
  %2187 = vmatprep.subr.bf16.mxu0 0
  %2188 = vmatpush1.bf16.msra.mxu0 0
  %2189 = vmatprep.subr.bf16.mxu0 0
  %2190 = vmatpush1.bf16.msra.mxu0 0
  %2191 = vmatprep.subr.bf16.mxu0 0
  %2192 = vmatpush1.bf16.msra.mxu0 0
  %2193 = vmatprep.subr.bf16.mxu0 0
  %2194 = vmatpush1.bf16.msra.mxu0 0
  %2195 = vmatprep.subr.bf16.mxu0 0
  %2196 = vmatpush1.bf16.msra.mxu0 0
  %2197 = vmatprep.subr.bf16.mxu0 0
  %2198 = vmatpush1.bf16.msra.mxu0 0
  %2199 = vmatprep.subr.bf16.mxu0 0
  %2200 = vmatpush1.bf16.msra.mxu0 0
  %2201 = vmatprep.subr.bf16.mxu0 0
  %2202 = vmatpush1.bf16.msra.mxu0 0
  %2203 = vmatprep.subr.bf16.mxu0 0
  %2204 = vmatpush1.bf16.msra.mxu0 0
  %2205 = vmatprep.subr.bf16.mxu0 0
  %2206 = vmatpush1.bf16.msra.mxu0 0
  %2207 = vmatprep.subr.bf16.mxu0 0
  %2208 = vmatpush1.bf16.msra.mxu0 0
  %2209 = vmatprep.subr.bf16.mxu0 0
  %2210 = vmatpush1.bf16.msra.mxu0 0
  %2211 = vmatprep.subr.bf16.mxu0 0
  %2212 = vmatpush1.bf16.msra.mxu0 0
  %2213 = vmatprep.subr.bf16.mxu0 0
  %2214 = vmatpush1.bf16.msra.mxu0 0
  %2215 = vmatprep.subr.bf16.mxu0 0
  %2216 = vmatpush1.bf16.msra.mxu0 0
  %2217 = vmatprep.mubr.bf16.mxu0 0
  %2218 = vmatmul.mubr.bf16.gmra.mrb[0].mxu0 %v2183
  %v2219 = vpop.f32.mrb[0].mxu0
  %v2220 = vadd.f32 0.0, %v2219
  %v2221 = vpop.f32.mrb[0].mxu0
  %v2222 = vpop.f32.mrb[0].mxu0
  %v2223 = vadd.f32 0.0, %v2222
  %v2224 = vpop.f32.mrb[0].mxu0
  %2225 = vdwg.mxu0
  %2226 = vrot.lane.b32.xlu0 %v1863, 104
  %v2227 = vpop.permute.xlu0 %2226
  %2228 = vrot.lane.b32.xlu0 %v1863, 72
  %v2229 = vpop.permute.xlu0 %2228
  %v2231 = vsel %vm393, %v2227, 0
  %v2234 = vsel %vm393, %v2229, 0
  %2236 = vmatprep.subr.bf16.mxu0 0
  %2237 = vmatpush1.bf16.xpose.msra.mxu0 %v2234
  %2238 = vmatprep.subr.bf16.mxu0 0
  %2239 = vmatpush1.bf16.xpose.msra.mxu0 0
  %2240 = vmatprep.subr.bf16.mxu0 0
  %2241 = vmatpush1.bf16.xpose.msra.mxu0 0
  %2242 = vmatprep.subr.bf16.mxu0 0
  %2243 = vmatpush1.bf16.xpose.msra.mxu0 0
  %2244 = vmatprep.subr.bf16.mxu0 0
  %2245 = vmatpush1.bf16.xpose.msra.mxu0 0
  %2246 = vmatprep.subr.bf16.mxu0 0
  %2247 = vmatpush1.bf16.xpose.msra.mxu0 0
  %2248 = vmatprep.subr.bf16.mxu0 0
  %2249 = vmatpush1.bf16.xpose.msra.mxu0 0
  %2250 = vmatprep.subr.bf16.mxu0 0
  %2251 = vmatpush1.bf16.xpose.msra.mxu0 0
  %2252 = vmatprep.subr.bf16.mxu0 0
  %2253 = vmatpush1.bf16.xpose.msra.mxu0 0
  %2254 = vmatprep.subr.bf16.mxu0 0
  %2255 = vmatpush1.bf16.xpose.msra.mxu0 0
  %2256 = vmatprep.subr.bf16.mxu0 0
  %2257 = vmatpush1.bf16.xpose.msra.mxu0 0
  %2258 = vmatprep.subr.bf16.mxu0 0
  %2259 = vmatpush1.bf16.xpose.msra.mxu0 0
  %2260 = vmatprep.subr.bf16.mxu0 0
  %2261 = vmatpush1.bf16.xpose.msra.mxu0 0
  %2262 = vmatprep.subr.bf16.mxu0 0
  %2263 = vmatpush1.bf16.xpose.msra.mxu0 0
  %2264 = vmatprep.subr.bf16.mxu0 0
  %2265 = vmatpush1.bf16.xpose.msra.mxu0 0
  %2266 = vmatprep.subr.bf16.mxu0 0
  %2267 = vmatpush1.bf16.xpose.msra.mxu0 0
  %2268 = vmatprep.mubr.bf16.mxu0 0
  %2269 = vmatmul.mubr.bf16.gmra.mrb[0].mxu0 %v2231
  %v2270 = vpop.f32.mrb[0].mxu0
  %v2271 = vadd.f32 %v319, %v2270
  %v2272 = vpop.f32.mrb[0].mxu0
  %v2273 = vpop.f32.mrb[0].mxu0
  %v2274 = vadd.f32 %v320, %v2273
  %v2275 = vpop.f32.mrb[0].mxu0
  %2276 = vdwg.mxu0
  %v2277 = vsel %vm441, %v2271, -inf
  %2278 = vmax.xlane.f32.xlu0 %v2277
  %v2279 = vpop.xlane.xlu0 %2278
  %v2280 = vsel %vm441, %v2274, -inf
  %2281 = vmax.xlane.f32.xlu0 %v2280
  %v2282 = vpop.xlane.xlu0 %2281
  %v2283 = vsub.f32 %v2271, %v2279
  %v2284 = vsub.f32 %v2274, %v2282
  %v2285 = vmul.f32 %v2283, 1.442695
  %v2286 = vpow.pop %v2285
  %v2287 = vmul.f32 %v2284, 1.442695
  %v2288 = vpow.pop %v2287
  %v2289 = vsel %vm441, %v2286, 0.0
  %2290 = vadd.xlane.f32.xlu0 %v2289
  %v2291 = vpop.xlane.xlu0 %2290
  %v2292 = vsel %vm441, %v2288, 0.0
  %2293 = vadd.xlane.f32.xlu0 %v2292
  %v2294 = vpop.xlane.xlu0 %2293
  %v2295 = vrcp.pop %v2291
  %v2296 = vmul.f32 %v2286, %v2295
  %v2297 = vrcp.pop %v2294
  %v2298 = vmul.f32 %v2288, %v2297
  %v2299 = vpack.c.bf16 %v2298, %v2296
  %2300 = vrot.lane.b32.xlu0 %v1863, 40
  %v2301 = vpop.permute.xlu0 %2300
  %v2304 = vsel %vm441, %v2299, 0
  %2306 = vmatprep.subr.bf16.mxu0 0
  %2307 = vmatpush1.bf16.msra.mxu0 %v2301
  %2308 = vmatprep.subr.bf16.mxu0 0
  %2309 = vmatpush1.bf16.msra.mxu0 0
  %2310 = vmatprep.subr.bf16.mxu0 0
  %2311 = vmatpush1.bf16.msra.mxu0 0
  %2312 = vmatprep.subr.bf16.mxu0 0
  %2313 = vmatpush1.bf16.msra.mxu0 0
  %2314 = vmatprep.subr.bf16.mxu0 0
  %2315 = vmatpush1.bf16.msra.mxu0 0
  %2316 = vmatprep.subr.bf16.mxu0 0
  %2317 = vmatpush1.bf16.msra.mxu0 0
  %2318 = vmatprep.subr.bf16.mxu0 0
  %2319 = vmatpush1.bf16.msra.mxu0 0
  %2320 = vmatprep.subr.bf16.mxu0 0
  %2321 = vmatpush1.bf16.msra.mxu0 0
  %2322 = vmatprep.subr.bf16.mxu0 0
  %2323 = vmatpush1.bf16.msra.mxu0 0
  %2324 = vmatprep.subr.bf16.mxu0 0
  %2325 = vmatpush1.bf16.msra.mxu0 0
  %2326 = vmatprep.subr.bf16.mxu0 0
  %2327 = vmatpush1.bf16.msra.mxu0 0
  %2328 = vmatprep.subr.bf16.mxu0 0
  %2329 = vmatpush1.bf16.msra.mxu0 0
  %2330 = vmatprep.subr.bf16.mxu0 0
  %2331 = vmatpush1.bf16.msra.mxu0 0
  %2332 = vmatprep.subr.bf16.mxu0 0
  %2333 = vmatpush1.bf16.msra.mxu0 0
  %2334 = vmatprep.subr.bf16.mxu0 0
  %2335 = vmatpush1.bf16.msra.mxu0 0
  %2336 = vmatprep.subr.bf16.mxu0 0
  %2337 = vmatpush1.bf16.msra.mxu0 0
  %2338 = vmatprep.mubr.bf16.mxu0 0
  %2339 = vmatmul.mubr.bf16.gmra.mrb[0].mxu0 %v2304
  %v2340 = vpop.f32.mrb[0].mxu0
  %v2341 = vadd.f32 0.0, %v2340
  %v2342 = vpop.f32.mrb[0].mxu0
  %v2343 = vpop.f32.mrb[0].mxu0
  %v2344 = vadd.f32 0.0, %v2343
  %v2345 = vpop.f32.mrb[0].mxu0
  %2346 = vdwg.mxu0
  %2349 = vrot.lane.b32.xlu0 %v2099, 8
  %v2350 = vpop.permute.xlu0 %2349
  %2351 = vrot.lane.b32.xlu0 %v2102, 8
  %v2352 = vpop.permute.xlu0 %2351
  %2357 = vrot.lane.b32.xlu0 %v2220, 16
  %v2358 = vpop.permute.xlu0 %2357
  %2359 = vrot.lane.b32.xlu0 %v2223, 16
  %v2360 = vpop.permute.xlu0 %2359
  %2365 = vrot.lane.b32.xlu0 %v2341, 24
  %v2366 = vpop.permute.xlu0 %2365
  %2367 = vrot.lane.b32.xlu0 %v2344, 24
  %v2368 = vpop.permute.xlu0 %2367
  %v2371 = vsel %vm393, %v1978, %v2350
  %v2372 = vsel %vm393, %v1981, %v2352
  %v2373 = vsel %vm441, %v2371, %v2358
  %v2374 = vsel %vm441, %v2372, %v2360
  %v2375 = vsel %vm903, %v2373, %v2366
  %v2376 = vsel %vm903, %v2374, %v2368
  %v2377 = vpack.c.bf16 %v2376, %v2375
  %s2378 = scalar_lea.vmem %s10, 16
  %v2379 = vld [vmem:[%s2378] sm:$0xf]
  %v2380 = vld [vmem:[%s2378 + $0x4] sm:$0xf]
  %v2381 = vld [vmem:[%s2378 + $0x8] sm:$0xf]
  %v2382 = vld [vmem:[%s2378 + $0xc] sm:$0xf]
  %s2383 = scalar_lea.vmem %s11, 1
  %v2384 = vld [vmem:[%s2383] sm:$0x1]
  %v2386 = vlaneseq
  %v2387 = vshrl.u32 %v2386, 7
  %v2388 = vsub.s32 0, %v2387
  %v2389 = vrot.slane %v2384, %v2388
  %v2395 = vunpack.c.l.b16 %v2379
  %v2396 = vunpack.c.l.b16 %v2380
  %v2397 = vunpack.c.l.b16 %v2381
  %v2398 = vunpack.c.l.b16 %v2382
  %v2399 = vpack.c.b16 %v2396, %v2395
  %v2400 = vpack.c.b16 %v2398, %v2397
  %v2404 = vsel %vm171, %v2377, 0
  %2406 = vmatprep.subr.bf16.mxu0 0
  %2407 = vmatpush1.bf16.msra.mxu0 %v2399
  %2408 = vmatprep.subr.bf16.mxu0 0
  %2409 = vmatpush1.bf16.msra.mxu0 %v2400
  %2410 = vmatprep.subr.bf16.mxu0 0
  %2411 = vmatpush1.bf16.msra.mxu0 0
  %2412 = vmatprep.subr.bf16.mxu0 0
  %2413 = vmatpush1.bf16.msra.mxu0 0
  %2414 = vmatprep.subr.bf16.mxu0 0
  %2415 = vmatpush1.bf16.msra.mxu0 0
  %2416 = vmatprep.subr.bf16.mxu0 0
  %2417 = vmatpush1.bf16.msra.mxu0 0
  %2418 = vmatprep.subr.bf16.mxu0 0
  %2419 = vmatpush1.bf16.msra.mxu0 0
  %2420 = vmatprep.subr.bf16.mxu0 0
  %2421 = vmatpush1.bf16.msra.mxu0 0
  %2422 = vmatprep.subr.bf16.mxu0 0
  %2423 = vmatpush1.bf16.msra.mxu0 0
  %2424 = vmatprep.subr.bf16.mxu0 0
  %2425 = vmatpush1.bf16.msra.mxu0 0
  %2426 = vmatprep.subr.bf16.mxu0 0
  %2427 = vmatpush1.bf16.msra.mxu0 0
  %2428 = vmatprep.subr.bf16.mxu0 0
  %2429 = vmatpush1.bf16.msra.mxu0 0
  %2430 = vmatprep.subr.bf16.mxu0 0
  %2431 = vmatpush1.bf16.msra.mxu0 0
  %2432 = vmatprep.subr.bf16.mxu0 0
  %2433 = vmatpush1.bf16.msra.mxu0 0
  %2434 = vmatprep.subr.bf16.mxu0 0
  %2435 = vmatpush1.bf16.msra.mxu0 0
  %2436 = vmatprep.subr.bf16.mxu0 0
  %2437 = vmatpush1.bf16.msra.mxu0 0
  %2438 = vmatprep.mubr.bf16.mxu0 0
  %2439 = vmatmul.mubr.bf16.gmra.mrb[0].mxu0 %v2404
  %v2440 = vpop.f32.mrb[0].mxu0
  %v2441 = vadd.f32 %v2389, %v2440
  %v2442 = vpop.f32.mrb[0].mxu0
  %v2443 = vpop.f32.mrb[0].mxu0
  %v2444 = vadd.f32 %v2389, %v2443
  %v2445 = vpop.f32.mrb[0].mxu0
  %2446 = vdwg.mxu0
  %v2447 = vadd.f32 %v1791, %v2441
  %v2448 = vadd.f32 %v1792, %v2444
  %s2449 = scalar_lea.vmem %s16, 1
  %v2450 = vld [vmem:[%s2449] sm:$0x1]
  %s2451 = scalar_lea.vmem %s17, 1
  %v2452 = vld [vmem:[%s2451] sm:$0x1]
  %v2453 = vsel %vm171, %v2447, 0.0
  %2454 = vadd.xlane.f32.xlu0 %v2453
  %v2455 = vpop.xlane.xlu0 %2454
  %v2456 = vsel %vm171, %v2448, 0.0
  %2457 = vadd.xlane.f32.xlu0 %v2456
  %v2458 = vpop.xlane.xlu0 %2457
  %v2459 = vmul.f32 %v2455, %v282
  %v2460 = vmul.f32 %v2458, %v282
  %v2461 = vsub.f32 %v2447, %v2459
  %v2462 = vsub.f32 %v2448, %v2460
  %v2463 = vmul.f32 %v2461, %v2461
  %v2464 = vmul.f32 %v2462, %v2462
  %v2465 = vsel %vm171, %v2463, 0.0
  %2466 = vadd.xlane.f32.xlu0 %v2465
  %v2467 = vpop.xlane.xlu0 %2466
  %v2468 = vsel %vm171, %v2464, 0.0
  %2469 = vadd.xlane.f32.xlu0 %v2468
  %v2470 = vpop.xlane.xlu0 %2469
  %v2471 = vmul.f32 %v2467, %v282
  %v2472 = vmul.f32 %v2470, %v282
  %v2473 = vadd.f32 %v2471, 1e-05
  %v2474 = vadd.f32 %v2472, 1e-05
  %v2475 = vrsqrt.pop %v2473
  %v2476 = vrsqrt.pop %v2474
  %v2477 = vmul.f32 %v2461, %v2475
  %v2478 = vmul.f32 %v2462, %v2476
  %v2480 = vlaneseq
  %v2481 = vshrl.u32 %v2480, 7
  %v2482 = vsub.s32 0, %v2481
  %v2483 = vrot.slane %v2450, %v2482
  %v2485 = vmul.f32 %v2477, %v2483
  %v2486 = vmul.f32 %v2478, %v2483
  %v2488 = vlaneseq
  %v2489 = vshrl.u32 %v2488, 7
  %v2490 = vsub.s32 0, %v2489
  %v2491 = vrot.slane %v2452, %v2490
  %v2493 = vadd.f32 %v2485, %v2491
  %v2494 = vadd.f32 %v2486, %v2491
  %v2495 = vpack.c.bf16 %v2494, %v2493
  %s2496 = scalar_lea.vmem %s12, 64
  %v2497 = vld [vmem:[%s2496] sm:$0xff]
  %v2498 = vld [vmem:[%s2496 + $0x8] sm:$0xff]
  %v2499 = vld [vmem:[%s2496 + $0x10] sm:$0xff]
  %v2500 = vld [vmem:[%s2496 + $0x18] sm:$0xff]
  %v2501 = vld [vmem:[%s2496 + $0x20] sm:$0xff]
  %v2502 = vld [vmem:[%s2496 + $0x28] sm:$0xff]
  %v2503 = vld [vmem:[%s2496 + $0x30] sm:$0xff]
  %v2504 = vld [vmem:[%s2496 + $0x38] sm:$0xff]
  %s2505 = scalar_lea.vmem %s13, 4
  %v2506 = vld [vmem:[%s2505] sm:$0xf]
  %v2508 = vlaneseq
  %v2509 = vshrl.u32 %v2508, 7
  %v2510 = vsub.s32 0, %v2509
  %v2511 = vrot.slane %v2506, %v2510
  %v2512 = vlaneseq
  %v2513 = vshrl.u32 %v2512, 7
  %v2514 = vsub.s32 1, %v2513
  %v2515 = vrot.slane %v2506, %v2514
  %v2516 = vlaneseq
  %v2517 = vshrl.u32 %v2516, 7
  %v2518 = vsub.s32 2, %v2517
  %v2519 = vrot.slane %v2506, %v2518
  %v2520 = vlaneseq
  %v2521 = vshrl.u32 %v2520, 7
  %v2522 = vsub.s32 3, %v2521
  %v2523 = vrot.slane %v2506, %v2522
  %v2536 = vunpack.c.l.b16 %v2497
  %v2537 = vunpack.c.h.b16 %v2497
  %v2538 = vunpack.c.l.b16 %v2498
  %v2539 = vunpack.c.h.b16 %v2498
  %v2540 = vunpack.c.l.b16 %v2499
  %v2541 = vunpack.c.h.b16 %v2499
  %v2542 = vunpack.c.l.b16 %v2500
  %v2543 = vunpack.c.h.b16 %v2500
  %v2544 = vunpack.c.l.b16 %v2501
  %v2545 = vunpack.c.h.b16 %v2501
  %v2546 = vunpack.c.l.b16 %v2502
  %v2547 = vunpack.c.h.b16 %v2502
  %v2548 = vunpack.c.l.b16 %v2503
  %v2549 = vunpack.c.h.b16 %v2503
  %v2550 = vunpack.c.l.b16 %v2504
  %v2551 = vunpack.c.h.b16 %v2504
  %v2552 = vpack.c.b16 %v2540, %v2536
  %v2553 = vpack.c.b16 %v2541, %v2537
  %v2554 = vpack.c.b16 %v2542, %v2538
  %v2555 = vpack.c.b16 %v2543, %v2539
  %v2556 = vpack.c.b16 %v2548, %v2544
  %v2557 = vpack.c.b16 %v2549, %v2545
  %v2558 = vpack.c.b16 %v2550, %v2546
  %v2559 = vpack.c.b16 %v2551, %v2547
  %v2569 = vsel %vm171, %v2495, 0
  %2571 = vmatprep.subr.bf16.mxu0 %v2553
  %2572 = vmatpush1.bf16.msra.mxu0 %v2552
  %2573 = vmatprep.subr.bf16.mxu0 %v2557
  %2574 = vmatpush1.bf16.msra.mxu0 %v2556
  %2575 = vmatprep.subr.bf16.mxu0 0
  %2576 = vmatpush1.bf16.msra.mxu0 0
  %2577 = vmatprep.subr.bf16.mxu0 0
  %2578 = vmatpush1.bf16.msra.mxu0 0
  %2579 = vmatprep.subr.bf16.mxu0 0
  %2580 = vmatpush1.bf16.msra.mxu0 0
  %2581 = vmatprep.subr.bf16.mxu0 0
  %2582 = vmatpush1.bf16.msra.mxu0 0
  %2583 = vmatprep.subr.bf16.mxu0 0
  %2584 = vmatpush1.bf16.msra.mxu0 0
  %2585 = vmatprep.subr.bf16.mxu0 0
  %2586 = vmatpush1.bf16.msra.mxu0 0
  %2587 = vmatprep.subr.bf16.mxu0 0
  %2588 = vmatpush1.bf16.msra.mxu0 0
  %2589 = vmatprep.subr.bf16.mxu0 0
  %2590 = vmatpush1.bf16.msra.mxu0 0
  %2591 = vmatprep.subr.bf16.mxu0 0
  %2592 = vmatpush1.bf16.msra.mxu0 0
  %2593 = vmatprep.subr.bf16.mxu0 0
  %2594 = vmatpush1.bf16.msra.mxu0 0
  %2595 = vmatprep.subr.bf16.mxu0 0
  %2596 = vmatpush1.bf16.msra.mxu0 0
  %2597 = vmatprep.subr.bf16.mxu0 0
  %2598 = vmatpush1.bf16.msra.mxu0 0
  %2599 = vmatprep.subr.bf16.mxu0 0
  %2600 = vmatpush1.bf16.msra.mxu0 0
  %2601 = vmatprep.subr.bf16.mxu0 0
  %2602 = vmatpush1.bf16.msra.mxu0 0
  %2603 = vmatprep.mubr.bf16.mxu0 0
  %2604 = vmatmul.mubr.bf16.gmra.mrb[0].mxu0 %v2569
  %v2605 = vpop.f32.mrb[0].mxu0
  %v2606 = vadd.f32 %v2511, %v2605
  %v2607 = vpop.f32.mrb[0].mxu0
  %v2608 = vadd.f32 %v2515, %v2607
  %v2609 = vpop.f32.mrb[0].mxu0
  %v2610 = vadd.f32 %v2511, %v2609
  %v2611 = vpop.f32.mrb[0].mxu0
  %v2612 = vadd.f32 %v2515, %v2611
  %2613 = vdwg.mxu0
  %2614 = vmatprep.subr.bf16.mxu0 %v2555
  %2615 = vmatpush1.bf16.msra.mxu0 %v2554
  %2616 = vmatprep.subr.bf16.mxu0 %v2559
  %2617 = vmatpush1.bf16.msra.mxu0 %v2558
  %2618 = vmatprep.subr.bf16.mxu0 0
  %2619 = vmatpush1.bf16.msra.mxu0 0
  %2620 = vmatprep.subr.bf16.mxu0 0
  %2621 = vmatpush1.bf16.msra.mxu0 0
  %2622 = vmatprep.subr.bf16.mxu0 0
  %2623 = vmatpush1.bf16.msra.mxu0 0
  %2624 = vmatprep.subr.bf16.mxu0 0
  %2625 = vmatpush1.bf16.msra.mxu0 0
  %2626 = vmatprep.subr.bf16.mxu0 0
  %2627 = vmatpush1.bf16.msra.mxu0 0
  %2628 = vmatprep.subr.bf16.mxu0 0
  %2629 = vmatpush1.bf16.msra.mxu0 0
  %2630 = vmatprep.subr.bf16.mxu0 0
  %2631 = vmatpush1.bf16.msra.mxu0 0
  %2632 = vmatprep.subr.bf16.mxu0 0
  %2633 = vmatpush1.bf16.msra.mxu0 0
  %2634 = vmatprep.subr.bf16.mxu0 0
  %2635 = vmatpush1.bf16.msra.mxu0 0
  %2636 = vmatprep.subr.bf16.mxu0 0
  %2637 = vmatpush1.bf16.msra.mxu0 0
  %2638 = vmatprep.subr.bf16.mxu0 0
  %2639 = vmatpush1.bf16.msra.mxu0 0
  %2640 = vmatprep.subr.bf16.mxu0 0
  %2641 = vmatpush1.bf16.msra.mxu0 0
  %2642 = vmatprep.subr.bf16.mxu0 0
  %2643 = vmatpush1.bf16.msra.mxu0 0
  %2644 = vmatprep.subr.bf16.mxu0 0
  %2645 = vmatpush1.bf16.msra.mxu0 0
  %2646 = vmatprep.mubr.bf16.mxu0 0
  %2647 = vmatmul.mubr.bf16.gmra.mrb[0].mxu0 %v2569
  %v2648 = vpop.f32.mrb[0].mxu0
  %v2649 = vadd.f32 %v2519, %v2648
  %v2650 = vpop.f32.mrb[0].mxu0
  %v2651 = vadd.f32 %v2523, %v2650
  %v2652 = vpop.f32.mrb[0].mxu0
  %v2653 = vadd.f32 %v2519, %v2652
  %v2654 = vpop.f32.mrb[0].mxu0
  %v2655 = vadd.f32 %v2523, %v2654
  %2656 = vdwg.mxu0
  %v2657 = vmul.f32 %v2606, 0.5
  %v2658 = vmul.f32 %v2608, 0.5
  %v2659 = vmul.f32 %v2649, 0.5
  %v2660 = vmul.f32 %v2651, 0.5
  %v2661 = vmul.f32 %v2610, 0.5
  %v2662 = vmul.f32 %v2612, 0.5
  %v2663 = vmul.f32 %v2653, 0.5
  %v2664 = vmul.f32 %v2655, 0.5
  %v2665 = vmul.f32 %v2606, 0.70710677
  %v2666 = vmul.f32 %v2608, 0.70710677
  %v2667 = vmul.f32 %v2649, 0.70710677
  %v2668 = vmul.f32 %v2651, 0.70710677
  %v2669 = vmul.f32 %v2610, 0.70710677
  %v2670 = vmul.f32 %v2612, 0.70710677
  %v2671 = vmul.f32 %v2653, 0.70710677
  %v2672 = vmul.f32 %v2655, 0.70710677
  %v2673 = vand.u32 2147483647, %v2665
  %v2674 = vand.u32 2147483647, %v2666
  %v2675 = vand.u32 2147483647, %v2667
  %v2676 = vand.u32 2147483647, %v2668
  %v2677 = vand.u32 2147483647, %v2669
  %v2678 = vand.u32 2147483647, %v2670
  %v2679 = vand.u32 2147483647, %v2671
  %v2680 = vand.u32 2147483647, %v2672
  %v2681 = vmul.f32 %v2673, 0.3275911
  %v2682 = vmul.f32 %v2674, 0.3275911
  %v2683 = vmul.f32 %v2675, 0.3275911
  %v2684 = vmul.f32 %v2676, 0.3275911
  %v2685 = vmul.f32 %v2677, 0.3275911
  %v2686 = vmul.f32 %v2678, 0.3275911
  %v2687 = vmul.f32 %v2679, 0.3275911
  %v2688 = vmul.f32 %v2680, 0.3275911
  %v2689 = vadd.f32 %v2681, 1.0
  %v2690 = vadd.f32 %v2682, 1.0
  %v2691 = vadd.f32 %v2683, 1.0
  %v2692 = vadd.f32 %v2684, 1.0
  %v2693 = vadd.f32 %v2685, 1.0
  %v2694 = vadd.f32 %v2686, 1.0
  %v2695 = vadd.f32 %v2687, 1.0
  %v2696 = vadd.f32 %v2688, 1.0
  %v2697 = vrcp.pop %v2689
  %v2698 = vmul.f32 1.0, %v2697
  %v2699 = vrcp.pop %v2690
  %v2700 = vmul.f32 1.0, %v2699
  %v2701 = vrcp.pop %v2691
  %v2702 = vmul.f32 1.0, %v2701
  %v2703 = vrcp.pop %v2692
  %v2704 = vmul.f32 1.0, %v2703
  %v2705 = vrcp.pop %v2693
  %v2706 = vmul.f32 1.0, %v2705
  %v2707 = vrcp.pop %v2694
  %v2708 = vmul.f32 1.0, %v2707
  %v2709 = vrcp.pop %v2695
  %v2710 = vmul.f32 1.0, %v2709
  %v2711 = vrcp.pop %v2696
  %v2712 = vmul.f32 1.0, %v2711
  %v2713 = vmul.f32 %v2698, 1.0614054
  %v2714 = vmul.f32 %v2700, 1.0614054
  %v2715 = vmul.f32 %v2702, 1.0614054
  %v2716 = vmul.f32 %v2704, 1.0614054
  %v2717 = vmul.f32 %v2706, 1.0614054
  %v2718 = vmul.f32 %v2708, 1.0614054
  %v2719 = vmul.f32 %v2710, 1.0614054
  %v2720 = vmul.f32 %v2712, 1.0614054
  %v2721 = vadd.f32 %v2713, -1.4531521
  %v2722 = vadd.f32 %v2714, -1.4531521
  %v2723 = vadd.f32 %v2715, -1.4531521
  %v2724 = vadd.f32 %v2716, -1.4531521
  %v2725 = vadd.f32 %v2717, -1.4531521
  %v2726 = vadd.f32 %v2718, -1.4531521
  %v2727 = vadd.f32 %v2719, -1.4531521
  %v2728 = vadd.f32 %v2720, -1.4531521
  %v2729 = vmul.f32 %v2721, %v2698
  %v2730 = vmul.f32 %v2722, %v2700
  %v2731 = vmul.f32 %v2723, %v2702
  %v2732 = vmul.f32 %v2724, %v2704
  %v2733 = vmul.f32 %v2725, %v2706
  %v2734 = vmul.f32 %v2726, %v2708
  %v2735 = vmul.f32 %v2727, %v2710
  %v2736 = vmul.f32 %v2728, %v2712
  %v2737 = vadd.f32 %v2729, 1.4214138
  %v2738 = vadd.f32 %v2730, 1.4214138
  %v2739 = vadd.f32 %v2731, 1.4214138
  %v2740 = vadd.f32 %v2732, 1.4214138
  %v2741 = vadd.f32 %v2733, 1.4214138
  %v2742 = vadd.f32 %v2734, 1.4214138
  %v2743 = vadd.f32 %v2735, 1.4214138
  %v2744 = vadd.f32 %v2736, 1.4214138
  %v2745 = vmul.f32 %v2737, %v2698
  %v2746 = vmul.f32 %v2738, %v2700
  %v2747 = vmul.f32 %v2739, %v2702
  %v2748 = vmul.f32 %v2740, %v2704
  %v2749 = vmul.f32 %v2741, %v2706
  %v2750 = vmul.f32 %v2742, %v2708
  %v2751 = vmul.f32 %v2743, %v2710
  %v2752 = vmul.f32 %v2744, %v2712
  %v2753 = vadd.f32 %v2745, -0.28449672
  %v2754 = vadd.f32 %v2746, -0.28449672
  %v2755 = vadd.f32 %v2747, -0.28449672
  %v2756 = vadd.f32 %v2748, -0.28449672
  %v2757 = vadd.f32 %v2749, -0.28449672
  %v2758 = vadd.f32 %v2750, -0.28449672
  %v2759 = vadd.f32 %v2751, -0.28449672
  %v2760 = vadd.f32 %v2752, -0.28449672
  %v2761 = vmul.f32 %v2753, %v2698
  %v2762 = vmul.f32 %v2754, %v2700
  %v2763 = vmul.f32 %v2755, %v2702
  %v2764 = vmul.f32 %v2756, %v2704
  %v2765 = vmul.f32 %v2757, %v2706
  %v2766 = vmul.f32 %v2758, %v2708
  %v2767 = vmul.f32 %v2759, %v2710
  %v2768 = vmul.f32 %v2760, %v2712
  %v2769 = vadd.f32 %v2761, 0.2548296
  %v2770 = vadd.f32 %v2762, 0.2548296
  %v2771 = vadd.f32 %v2763, 0.2548296
  %v2772 = vadd.f32 %v2764, 0.2548296
  %v2773 = vadd.f32 %v2765, 0.2548296
  %v2774 = vadd.f32 %v2766, 0.2548296
  %v2775 = vadd.f32 %v2767, 0.2548296
  %v2776 = vadd.f32 %v2768, 0.2548296
  %v2777 = vmul.f32 %v2769, %v2698
  %v2778 = vmul.f32 %v2770, %v2700
  %v2779 = vmul.f32 %v2771, %v2702
  %v2780 = vmul.f32 %v2772, %v2704
  %v2781 = vmul.f32 %v2773, %v2706
  %v2782 = vmul.f32 %v2774, %v2708
  %v2783 = vmul.f32 %v2775, %v2710
  %v2784 = vmul.f32 %v2776, %v2712
  %v2785 = vsub.f32 0.0, %v2673
  %v2786 = vsub.f32 0.0, %v2674
  %v2787 = vsub.f32 0.0, %v2675
  %v2788 = vsub.f32 0.0, %v2676
  %v2789 = vsub.f32 0.0, %v2677
  %v2790 = vsub.f32 0.0, %v2678
  %v2791 = vsub.f32 0.0, %v2679
  %v2792 = vsub.f32 0.0, %v2680
  %v2793 = vmul.f32 %v2785, %v2673
  %v2794 = vmul.f32 %v2786, %v2674
  %v2795 = vmul.f32 %v2787, %v2675
  %v2796 = vmul.f32 %v2788, %v2676
  %v2797 = vmul.f32 %v2789, %v2677
  %v2798 = vmul.f32 %v2790, %v2678
  %v2799 = vmul.f32 %v2791, %v2679
  %v2800 = vmul.f32 %v2792, %v2680
  %v2801 = vmul.f32 %v2793, 1.442695
  %v2802 = vpow.pop %v2801
  %v2803 = vmul.f32 %v2794, 1.442695
  %v2804 = vpow.pop %v2803
  %v2805 = vmul.f32 %v2795, 1.442695
  %v2806 = vpow.pop %v2805
  %v2807 = vmul.f32 %v2796, 1.442695
  %v2808 = vpow.pop %v2807
  %v2809 = vmul.f32 %v2797, 1.442695
  %v2810 = vpow.pop %v2809
  %v2811 = vmul.f32 %v2798, 1.442695
  %v2812 = vpow.pop %v2811
  %v2813 = vmul.f32 %v2799, 1.442695
  %v2814 = vpow.pop %v2813
  %v2815 = vmul.f32 %v2800, 1.442695
  %v2816 = vpow.pop %v2815
  %v2817 = vmul.f32 %v2777, %v2802
  %v2818 = vmul.f32 %v2778, %v2804
  %v2819 = vmul.f32 %v2779, %v2806
  %v2820 = vmul.f32 %v2780, %v2808
  %v2821 = vmul.f32 %v2781, %v2810
  %v2822 = vmul.f32 %v2782, %v2812
  %v2823 = vmul.f32 %v2783, %v2814
  %v2824 = vmul.f32 %v2784, %v2816
  %v2825 = vsub.f32 1.0, %v2817
  %v2826 = vsub.f32 1.0, %v2818
  %v2827 = vsub.f32 1.0, %v2819
  %v2828 = vsub.f32 1.0, %v2820
  %v2829 = vsub.f32 1.0, %v2821
  %v2830 = vsub.f32 1.0, %v2822
  %v2831 = vsub.f32 1.0, %v2823
  %v2832 = vsub.f32 1.0, %v2824
  %vm2833 = vcmp.ge.f32.partialorder %v2665, 0.0
  %vm2834 = vcmp.ge.f32.partialorder %v2666, 0.0
  %vm2835 = vcmp.ge.f32.partialorder %v2667, 0.0
  %vm2836 = vcmp.ge.f32.partialorder %v2668, 0.0
  %vm2837 = vcmp.ge.f32.partialorder %v2669, 0.0
  %vm2838 = vcmp.ge.f32.partialorder %v2670, 0.0
  %vm2839 = vcmp.ge.f32.partialorder %v2671, 0.0
  %vm2840 = vcmp.ge.f32.partialorder %v2672, 0.0
  %v2841 = vsub.f32 0.0, %v2825
  %v2842 = vsub.f32 0.0, %v2826
  %v2843 = vsub.f32 0.0, %v2827
  %v2844 = vsub.f32 0.0, %v2828
  %v2845 = vsub.f32 0.0, %v2829
  %v2846 = vsub.f32 0.0, %v2830
  %v2847 = vsub.f32 0.0, %v2831
  %v2848 = vsub.f32 0.0, %v2832
  %v2849 = vsel %vm2833, %v2825, %v2841
  %v2850 = vsel %vm2834, %v2826, %v2842
  %v2851 = vsel %vm2835, %v2827, %v2843
  %v2852 = vsel %vm2836, %v2828, %v2844
  %v2853 = vsel %vm2837, %v2829, %v2845
  %v2854 = vsel %vm2838, %v2830, %v2846
  %v2855 = vsel %vm2839, %v2831, %v2847
  %v2856 = vsel %vm2840, %v2832, %v2848
  %v2857 = vadd.f32 %v2849, 1.0
  %v2858 = vadd.f32 %v2850, 1.0
  %v2859 = vadd.f32 %v2851, 1.0
  %v2860 = vadd.f32 %v2852, 1.0
  %v2861 = vadd.f32 %v2853, 1.0
  %v2862 = vadd.f32 %v2854, 1.0
  %v2863 = vadd.f32 %v2855, 1.0
  %v2864 = vadd.f32 %v2856, 1.0
  %v2865 = vmul.f32 %v2657, %v2857
  %v2866 = vmul.f32 %v2658, %v2858
  %v2867 = vmul.f32 %v2659, %v2859
  %v2868 = vmul.f32 %v2660, %v2860
  %v2869 = vmul.f32 %v2661, %v2861
  %v2870 = vmul.f32 %v2662, %v2862
  %v2871 = vmul.f32 %v2663, %v2863
  %v2872 = vmul.f32 %v2664, %v2864
  %v2873 = vpack.c.bf16 %v2869, %v2865
  %v2874 = vpack.c.bf16 %v2870, %v2866
  %v2875 = vpack.c.bf16 %v2871, %v2867
  %v2876 = vpack.c.bf16 %v2872, %v2868
  %s2877 = scalar_lea.vmem %s14, 256
  %v2878 = vld [vmem:[%s2877] sm:$0xf]
  %v2879 = vld [vmem:[%s2877 + $0x4] sm:$0xf]
  %v2880 = vld [vmem:[%s2877 + $0x8] sm:$0xf]
  %v2881 = vld [vmem:[%s2877 + $0xc] sm:$0xf]
  %v2882 = vld [vmem:[%s2877 + $0x10] sm:$0xf]
  %v2883 = vld [vmem:[%s2877 + $0x14] sm:$0xf]
  %v2884 = vld [vmem:[%s2877 + $0x18] sm:$0xf]
  %v2885 = vld [vmem:[%s2877 + $0x1c] sm:$0xf]
  %v2886 = vld [vmem:[%s2877 + $0x20] sm:$0xf]
  %v2887 = vld [vmem:[%s2877 + $0x24] sm:$0xf]
  %v2888 = vld [vmem:[%s2877 + $0x28] sm:$0xf]
  %v2889 = vld [vmem:[%s2877 + $0x2c] sm:$0xf]
  %v2890 = vld [vmem:[%s2877 + $0x30] sm:$0xf]
  %v2891 = vld [vmem:[%s2877 + $0x34] sm:$0xf]
  %v2892 = vld [vmem:[%s2877 + $0x38] sm:$0xf]
  %v2893 = vld [vmem:[%s2877 + $0x3c] sm:$0xf]
  %v2894 = vld [vmem:[%s2877 + $0x40] sm:$0xf]
  %v2895 = vld [vmem:[%s2877 + $0x44] sm:$0xf]
  %v2896 = vld [vmem:[%s2877 + $0x48] sm:$0xf]
  %v2897 = vld [vmem:[%s2877 + $0x4c] sm:$0xf]
  %v2898 = vld [vmem:[%s2877 + $0x50] sm:$0xf]
  %v2899 = vld [vmem:[%s2877 + $0x54] sm:$0xf]
  %v2900 = vld [vmem:[%s2877 + $0x58] sm:$0xf]
  %v2901 = vld [vmem:[%s2877 + $0x5c] sm:$0xf]
  %v2902 = vld [vmem:[%s2877 + $0x60] sm:$0xf]
  %v2903 = vld [vmem:[%s2877 + $0x64] sm:$0xf]
  %v2904 = vld [vmem:[%s2877 + $0x68] sm:$0xf]
  %v2905 = vld [vmem:[%s2877 + $0x6c] sm:$0xf]
  %v2906 = vld [vmem:[%s2877 + $0x70] sm:$0xf]
  %v2907 = vld [vmem:[%s2877 + $0x74] sm:$0xf]
  %v2908 = vld [vmem:[%s2877 + $0x78] sm:$0xf]
  %v2909 = vld [vmem:[%s2877 + $0x7c] sm:$0xf]
  %v2910 = vld [vmem:[%s2877 + $0x80] sm:$0xf]
  %v2911 = vld [vmem:[%s2877 + $0x84] sm:$0xf]
  %v2912 = vld [vmem:[%s2877 + $0x88] sm:$0xf]
  %v2913 = vld [vmem:[%s2877 + $0x8c] sm:$0xf]
  %v2914 = vld [vmem:[%s2877 + $0x90] sm:$0xf]
  %v2915 = vld [vmem:[%s2877 + $0x94] sm:$0xf]
  %v2916 = vld [vmem:[%s2877 + $0x98] sm:$0xf]
  %v2917 = vld [vmem:[%s2877 + $0x9c] sm:$0xf]
  %v2918 = vld [vmem:[%s2877 + $0xa0] sm:$0xf]
  %v2919 = vld [vmem:[%s2877 + $0xa4] sm:$0xf]
  %v2920 = vld [vmem:[%s2877 + $0xa8] sm:$0xf]
  %v2921 = vld [vmem:[%s2877 + $0xac] sm:$0xf]
  %v2922 = vld [vmem:[%s2877 + $0xb0] sm:$0xf]
  %v2923 = vld [vmem:[%s2877 + $0xb4] sm:$0xf]
  %v2924 = vld [vmem:[%s2877 + $0xb8] sm:$0xf]
  %v2925 = vld [vmem:[%s2877 + $0xbc] sm:$0xf]
  %v2926 = vld [vmem:[%s2877 + $0xc0] sm:$0xf]
  %v2927 = vld [vmem:[%s2877 + $0xc4] sm:$0xf]
  %v2928 = vld [vmem:[%s2877 + $0xc8] sm:$0xf]
  %v2929 = vld [vmem:[%s2877 + $0xcc] sm:$0xf]
  %v2930 = vld [vmem:[%s2877 + $0xd0] sm:$0xf]
  %v2931 = vld [vmem:[%s2877 + $0xd4] sm:$0xf]
  %v2932 = vld [vmem:[%s2877 + $0xd8] sm:$0xf]
  %v2933 = vld [vmem:[%s2877 + $0xdc] sm:$0xf]
  %v2934 = vld [vmem:[%s2877 + $0xe0] sm:$0xf]
  %v2935 = vld [vmem:[%s2877 + $0xe4] sm:$0xf]
  %v2936 = vld [vmem:[%s2877 + $0xe8] sm:$0xf]
  %v2937 = vld [vmem:[%s2877 + $0xec] sm:$0xf]
  %v2938 = vld [vmem:[%s2877 + $0xf0] sm:$0xf]
  %v2939 = vld [vmem:[%s2877 + $0xf4] sm:$0xf]
  %v2940 = vld [vmem:[%s2877 + $0xf8] sm:$0xf]
  %v2941 = vld [vmem:[%s2877 + $0xfc] sm:$0xf]
  %s2942 = scalar_lea.vmem %s15, 1
  %v2943 = vld [vmem:[%s2942] sm:$0x1]
  %v2945 = vlaneseq
  %v2946 = vshrl.u32 %v2945, 7
  %v2947 = vsub.s32 0, %v2946
  %v2948 = vrot.slane %v2943, %v2947
  %v3014 = vunpack.c.l.b16 %v2878
  %v3015 = vunpack.c.l.b16 %v2879
  %v3016 = vunpack.c.l.b16 %v2880
  %v3017 = vunpack.c.l.b16 %v2881
  %v3018 = vunpack.c.l.b16 %v2882
  %v3019 = vunpack.c.l.b16 %v2883
  %v3020 = vunpack.c.l.b16 %v2884
  %v3021 = vunpack.c.l.b16 %v2885
  %v3022 = vunpack.c.l.b16 %v2886
  %v3023 = vunpack.c.l.b16 %v2887
  %v3024 = vunpack.c.l.b16 %v2888
  %v3025 = vunpack.c.l.b16 %v2889
  %v3026 = vunpack.c.l.b16 %v2890
  %v3027 = vunpack.c.l.b16 %v2891
  %v3028 = vunpack.c.l.b16 %v2892
  %v3029 = vunpack.c.l.b16 %v2893
  %v3030 = vunpack.c.l.b16 %v2894
  %v3031 = vunpack.c.l.b16 %v2895
  %v3032 = vunpack.c.l.b16 %v2896
  %v3033 = vunpack.c.l.b16 %v2897
  %v3034 = vunpack.c.l.b16 %v2898
  %v3035 = vunpack.c.l.b16 %v2899
  %v3036 = vunpack.c.l.b16 %v2900
  %v3037 = vunpack.c.l.b16 %v2901
  %v3038 = vunpack.c.l.b16 %v2902
  %v3039 = vunpack.c.l.b16 %v2903
  %v3040 = vunpack.c.l.b16 %v2904
  %v3041 = vunpack.c.l.b16 %v2905
  %v3042 = vunpack.c.l.b16 %v2906
  %v3043 = vunpack.c.l.b16 %v2907
  %v3044 = vunpack.c.l.b16 %v2908
  %v3045 = vunpack.c.l.b16 %v2909
  %v3046 = vunpack.c.l.b16 %v2910
  %v3047 = vunpack.c.l.b16 %v2911
  %v3048 = vunpack.c.l.b16 %v2912
  %v3049 = vunpack.c.l.b16 %v2913
  %v3050 = vunpack.c.l.b16 %v2914
  %v3051 = vunpack.c.l.b16 %v2915
  %v3052 = vunpack.c.l.b16 %v2916
  %v3053 = vunpack.c.l.b16 %v2917
  %v3054 = vunpack.c.l.b16 %v2918
  %v3055 = vunpack.c.l.b16 %v2919
  %v3056 = vunpack.c.l.b16 %v2920
  %v3057 = vunpack.c.l.b16 %v2921
  %v3058 = vunpack.c.l.b16 %v2922
  %v3059 = vunpack.c.l.b16 %v2923
  %v3060 = vunpack.c.l.b16 %v2924
  %v3061 = vunpack.c.l.b16 %v2925
  %v3062 = vunpack.c.l.b16 %v2926
  %v3063 = vunpack.c.l.b16 %v2927
  %v3064 = vunpack.c.l.b16 %v2928
  %v3065 = vunpack.c.l.b16 %v2929
  %v3066 = vunpack.c.l.b16 %v2930
  %v3067 = vunpack.c.l.b16 %v2931
  %v3068 = vunpack.c.l.b16 %v2932
  %v3069 = vunpack.c.l.b16 %v2933
  %v3070 = vunpack.c.l.b16 %v2934
  %v3071 = vunpack.c.l.b16 %v2935
  %v3072 = vunpack.c.l.b16 %v2936
  %v3073 = vunpack.c.l.b16 %v2937
  %v3074 = vunpack.c.l.b16 %v2938
  %v3075 = vunpack.c.l.b16 %v2939
  %v3076 = vunpack.c.l.b16 %v2940
  %v3077 = vunpack.c.l.b16 %v2941
  %v3078 = vpack.c.b16 %v3015, %v3014
  %v3079 = vpack.c.b16 %v3017, %v3016
  %v3080 = vpack.c.b16 %v3019, %v3018
  %v3081 = vpack.c.b16 %v3021, %v3020
  %v3082 = vpack.c.b16 %v3023, %v3022
  %v3083 = vpack.c.b16 %v3025, %v3024
  %v3084 = vpack.c.b16 %v3027, %v3026
  %v3085 = vpack.c.b16 %v3029, %v3028
  %v3086 = vpack.c.b16 %v3031, %v3030
  %v3087 = vpack.c.b16 %v3033, %v3032
  %v3088 = vpack.c.b16 %v3035, %v3034
  %v3089 = vpack.c.b16 %v3037, %v3036
  %v3090 = vpack.c.b16 %v3039, %v3038
  %v3091 = vpack.c.b16 %v3041, %v3040
  %v3092 = vpack.c.b16 %v3043, %v3042
  %v3093 = vpack.c.b16 %v3045, %v3044
  %v3094 = vpack.c.b16 %v3047, %v3046
  %v3095 = vpack.c.b16 %v3049, %v3048
  %v3096 = vpack.c.b16 %v3051, %v3050
  %v3097 = vpack.c.b16 %v3053, %v3052
  %v3098 = vpack.c.b16 %v3055, %v3054
  %v3099 = vpack.c.b16 %v3057, %v3056
  %v3100 = vpack.c.b16 %v3059, %v3058
  %v3101 = vpack.c.b16 %v3061, %v3060
  %v3102 = vpack.c.b16 %v3063, %v3062
  %v3103 = vpack.c.b16 %v3065, %v3064
  %v3104 = vpack.c.b16 %v3067, %v3066
  %v3105 = vpack.c.b16 %v3069, %v3068
  %v3106 = vpack.c.b16 %v3071, %v3070
  %v3107 = vpack.c.b16 %v3073, %v3072
  %v3108 = vpack.c.b16 %v3075, %v3074
  %v3109 = vpack.c.b16 %v3077, %v3076
  %3142 = vmatprep.subr.bf16.mxu0 0
  %3143 = vmatpush1.bf16.msra.mxu0 %v3078
  %3144 = vmatprep.subr.bf16.mxu0 0
  %3145 = vmatpush1.bf16.msra.mxu0 %v3079
  %3146 = vmatprep.subr.bf16.mxu0 0
  %3147 = vmatpush1.bf16.msra.mxu0 %v3080
  %3148 = vmatprep.subr.bf16.mxu0 0
  %3149 = vmatpush1.bf16.msra.mxu0 %v3081
  %3150 = vmatprep.subr.bf16.mxu0 0
  %3151 = vmatpush1.bf16.msra.mxu0 %v3082
  %3152 = vmatprep.subr.bf16.mxu0 0
  %3153 = vmatpush1.bf16.msra.mxu0 %v3083
  %3154 = vmatprep.subr.bf16.mxu0 0
  %3155 = vmatpush1.bf16.msra.mxu0 %v3084
  %3156 = vmatprep.subr.bf16.mxu0 0
  %3157 = vmatpush1.bf16.msra.mxu0 %v3085
  %3158 = vmatprep.subr.bf16.mxu0 0
  %3159 = vmatpush1.bf16.msra.mxu0 %v3086
  %3160 = vmatprep.subr.bf16.mxu0 0
  %3161 = vmatpush1.bf16.msra.mxu0 %v3087
  %3162 = vmatprep.subr.bf16.mxu0 0
  %3163 = vmatpush1.bf16.msra.mxu0 %v3088
  %3164 = vmatprep.subr.bf16.mxu0 0
  %3165 = vmatpush1.bf16.msra.mxu0 %v3089
  %3166 = vmatprep.subr.bf16.mxu0 0
  %3167 = vmatpush1.bf16.msra.mxu0 %v3090
  %3168 = vmatprep.subr.bf16.mxu0 0
  %3169 = vmatpush1.bf16.msra.mxu0 %v3091
  %3170 = vmatprep.subr.bf16.mxu0 0
  %3171 = vmatpush1.bf16.msra.mxu0 %v3092
  %3172 = vmatprep.subr.bf16.mxu0 0
  %3173 = vmatpush1.bf16.msra.mxu0 %v3093
  %3174 = vmatprep.mubr.bf16.mxu0 %v2874
  %3175 = vmatmul.mubr.bf16.gmra.mrb[0].mxu0 %v2873
  %v3176 = vpop.f32.mrb[0].mxu0
  %v3177 = vadd.f32 %v2948, %v3176
  %v3178 = vpop.f32.mrb[0].mxu0
  %v3179 = vpop.f32.mrb[0].mxu0
  %v3180 = vadd.f32 %v2948, %v3179
  %v3181 = vpop.f32.mrb[0].mxu0
  %3182 = vdwg.mxu0
  %3183 = vmatprep.subr.bf16.mxu0 0
  %3184 = vmatpush1.bf16.msra.mxu0 %v3094
  %3185 = vmatprep.subr.bf16.mxu0 0
  %3186 = vmatpush1.bf16.msra.mxu0 %v3095
  %3187 = vmatprep.subr.bf16.mxu0 0
  %3188 = vmatpush1.bf16.msra.mxu0 %v3096
  %3189 = vmatprep.subr.bf16.mxu0 0
  %3190 = vmatpush1.bf16.msra.mxu0 %v3097
  %3191 = vmatprep.subr.bf16.mxu0 0
  %3192 = vmatpush1.bf16.msra.mxu0 %v3098
  %3193 = vmatprep.subr.bf16.mxu0 0
  %3194 = vmatpush1.bf16.msra.mxu0 %v3099
  %3195 = vmatprep.subr.bf16.mxu0 0
  %3196 = vmatpush1.bf16.msra.mxu0 %v3100
  %3197 = vmatprep.subr.bf16.mxu0 0
  %3198 = vmatpush1.bf16.msra.mxu0 %v3101
  %3199 = vmatprep.subr.bf16.mxu0 0
  %3200 = vmatpush1.bf16.msra.mxu0 %v3102
  %3201 = vmatprep.subr.bf16.mxu0 0
  %3202 = vmatpush1.bf16.msra.mxu0 %v3103
  %3203 = vmatprep.subr.bf16.mxu0 0
  %3204 = vmatpush1.bf16.msra.mxu0 %v3104
  %3205 = vmatprep.subr.bf16.mxu0 0
  %3206 = vmatpush1.bf16.msra.mxu0 %v3105
  %3207 = vmatprep.subr.bf16.mxu0 0
  %3208 = vmatpush1.bf16.msra.mxu0 %v3106
  %3209 = vmatprep.subr.bf16.mxu0 0
  %3210 = vmatpush1.bf16.msra.mxu0 %v3107
  %3211 = vmatprep.subr.bf16.mxu0 0
  %3212 = vmatpush1.bf16.msra.mxu0 %v3108
  %3213 = vmatprep.subr.bf16.mxu0 0
  %3214 = vmatpush1.bf16.msra.mxu0 %v3109
  %3215 = vmatprep.mubr.bf16.mxu0 %v2876
  %3216 = vmatmul.mubr.bf16.gmra.mrb[0].mxu0 %v2875
  %v3217 = vpop.f32.mrb[0].mxu0
  %v3218 = vadd.f32 %v3177, %v3217
  %v3219 = vpop.f32.mrb[0].mxu0
  %v3220 = vpop.f32.mrb[0].mxu0
  %v3221 = vadd.f32 %v3180, %v3220
  %v3222 = vpop.f32.mrb[0].mxu0
  %3223 = vdwg.mxu0
  %v3224 = vadd.f32 %v2493, %v3218
  %v3225 = vadd.f32 %v2494, %v3221
  %s3226 = scalar_lea.vmem %s18, 1
  %v3227 = vld [vmem:[%s3226] sm:$0x1]
  %s3228 = scalar_lea.vmem %s19, 1
  %v3229 = vld [vmem:[%s3228] sm:$0x1]
  %v3230 = vsel %vm171, %v3224, 0.0
  %3231 = vadd.xlane.f32.xlu0 %v3230
  %v3232 = vpop.xlane.xlu0 %3231
  %v3233 = vsel %vm171, %v3225, 0.0
  %3234 = vadd.xlane.f32.xlu0 %v3233
  %v3235 = vpop.xlane.xlu0 %3234
  %v3236 = vmul.f32 %v3232, %v282
  %v3237 = vmul.f32 %v3235, %v282
  %v3238 = vsub.f32 %v3224, %v3236
  %v3239 = vsub.f32 %v3225, %v3237
  %v3240 = vmul.f32 %v3238, %v3238
  %v3241 = vmul.f32 %v3239, %v3239
  %v3242 = vsel %vm171, %v3240, 0.0
  %3243 = vadd.xlane.f32.xlu0 %v3242
  %v3244 = vpop.xlane.xlu0 %3243
  %v3245 = vsel %vm171, %v3241, 0.0
  %3246 = vadd.xlane.f32.xlu0 %v3245
  %v3247 = vpop.xlane.xlu0 %3246
  %v3248 = vmul.f32 %v3244, %v282
  %v3249 = vmul.f32 %v3247, %v282
  %v3250 = vadd.f32 %v3248, 1e-05
  %v3251 = vadd.f32 %v3249, 1e-05
  %v3252 = vrsqrt.pop %v3250
  %v3253 = vrsqrt.pop %v3251
  %v3254 = vmul.f32 %v3238, %v3252
  %v3255 = vmul.f32 %v3239, %v3253
  %v3257 = vlaneseq
  %v3258 = vshrl.u32 %v3257, 7
  %v3259 = vsub.s32 0, %v3258
  %v3260 = vrot.slane %v3227, %v3259
  %v3262 = vmul.f32 %v3254, %v3260
  %v3263 = vmul.f32 %v3255, %v3260
  %v3265 = vlaneseq
  %v3266 = vshrl.u32 %v3265, 7
  %v3267 = vsub.s32 0, %v3266
  %v3268 = vrot.slane %v3229, %v3267
  %v3270 = vadd.f32 %v3262, %v3268
  %v3271 = vadd.f32 %v3263, %v3268
  %v3272 = vadd.f32 %v1791, %v3270
  %v3273 = vadd.f32 %v1792, %v3271
  %v3274 = vld [vmem:[%s3] sm:$0xff]
  %v3276 = vsel %vm441, %v3274, 0
  %3278 = vmatprep.subr.mxu0 0.0
  %3279 = vmatpush1.msra.mxu0 %v3272
  %3280 = vmatprep.subr.mxu0 0.0
  %3281 = vmatpush1.msra.mxu0 %v3273
  %3282 = vmatprep.subr.mxu0 0.0
  %3283 = vmatpush1.msra.mxu0 0.0
  %3284 = vmatprep.subr.mxu0 0.0
  %3285 = vmatpush1.msra.mxu0 0.0
  %3286 = vmatprep.subr.mxu0 0.0
  %3287 = vmatpush1.msra.mxu0 0.0
  %3288 = vmatprep.subr.mxu0 0.0
  %3289 = vmatpush1.msra.mxu0 0.0
  %3290 = vmatprep.subr.mxu0 0.0
  %3291 = vmatpush1.msra.mxu0 0.0
  %3292 = vmatprep.subr.mxu0 0.0
  %3293 = vmatpush1.msra.mxu0 0.0
  %3294 = vmatprep.subr.mxu0 0.0
  %3295 = vmatpush1.msra.mxu0 0.0
  %3296 = vmatprep.subr.mxu0 0.0
  %3297 = vmatpush1.msra.mxu0 0.0
  %3298 = vmatprep.subr.mxu0 0.0
  %3299 = vmatpush1.msra.mxu0 0.0
  %3300 = vmatprep.subr.mxu0 0.0
  %3301 = vmatpush1.msra.mxu0 0.0
  %3302 = vmatprep.subr.mxu0 0.0
  %3303 = vmatpush1.msra.mxu0 0.0
  %3304 = vmatprep.subr.mxu0 0.0
  %3305 = vmatpush1.msra.mxu0 0.0
  %3306 = vmatprep.subr.mxu0 0.0
  %3307 = vmatpush1.msra.mxu0 0.0
  %3308 = vmatprep.subr.mxu0 0.0
  %3309 = vmatpush1.msra.mxu0 0.0
  %3310 = vmatprep.subr.mxu0 0.0
  %3311 = vmatpush1.msra.mxu0 0.0
  %3312 = vmatprep.subr.mxu0 0.0
  %3313 = vmatpush1.msra.mxu0 0.0
  %3314 = vmatprep.subr.mxu0 0.0
  %3315 = vmatpush1.msra.mxu0 0.0
  %3316 = vmatprep.subr.mxu0 0.0
  %3317 = vmatpush1.msra.mxu0 0.0
  %3318 = vmatprep.subr.mxu0 0.0
  %3319 = vmatpush1.msra.mxu0 0.0
  %3320 = vmatprep.subr.mxu0 0.0
  %3321 = vmatpush1.msra.mxu0 0.0
  %3322 = vmatprep.subr.mxu0 0.0
  %3323 = vmatpush1.msra.mxu0 0.0
  %3324 = vmatprep.subr.mxu0 0.0
  %3325 = vmatpush1.msra.mxu0 0.0
  %3326 = vmatprep.subr.mxu0 0.0
  %3327 = vmatpush1.msra.mxu0 0.0
  %3328 = vmatprep.subr.mxu0 0.0
  %3329 = vmatpush1.msra.mxu0 0.0
  %3330 = vmatprep.subr.mxu0 0.0
  %3331 = vmatpush1.msra.mxu0 0.0
  %3332 = vmatprep.subr.mxu0 0.0
  %3333 = vmatpush1.msra.mxu0 0.0
  %3334 = vmatprep.subr.mxu0 0.0
  %3335 = vmatpush1.msra.mxu0 0.0
  %3336 = vmatprep.subr.mxu0 0.0
  %3337 = vmatpush1.msra.mxu0 0.0
  %3338 = vmatprep.subr.mxu0 0.0
  %3339 = vmatpush1.msra.mxu0 0.0
  %3340 = vmatprep.subr.mxu0 0.0
  %3341 = vmatpush1.msra.mxu0 0.0
  %3342 = vmatprep.mubr.f32.mxu0 0.0
  %3343 = vmatmul.mubr.f32.gmra.mrb[0].mxu0 %v3276
  %v3344 = vpop.f32.mrb[0].mxu0
  %v3345 = vadd.f32 0.0, %v3344
  %v3346 = vpop.f32.mrb[0].mxu0
  %3347 = vdwg.mxu0
  %v3348 = vld [vmem:[%s20] sm:$0x1]
  %v3349 = vld [vmem:[%s21] sm:$0x1]
  %v3350 = vsel %vm171, %v3345, 0.0
  %3351 = vadd.xlane.f32.xlu0 %v3350
  %v3352 = vpop.xlane.xlu0 %3351
  %v3353 = vmul.f32 %v3352, %v282
  %v3354 = vsub.f32 %v3345, %v3353
  %v3355 = vmul.f32 %v3354, %v3354
  %v3356 = vsel %vm171, %v3355, 0.0
  %3357 = vadd.xlane.f32.xlu0 %v3356
  %v3358 = vpop.xlane.xlu0 %3357
  %v3359 = vmul.f32 %v3358, %v282
  %v3360 = vadd.f32 %v3359, 1e-05
  %v3361 = vrsqrt.pop %v3360
  %v3362 = vmul.f32 %v3354, %v3361
  %v3364 = vlaneseq
  %v3365 = vshrl.u32 %v3364, 7
  %v3366 = vsub.s32 0, %v3365
  %v3367 = vrot.slane %v3348, %v3366
  %v3369 = vmul.f32 %v3362, %v3367
  %v3371 = vlaneseq
  %v3372 = vshrl.u32 %v3371, 7
  %v3373 = vsub.s32 0, %v3372
  %v3374 = vrot.slane %v3349, %v3373
  %v3376 = vadd.f32 %v3369, %v3374
  %v3377 = vmax.f32 %v3376, 0.0
  %v3378 = vpack.c.bf16 %v3377, %v3377
  %v3379 = vld [vmem:[%s22] sm:$0xf]
  %v3380 = vld [vmem:[%s22 + $0x4] sm:$0xf]
  %v3381 = vld [vmem:[%s22 + $0x8] sm:$0xf]
  %v3382 = vld [vmem:[%s22 + $0xc] sm:$0xf]
  %v3383 = vld [vmem:[%s23] sm:$0x1]
  %v3385 = vlaneseq
  %v3386 = vshrl.u32 %v3385, 7
  %v3387 = vsub.s32 0, %v3386
  %v3388 = vrot.slane %v3383, %v3387
  %v3394 = vunpack.c.l.b16 %v3379
  %v3395 = vunpack.c.l.b16 %v3380
  %v3396 = vunpack.c.l.b16 %v3381
  %v3397 = vunpack.c.l.b16 %v3382
  %v3398 = vpack.c.b16 %v3395, %v3394
  %v3399 = vpack.c.b16 %v3397, %v3396
  %v3403 = vsel %vm171, %v3378, 0
  %3405 = vmatprep.subr.bf16.mxu0 0
  %3406 = vmatpush1.bf16.msra.mxu0 %v3398
  %3407 = vmatprep.subr.bf16.mxu0 0
  %3408 = vmatpush1.bf16.msra.mxu0 %v3399
  %3409 = vmatprep.subr.bf16.mxu0 0
  %3410 = vmatpush1.bf16.msra.mxu0 0
  %3411 = vmatprep.subr.bf16.mxu0 0
  %3412 = vmatpush1.bf16.msra.mxu0 0
  %3413 = vmatprep.subr.bf16.mxu0 0
  %3414 = vmatpush1.bf16.msra.mxu0 0
  %3415 = vmatprep.subr.bf16.mxu0 0
  %3416 = vmatpush1.bf16.msra.mxu0 0
  %3417 = vmatprep.subr.bf16.mxu0 0
  %3418 = vmatpush1.bf16.msra.mxu0 0
  %3419 = vmatprep.subr.bf16.mxu0 0
  %3420 = vmatpush1.bf16.msra.mxu0 0
  %3421 = vmatprep.subr.bf16.mxu0 0
  %3422 = vmatpush1.bf16.msra.mxu0 0
  %3423 = vmatprep.subr.bf16.mxu0 0
  %3424 = vmatpush1.bf16.msra.mxu0 0
  %3425 = vmatprep.subr.bf16.mxu0 0
  %3426 = vmatpush1.bf16.msra.mxu0 0
  %3427 = vmatprep.subr.bf16.mxu0 0
  %3428 = vmatpush1.bf16.msra.mxu0 0
  %3429 = vmatprep.subr.bf16.mxu0 0
  %3430 = vmatpush1.bf16.msra.mxu0 0
  %3431 = vmatprep.subr.bf16.mxu0 0
  %3432 = vmatpush1.bf16.msra.mxu0 0
  %3433 = vmatprep.subr.bf16.mxu0 0
  %3434 = vmatpush1.bf16.msra.mxu0 0
  %3435 = vmatprep.subr.bf16.mxu0 0
  %3436 = vmatpush1.bf16.msra.mxu0 0
  %3437 = vmatprep.mubr.bf16.mxu0 0
  %3438 = vmatmul.mubr.bf16.gmra.mrb[0].mxu0 %v3403
  %v3439 = vpop.f32.mrb[0].mxu0
  %v3440 = vadd.f32 %v3388, %v3439
  %v3441 = vpop.f32.mrb[0].mxu0
  %v3442 = vpop.f32.mrb[0].mxu0
  %v3443 = vpop.f32.mrb[0].mxu0
  %3444 = vdwg.mxu0
  %3445 = vst [vmem:[%s24] sm:$0xff] %v3440
  // Predicated region
  $region98: #{easytrans_forward.1} parent=0 // pred_check
    _
  $region99: #{easytrans_forward.1} parent=0 // pred_check_branch
    %3447 = sbr.rel (0) target = $region101
  $region100: #{easytrans_forward.1} parent=0 // pred_region
    _
  $region101: #{easytrans_forward.1} parent=0 // pred_fallthru
    _
  // Predicated region
  $region102: #{easytrans_forward.1} parent=0 // pred_check
    _
  $region103: #{easytrans_forward.1} parent=0 // pred_check_branch
    %3449 = sbr.rel (0) target = $region105
  $region104: #{easytrans_forward.1} parent=0 // pred_region
    _
  $region105: #{easytrans_forward.1} parent=0 // pred_fallthru
    _

</llo_original>
